<compile_context>
chip_gen: v6e
topology: v6e:2x2x1
jax: 0.10.0
libtpu: 0.0.40
codegen_flags: <defaults>
</compile_context>

<pallas_src>
import jax
import jax.numpy as jnp
from jax import lax
from jax.experimental import pallas as pl
from jax.experimental.pallas import tpu as pltpu

KERNEL_SIZE = 300
NO_OF_NEURONS = 60
DILATION = 1
STRIDE = 1
PADDING = int(((DILATION * (KERNEL_SIZE - 1) - 1) / STRIDE - 1) / 2)  # = 148
PAD1 = PADDING + 1  # layer-1 conv padding (149)
PAD2 = PADDING + 2  # layer-2 conv padding (150)


def fused_cnn_kernel(x_ref, w1_ref, b1_ref, w2_ref, b2_ref, o_ref,
                     a1_ref, hpt_ref, p_ref):
    """Fused conv1d+ReLU (x2) for one batch element.

    x_ref : (1, 1, Lpad1) f32   zero-padded input, length on lanes
    w1_ref: (C, K)        bf16  layer-1 weights, w1[c, k] = torch_w1[c, 0, k]
    b1_ref: (C, 1)        f32   layer-1 bias (column)
    w2_ref: (K, C)        bf16  layer-2 weights, w2[k, c] = torch_w2[0, c, k]
    b2_ref: (1,)          f32   layer-2 bias (SMEM scalar)
    o_ref : (1, 1, L)     f32   output, length on lanes

    a1_ref : (Lout1, K)   f32   layer-1 im2col slab (VMEM scratch)
    hpt_ref: (C, Lpad2)   f32   zero-padded layer-1 activations, transposed
    p_ref  : (K, Lpad2)   f32   layer-2 per-tap partial products
    """
    K = w2_ref.shape[0]
    L = o_ref.shape[2]
    Lout1 = a1_ref.shape[0]          # = L - 1
    Lp2 = hpt_ref.shape[1]           # = L + 299
    pad2 = (Lp2 - Lout1) // 2        # = 150

    # ---- layer 1: im2col slab + one deep (K=300) contraction on the MXU ----
    xv = x_ref[0]                                    # (1, Lpad1)
    for t in range(Lout1):                           # static unroll
        a1_ref[t:t + 1, :] = xv[:, t:t + K]          # A1[t, k] = xpad[t + k]
    a1 = a1_ref[...].astype(jnp.bfloat16)            # (Lout1, K)
    # hT[c, t] = sum_k w1[c, k] * A1[t, k]  ->  (C, Lout1)
    ht = lax.dot_general(w1_ref[...], a1, (((1,), (1,)), ((), ())),
                         preferred_element_type=jnp.float32)
    ht = jnp.maximum(ht + b1_ref[...], 0.0)          # bias + ReLU

    # ---- layer 2: one (K,C)@(C,Lpad2) matmul + static diagonal-band sum ----
    hpt_ref[...] = jnp.zeros_like(hpt_ref)
    hpt_ref[:, pad2:pad2 + Lout1] = ht               # zero-padded, transposed
    # P[k, s] = sum_c w2[k, c] * hpadT[c, s]
    p_ref[...] = jnp.dot(w2_ref[...], hpt_ref[...].astype(jnp.bfloat16),
                         preferred_element_type=jnp.float32)

    # y[t] = sum_k P[k, t + k]   (register-carried accumulator, stored once)
    acc = p_ref[0:1, 0:L]
    for k in range(1, K):                            # static unroll
        acc = acc + p_ref[k:k + 1, k:k + L]
    o_ref[0] = jnp.maximum(acc + b2_ref[0], 0.0).astype(o_ref.dtype)


def cnn_forward_pallas(x_ncl, params):
    """CNNModel.forward.  x_ncl: (N, 1, L) -> (N, 1, L)."""
    N, Cin, L = x_ncl.shape
    assert Cin == 1 and L >= 2
    K = KERNEL_SIZE
    C = NO_OF_NEURONS
    Lpad1 = L + 2 * PAD1          # layer-1 padded length
    Lout1 = Lpad1 - K + 1         # = L - 1
    Lpad2 = Lout1 + 2 * PAD2      # layer-2 padded length = L + 299

    xpad = jnp.pad(x_ncl.astype(jnp.float32), ((0, 0), (0, 0), (PAD1, PAD1)))

    return pl.pallas_call(
        fused_cnn_kernel,
        out_shape=jax.ShapeDtypeStruct((N, 1, L), jnp.float32),
        grid_spec=pltpu.PrefetchScalarGridSpec(
            num_scalar_prefetch=0,
            grid=(N,),
            in_specs=[
                pl.BlockSpec((1, 1, Lpad1), lambda n: (n, 0, 0)),   # x
                pl.BlockSpec((C, K), lambda n: (0, 0)),             # w1 (bf16)
                pl.BlockSpec((C, 1), lambda n: (0, 0)),             # b1
                pl.BlockSpec((K, C), lambda n: (0, 0)),             # w2 (bf16)
                pl.BlockSpec(memory_space=pltpu.MemorySpace.SMEM),  # b2 scalar
            ],
            out_specs=pl.BlockSpec((1, 1, L), lambda n: (n, 0, 0)),
            scratch_shapes=[
                pltpu.VMEM((Lout1, K), jnp.float32),    # im2col slab
                pltpu.VMEM((C, Lpad2), jnp.float32),    # padded h^T
                pltpu.VMEM((K, Lpad2), jnp.float32),    # per-tap partials
            ],
        ),
        compiler_params=pltpu.CompilerParams(
            dimension_semantics=("parallel",)),
    )(xpad, params["w1_ck"], params["b1_col"], params["w2_kc"], params["b2"])


@jax.jit
def cnn_forward(x_ncl, params):
    return cnn_forward_pallas(x_ncl, params)


def init_params(key):
    """PyTorch-like uniform(-1/sqrt(fan_in), 1/sqrt(fan_in)) init."""
    k1, k2, k3, k4 = jax.random.split(key, 4)
    fan1 = 1 * KERNEL_SIZE
    fan2 = NO_OF_NEURONS * KERNEL_SIZE
    bnd1 = 1.0 / jnp.sqrt(jnp.float32(fan1))
    bnd2 = 1.0 / jnp.sqrt(jnp.float32(fan2))
    w1_oik = jax.random.uniform(k1, (NO_OF_NEURONS, 1, KERNEL_SIZE),
                                jnp.float32, -bnd1, bnd1)
    b1 = jax.random.uniform(k2, (NO_OF_NEURONS,), jnp.float32, -bnd1, bnd1)
    w2_oik = jax.random.uniform(k3, (1, NO_OF_NEURONS, KERNEL_SIZE),
                                jnp.float32, -bnd2, bnd2)
    b2 = jax.random.uniform(k4, (1,), jnp.float32, -bnd2, bnd2)
    return {
        # torch layouts (for the XLA reference)
        "w1_oik": w1_oik, "b1": b1, "w2_oik": w2_oik, "b2": b2,
        # kernel layouts (squeezed, bf16 weights; column bias)
        "w1_ck": w1_oik[:, 0, :].astype(jnp.bfloat16),                   # (C, K)
        "b1_col": b1.reshape(NO_OF_NEURONS, 1).astype(jnp.float32),      # (C, 1)
        "w2_kc": jnp.transpose(w2_oik[0], (1, 0)).astype(jnp.bfloat16),  # (K, C)
    }


def reference_forward(x_ncl, params):
    """Pure-JAX reference (XLA convs) for the correctness check."""
    def conv_relu(x, w_oik, b, pad):
        y = lax.conv_general_dilated(
            x, w_oik, window_strides=(1,), padding=[(pad, pad)],
            dimension_numbers=("NCH", "OIH", "NCH"))
        return jnp.maximum(y + b[None, :, None], 0.0)
    h = conv_relu(x_ncl, params["w1_oik"], params["b1"], PAD1)
    return conv_relu(h, params["w2_oik"], params["b2"], PAD2)


if __name__ == "__main__":
    key = jax.random.PRNGKey(0)
    pkey, xkey = jax.random.split(key)
    params = init_params(pkey)

    # Small input consistent with the module: batch=2, channels=1, length=64.
    x = jax.random.normal(xkey, (2, 1, 64), jnp.float32)

    out = jax.block_until_ready(cnn_forward(x, params))
    assert out.shape == (2, 1, 64), out.shape

    ref = jax.block_until_ready(reference_forward(x, params))
    if not jnp.allclose(out, ref, atol=1e-2, rtol=1e-2):
        max_err = float(jnp.max(jnp.abs(out - ref)))
        raise AssertionError(
            f"Pallas conv output mismatch vs XLA reference (max abs err {max_err})")

    print("KERNEL_OK")
</pallas_src>

<mosaic_0001>
module attributes {stable_mosaic.version = 11 : i64} {
  func.func @fused_cnn_kernel(%arg0: i32, %arg1: memref<1x1x362xf32, #tpu.memory_space<vmem>>, %arg2: memref<60x300xbf16, #tpu.memory_space<vmem>>, %arg3: memref<60x1xf32, #tpu.memory_space<vmem>>, %arg4: memref<300x60xbf16, #tpu.memory_space<vmem>>, %arg5: memref<1xf32, #tpu.memory_space<smem>>, %arg6: memref<1x1x64xf32, #tpu.memory_space<vmem>>, %arg7: memref<63x300xf32, #tpu.memory_space<vmem>>, %arg8: memref<60x363xf32, #tpu.memory_space<vmem>>, %arg9: memref<300x363xf32, #tpu.memory_space<vmem>>) attributes {dimension_semantics = [#tpu.dimension_semantics<parallel>], iteration_bounds = array<i64: 2>, scalar_prefetch = 0 : i64, scratch_operands = 3 : i64, tpu.core_type = #tpu.core_type<tc>, window_params = [{transform_indices = @transform_0, window_bounds = array<i64: 1, 1, 362>}, {pipeline_mode = #tpu.pipeline_mode<synchronous>, transform_indices = @transform_1, window_bounds = array<i64: 60, 300>}, {pipeline_mode = #tpu.pipeline_mode<synchronous>, transform_indices = @transform_2, window_bounds = array<i64: 60, 1>}, {pipeline_mode = #tpu.pipeline_mode<synchronous>, transform_indices = @transform_3, window_bounds = array<i64: 300, 60>}, {transform_indices = @transform_4, window_bounds = array<i64: 1>}, {transform_indices = @transform_5, window_bounds = array<i64: 1, 1, 64>}]} {
    %c0 = arith.constant 0 : index
    %c0_0 = arith.constant 0 : index
    %c0_1 = arith.constant 0 : index
    %0 = vector.load %arg1[%c0, %c0_0, %c0_1] : memref<1x1x362xf32, #tpu.memory_space<vmem>>, vector<1x1x362xf32>
    %1 = vector.shape_cast %0 : vector<1x1x362xf32> to vector<1x362xf32>
    %2 = vector.extract_strided_slice %1 {offsets = [0, 0], sizes = [1, 300], strides = [1, 1]} : vector<1x362xf32> to vector<1x300xf32>
    %c0_2 = arith.constant 0 : index
    %c0_3 = arith.constant 0 : index
    %3 = vector.load %arg7[%c0_2, %c0_3] : memref<63x300xf32, #tpu.memory_space<vmem>>, vector<1x300xf32>
    tpu.vector_store %arg7[%c0_2, %c0_3], %2 {strides = array<i32>} : memref<63x300xf32, #tpu.memory_space<vmem>>, vector<1x300xf32>,
    %4 = vector.extract_strided_slice %1 {offsets = [0, 1], sizes = [1, 300], strides = [1, 1]} : vector<1x362xf32> to vector<1x300xf32>
    %c1 = arith.constant 1 : index
    %c0_4 = arith.constant 0 : index
    %5 = vector.load %arg7[%c1, %c0_4] : memref<63x300xf32, #tpu.memory_space<vmem>>, vector<1x300xf32>
    tpu.vector_store %arg7[%c1, %c0_4], %4 {strides = array<i32>} : memref<63x300xf32, #tpu.memory_space<vmem>>, vector<1x300xf32>,
    %6 = vector.extract_strided_slice %1 {offsets = [0, 2], sizes = [1, 300], strides = [1, 1]} : vector<1x362xf32> to vector<1x300xf32>
    %c2 = arith.constant 2 : index
    %c0_5 = arith.constant 0 : index
    %7 = vector.load %arg7[%c2, %c0_5] : memref<63x300xf32, #tpu.memory_space<vmem>>, vector<1x300xf32>
    tpu.vector_store %arg7[%c2, %c0_5], %6 {strides = array<i32>} : memref<63x300xf32, #tpu.memory_space<vmem>>, vector<1x300xf32>,
    %8 = vector.extract_strided_slice %1 {offsets = [0, 3], sizes = [1, 300], strides = [1, 1]} : vector<1x362xf32> to vector<1x300xf32>
    %c3 = arith.constant 3 : index
    %c0_6 = arith.constant 0 : index
    %9 = vector.load %arg7[%c3, %c0_6] : memref<63x300xf32, #tpu.memory_space<vmem>>, vector<1x300xf32>
    tpu.vector_store %arg7[%c3, %c0_6], %8 {strides = array<i32>} : memref<63x300xf32, #tpu.memory_space<vmem>>, vector<1x300xf32>,
    %10 = vector.extract_strided_slice %1 {offsets = [0, 4], sizes = [1, 300], strides = [1, 1]} : vector<1x362xf32> to vector<1x300xf32>
    %c4 = arith.constant 4 : index
    %c0_7 = arith.constant 0 : index
    %11 = vector.load %arg7[%c4, %c0_7] : memref<63x300xf32, #tpu.memory_space<vmem>>, vector<1x300xf32>
    tpu.vector_store %arg7[%c4, %c0_7], %10 {strides = array<i32>} : memref<63x300xf32, #tpu.memory_space<vmem>>, vector<1x300xf32>,
    %12 = vector.extract_strided_slice %1 {offsets = [0, 5], sizes = [1, 300], strides = [1, 1]} : vector<1x362xf32> to vector<1x300xf32>
    %c5 = arith.constant 5 : index
    %c0_8 = arith.constant 0 : index
    %13 = vector.load %arg7[%c5, %c0_8] : memref<63x300xf32, #tpu.memory_space<vmem>>, vector<1x300xf32>
    tpu.vector_store %arg7[%c5, %c0_8], %12 {strides = array<i32>} : memref<63x300xf32, #tpu.memory_space<vmem>>, vector<1x300xf32>,
    %14 = vector.extract_strided_slice %1 {offsets = [0, 6], sizes = [1, 300], strides = [1, 1]} : vector<1x362xf32> to vector<1x300xf32>
    %c6 = arith.constant 6 : index
    %c0_9 = arith.constant 0 : index
    %15 = vector.load %arg7[%c6, %c0_9] : memref<63x300xf32, #tpu.memory_space<vmem>>, vector<1x300xf32>
    tpu.vector_store %arg7[%c6, %c0_9], %14 {strides = array<i32>} : memref<63x300xf32, #tpu.memory_space<vmem>>, vector<1x300xf32>,
    %16 = vector.extract_strided_slice %1 {offsets = [0, 7], sizes = [1, 300], strides = [1, 1]} : vector<1x362xf32> to vector<1x300xf32>
    %c7 = arith.constant 7 : index
    %c0_10 = arith.constant 0 : index
    %17 = vector.load %arg7[%c7, %c0_10] : memref<63x300xf32, #tpu.memory_space<vmem>>, vector<1x300xf32>
    tpu.vector_store %arg7[%c7, %c0_10], %16 {strides = array<i32>} : memref<63x300xf32, #tpu.memory_space<vmem>>, vector<1x300xf32>,
    %18 = vector.extract_strided_slice %1 {offsets = [0, 8], sizes = [1, 300], strides = [1, 1]} : vector<1x362xf32> to vector<1x300xf32>
    %c8 = arith.constant 8 : index
    %c0_11 = arith.constant 0 : index
    %19 = vector.load %arg7[%c8, %c0_11] : memref<63x300xf32, #tpu.memory_space<vmem>>, vector<1x300xf32>
    tpu.vector_store %arg7[%c8, %c0_11], %18 {strides = array<i32>} : memref<63x300xf32, #tpu.memory_space<vmem>>, vector<1x300xf32>,
    %20 = vector.extract_strided_slice %1 {offsets = [0, 9], sizes = [1, 300], strides = [1, 1]} : vector<1x362xf32> to vector<1x300xf32>
    %c9 = arith.constant 9 : index
    %c0_12 = arith.constant 0 : index
    %21 = vector.load %arg7[%c9, %c0_12] : memref<63x300xf32, #tpu.memory_space<vmem>>, vector<1x300xf32>
    tpu.vector_store %arg7[%c9, %c0_12], %20 {strides = array<i32>} : memref<63x300xf32, #tpu.memory_space<vmem>>, vector<1x300xf32>,
    %22 = vector.extract_strided_slice %1 {offsets = [0, 10], sizes = [1, 300], strides = [1, 1]} : vector<1x362xf32> to vector<1x300xf32>
    %c10 = arith.constant 10 : index
    %c0_13 = arith.constant 0 : index
    %23 = vector.load %arg7[%c10, %c0_13] : memref<63x300xf32, #tpu.memory_space<vmem>>, vector<1x300xf32>
    tpu.vector_store %arg7[%c10, %c0_13], %22 {strides = array<i32>} : memref<63x300xf32, #tpu.memory_space<vmem>>, vector<1x300xf32>,
    %24 = vector.extract_strided_slice %1 {offsets = [0, 11], sizes = [1, 300], strides = [1, 1]} : vector<1x362xf32> to vector<1x300xf32>
    %c11 = arith.constant 11 : index
    %c0_14 = arith.constant 0 : index
    %25 = vector.load %arg7[%c11, %c0_14] : memref<63x300xf32, #tpu.memory_space<vmem>>, vector<1x300xf32>
    tpu.vector_store %arg7[%c11, %c0_14], %24 {strides = array<i32>} : memref<63x300xf32, #tpu.memory_space<vmem>>, vector<1x300xf32>,
    %26 = vector.extract_strided_slice %1 {offsets = [0, 12], sizes = [1, 300], strides = [1, 1]} : vector<1x362xf32> to vector<1x300xf32>
    %c12 = arith.constant 12 : index
    %c0_15 = arith.constant 0 : index
    %27 = vector.load %arg7[%c12, %c0_15] : memref<63x300xf32, #tpu.memory_space<vmem>>, vector<1x300xf32>
    tpu.vector_store %arg7[%c12, %c0_15], %26 {strides = array<i32>} : memref<63x300xf32, #tpu.memory_space<vmem>>, vector<1x300xf32>,
    %28 = vector.extract_strided_slice %1 {offsets = [0, 13], sizes = [1, 300], strides = [1, 1]} : vector<1x362xf32> to vector<1x300xf32>
    %c13 = arith.constant 13 : index
    %c0_16 = arith.constant 0 : index
    %29 = vector.load %arg7[%c13, %c0_16] : memref<63x300xf32, #tpu.memory_space<vmem>>, vector<1x300xf32>
    tpu.vector_store %arg7[%c13, %c0_16], %28 {strides = array<i32>} : memref<63x300xf32, #tpu.memory_space<vmem>>, vector<1x300xf32>,
    %30 = vector.extract_strided_slice %1 {offsets = [0, 14], sizes = [1, 300], strides = [1, 1]} : vector<1x362xf32> to vector<1x300xf32>
    %c14 = arith.constant 14 : index
    %c0_17 = arith.constant 0 : index
    %31 = vector.load %arg7[%c14, %c0_17] : memref<63x300xf32, #tpu.memory_space<vmem>>, vector<1x300xf32>
    tpu.vector_store %arg7[%c14, %c0_17], %30 {strides = array<i32>} : memref<63x300xf32, #tpu.memory_space<vmem>>, vector<1x300xf32>,
    %32 = vector.extract_strided_slice %1 {offsets = [0, 15], sizes = [1, 300], strides = [1, 1]} : vector<1x362xf32> to vector<1x300xf32>
    %c15 = arith.constant 15 : index
    %c0_18 = arith.constant 0 : index
    %33 = vector.load %arg7[%c15, %c0_18] : memref<63x300xf32, #tpu.memory_space<vmem>>, vector<1x300xf32>
    tpu.vector_store %arg7[%c15, %c0_18], %32 {strides = array<i32>} : memref<63x300xf32, #tpu.memory_space<vmem>>, vector<1x300xf32>,
    %34 = vector.extract_strided_slice %1 {offsets = [0, 16], sizes = [1, 300], strides = [1, 1]} : vector<1x362xf32> to vector<1x300xf32>
    %c16 = arith.constant 16 : index
    %c0_19 = arith.constant 0 : index
    %35 = vector.load %arg7[%c16, %c0_19] : memref<63x300xf32, #tpu.memory_space<vmem>>, vector<1x300xf32>
    tpu.vector_store %arg7[%c16, %c0_19], %34 {strides = array<i32>} : memref<63x300xf32, #tpu.memory_space<vmem>>, vector<1x300xf32>,
    %36 = vector.extract_strided_slice %1 {offsets = [0, 17], sizes = [1, 300], strides = [1, 1]} : vector<1x362xf32> to vector<1x300xf32>
    %c17 = arith.constant 17 : index
    %c0_20 = arith.constant 0 : index
    %37 = vector.load %arg7[%c17, %c0_20] : memref<63x300xf32, #tpu.memory_space<vmem>>, vector<1x300xf32>
    tpu.vector_store %arg7[%c17, %c0_20], %36 {strides = array<i32>} : memref<63x300xf32, #tpu.memory_space<vmem>>, vector<1x300xf32>,
    %38 = vector.extract_strided_slice %1 {offsets = [0, 18], sizes = [1, 300], strides = [1, 1]} : vector<1x362xf32> to vector<1x300xf32>
    %c18 = arith.constant 18 : index
    %c0_21 = arith.constant 0 : index
    %39 = vector.load %arg7[%c18, %c0_21] : memref<63x300xf32, #tpu.memory_space<vmem>>, vector<1x300xf32>
    tpu.vector_store %arg7[%c18, %c0_21], %38 {strides = array<i32>} : memref<63x300xf32, #tpu.memory_space<vmem>>, vector<1x300xf32>,
    %40 = vector.extract_strided_slice %1 {offsets = [0, 19], sizes = [1, 300], strides = [1, 1]} : vector<1x362xf32> to vector<1x300xf32>
    %c19 = arith.constant 19 : index
    %c0_22 = arith.constant 0 : index
    %41 = vector.load %arg7[%c19, %c0_22] : memref<63x300xf32, #tpu.memory_space<vmem>>, vector<1x300xf32>
    tpu.vector_store %arg7[%c19, %c0_22], %40 {strides = array<i32>} : memref<63x300xf32, #tpu.memory_space<vmem>>, vector<1x300xf32>,
    %42 = vector.extract_strided_slice %1 {offsets = [0, 20], sizes = [1, 300], strides = [1, 1]} : vector<1x362xf32> to vector<1x300xf32>
    %c20 = arith.constant 20 : index
    %c0_23 = arith.constant 0 : index
    %43 = vector.load %arg7[%c20, %c0_23] : memref<63x300xf32, #tpu.memory_space<vmem>>, vector<1x300xf32>
    tpu.vector_store %arg7[%c20, %c0_23], %42 {strides = array<i32>} : memref<63x300xf32, #tpu.memory_space<vmem>>, vector<1x300xf32>,
    %44 = vector.extract_strided_slice %1 {offsets = [0, 21], sizes = [1, 300], strides = [1, 1]} : vector<1x362xf32> to vector<1x300xf32>
    %c21 = arith.constant 21 : index
    %c0_24 = arith.constant 0 : index
    %45 = vector.load %arg7[%c21, %c0_24] : memref<63x300xf32, #tpu.memory_space<vmem>>, vector<1x300xf32>
    tpu.vector_store %arg7[%c21, %c0_24], %44 {strides = array<i32>} : memref<63x300xf32, #tpu.memory_space<vmem>>, vector<1x300xf32>,
    %46 = vector.extract_strided_slice %1 {offsets = [0, 22], sizes = [1, 300], strides = [1, 1]} : vector<1x362xf32> to vector<1x300xf32>
    %c22 = arith.constant 22 : index
    %c0_25 = arith.constant 0 : index
    %47 = vector.load %arg7[%c22, %c0_25] : memref<63x300xf32, #tpu.memory_space<vmem>>, vector<1x300xf32>
    tpu.vector_store %arg7[%c22, %c0_25], %46 {strides = array<i32>} : memref<63x300xf32, #tpu.memory_space<vmem>>, vector<1x300xf32>,
    %48 = vector.extract_strided_slice %1 {offsets = [0, 23], sizes = [1, 300], strides = [1, 1]} : vector<1x362xf32> to vector<1x300xf32>
    %c23 = arith.constant 23 : index
    %c0_26 = arith.constant 0 : index
    %49 = vector.load %arg7[%c23, %c0_26] : memref<63x300xf32, #tpu.memory_space<vmem>>, vector<1x300xf32>
    tpu.vector_store %arg7[%c23, %c0_26], %48 {strides = array<i32>} : memref<63x300xf32, #tpu.memory_space<vmem>>, vector<1x300xf32>,
    %50 = vector.extract_strided_slice %1 {offsets = [0, 24], sizes = [1, 300], strides = [1, 1]} : vector<1x362xf32> to vector<1x300xf32>
    %c24 = arith.constant 24 : index
    %c0_27 = arith.constant 0 : index
    %51 = vector.load %arg7[%c24, %c0_27] : memref<63x300xf32, #tpu.memory_space<vmem>>, vector<1x300xf32>
    tpu.vector_store %arg7[%c24, %c0_27], %50 {strides = array<i32>} : memref<63x300xf32, #tpu.memory_space<vmem>>, vector<1x300xf32>,
    %52 = vector.extract_strided_slice %1 {offsets = [0, 25], sizes = [1, 300], strides = [1, 1]} : vector<1x362xf32> to vector<1x300xf32>
    %c25 = arith.constant 25 : index
    %c0_28 = arith.constant 0 : index
    %53 = vector.load %arg7[%c25, %c0_28] : memref<63x300xf32, #tpu.memory_space<vmem>>, vector<1x300xf32>
    tpu.vector_store %arg7[%c25, %c0_28], %52 {strides = array<i32>} : memref<63x300xf32, #tpu.memory_space<vmem>>, vector<1x300xf32>,
    %54 = vector.extract_strided_slice %1 {offsets = [0, 26], sizes = [1, 300], strides = [1, 1]} : vector<1x362xf32> to vector<1x300xf32>
    %c26 = arith.constant 26 : index
    %c0_29 = arith.constant 0 : index
    %55 = vector.load %arg7[%c26, %c0_29] : memref<63x300xf32, #tpu.memory_space<vmem>>, vector<1x300xf32>
    tpu.vector_store %arg7[%c26, %c0_29], %54 {strides = array<i32>} : memref<63x300xf32, #tpu.memory_space<vmem>>, vector<1x300xf32>,
    %56 = vector.extract_strided_slice %1 {offsets = [0, 27], sizes = [1, 300], strides = [1, 1]} : vector<1x362xf32> to vector<1x300xf32>
    %c27 = arith.constant 27 : index
    %c0_30 = arith.constant 0 : index
    %57 = vector.load %arg7[%c27, %c0_30] : memref<63x300xf32, #tpu.memory_space<vmem>>, vector<1x300xf32>
    tpu.vector_store %arg7[%c27, %c0_30], %56 {strides = array<i32>} : memref<63x300xf32, #tpu.memory_space<vmem>>, vector<1x300xf32>,
    %58 = vector.extract_strided_slice %1 {offsets = [0, 28], sizes = [1, 300], strides = [1, 1]} : vector<1x362xf32> to vector<1x300xf32>
    %c28 = arith.constant 28 : index
    %c0_31 = arith.constant 0 : index
    %59 = vector.load %arg7[%c28, %c0_31] : memref<63x300xf32, #tpu.memory_space<vmem>>, vector<1x300xf32>
    tpu.vector_store %arg7[%c28, %c0_31], %58 {strides = array<i32>} : memref<63x300xf32, #tpu.memory_space<vmem>>, vector<1x300xf32>,
    %60 = vector.extract_strided_slice %1 {offsets = [0, 29], sizes = [1, 300], strides = [1, 1]} : vector<1x362xf32> to vector<1x300xf32>
    %c29 = arith.constant 29 : index
    %c0_32 = arith.constant 0 : index
    %61 = vector.load %arg7[%c29, %c0_32] : memref<63x300xf32, #tpu.memory_space<vmem>>, vector<1x300xf32>
    tpu.vector_store %arg7[%c29, %c0_32], %60 {strides = array<i32>} : memref<63x300xf32, #tpu.memory_space<vmem>>, vector<1x300xf32>,
    %62 = vector.extract_strided_slice %1 {offsets = [0, 30], sizes = [1, 300], strides = [1, 1]} : vector<1x362xf32> to vector<1x300xf32>
    %c30 = arith.constant 30 : index
    %c0_33 = arith.constant 0 : index
    %63 = vector.load %arg7[%c30, %c0_33] : memref<63x300xf32, #tpu.memory_space<vmem>>, vector<1x300xf32>
    tpu.vector_store %arg7[%c30, %c0_33], %62 {strides = array<i32>} : memref<63x300xf32, #tpu.memory_space<vmem>>, vector<1x300xf32>,
    %64 = vector.extract_strided_slice %1 {offsets = [0, 31], sizes = [1, 300], strides = [1, 1]} : vector<1x362xf32> to vector<1x300xf32>
    %c31 = arith.constant 31 : index
    %c0_34 = arith.constant 0 : index
    %65 = vector.load %arg7[%c31, %c0_34] : memref<63x300xf32, #tpu.memory_space<vmem>>, vector<1x300xf32>
    tpu.vector_store %arg7[%c31, %c0_34], %64 {strides = array<i32>} : memref<63x300xf32, #tpu.memory_space<vmem>>, vector<1x300xf32>,
    %66 = vector.extract_strided_slice %1 {offsets = [0, 32], sizes = [1, 300], strides = [1, 1]} : vector<1x362xf32> to vector<1x300xf32>
    %c32 = arith.constant 32 : index
    %c0_35 = arith.constant 0 : index
    %67 = vector.load %arg7[%c32, %c0_35] : memref<63x300xf32, #tpu.memory_space<vmem>>, vector<1x300xf32>
    tpu.vector_store %arg7[%c32, %c0_35], %66 {strides = array<i32>} : memref<63x300xf32, #tpu.memory_space<vmem>>, vector<1x300xf32>,
    %68 = vector.extract_strided_slice %1 {offsets = [0, 33], sizes = [1, 300], strides = [1, 1]} : vector<1x362xf32> to vector<1x300xf32>
    %c33 = arith.constant 33 : index
    %c0_36 = arith.constant 0 : index
    %69 = vector.load %arg7[%c33, %c0_36] : memref<63x300xf32, #tpu.memory_space<vmem>>, vector<1x300xf32>
    tpu.vector_store %arg7[%c33, %c0_36], %68 {strides = array<i32>} : memref<63x300xf32, #tpu.memory_space<vmem>>, vector<1x300xf32>,
    %70 = vector.extract_strided_slice %1 {offsets = [0, 34], sizes = [1, 300], strides = [1, 1]} : vector<1x362xf32> to vector<1x300xf32>
    %c34 = arith.constant 34 : index
    %c0_37 = arith.constant 0 : index
    %71 = vector.load %arg7[%c34, %c0_37] : memref<63x300xf32, #tpu.memory_space<vmem>>, vector<1x300xf32>
    tpu.vector_store %arg7[%c34, %c0_37], %70 {strides = array<i32>} : memref<63x300xf32, #tpu.memory_space<vmem>>, vector<1x300xf32>,
    %72 = vector.extract_strided_slice %1 {offsets = [0, 35], sizes = [1, 300], strides = [1, 1]} : vector<1x362xf32> to vector<1x300xf32>
    %c35 = arith.constant 35 : index
    %c0_38 = arith.constant 0 : index
    %73 = vector.load %arg7[%c35, %c0_38] : memref<63x300xf32, #tpu.memory_space<vmem>>, vector<1x300xf32>
    tpu.vector_store %arg7[%c35, %c0_38], %72 {strides = array<i32>} : memref<63x300xf32, #tpu.memory_space<vmem>>, vector<1x300xf32>,
    %74 = vector.extract_strided_slice %1 {offsets = [0, 36], sizes = [1, 300], strides = [1, 1]} : vector<1x362xf32> to vector<1x300xf32>
    %c36 = arith.constant 36 : index
    %c0_39 = arith.constant 0 : index
    %75 = vector.load %arg7[%c36, %c0_39] : memref<63x300xf32, #tpu.memory_space<vmem>>, vector<1x300xf32>
    tpu.vector_store %arg7[%c36, %c0_39], %74 {strides = array<i32>} : memref<63x300xf32, #tpu.memory_space<vmem>>, vector<1x300xf32>,
    %76 = vector.extract_strided_slice %1 {offsets = [0, 37], sizes = [1, 300], strides = [1, 1]} : vector<1x362xf32> to vector<1x300xf32>
    %c37 = arith.constant 37 : index
    %c0_40 = arith.constant 0 : index
    %77 = vector.load %arg7[%c37, %c0_40] : memref<63x300xf32, #tpu.memory_space<vmem>>, vector<1x300xf32>
    tpu.vector_store %arg7[%c37, %c0_40], %76 {strides = array<i32>} : memref<63x300xf32, #tpu.memory_space<vmem>>, vector<1x300xf32>,
    %78 = vector.extract_strided_slice %1 {offsets = [0, 38], sizes = [1, 300], strides = [1, 1]} : vector<1x362xf32> to vector<1x300xf32>
    %c38 = arith.constant 38 : index
    %c0_41 = arith.constant 0 : index
    %79 = vector.load %arg7[%c38, %c0_41] : memref<63x300xf32, #tpu.memory_space<vmem>>, vector<1x300xf32>
    tpu.vector_store %arg7[%c38, %c0_41], %78 {strides = array<i32>} : memref<63x300xf32, #tpu.memory_space<vmem>>, vector<1x300xf32>,
    %80 = vector.extract_strided_slice %1 {offsets = [0, 39], sizes = [1, 300], strides = [1, 1]} : vector<1x362xf32> to vector<1x300xf32>
    %c39 = arith.constant 39 : index
    %c0_42 = arith.constant 0 : index
    %81 = vector.load %arg7[%c39, %c0_42] : memref<63x300xf32, #tpu.memory_space<vmem>>, vector<1x300xf32>
    tpu.vector_store %arg7[%c39, %c0_42], %80 {strides = array<i32>} : memref<63x300xf32, #tpu.memory_space<vmem>>, vector<1x300xf32>,
    %82 = vector.extract_strided_slice %1 {offsets = [0, 40], sizes = [1, 300], strides = [1, 1]} : vector<1x362xf32> to vector<1x300xf32>
    %c40 = arith.constant 40 : index
    %c0_43 = arith.constant 0 : index
    %83 = vector.load %arg7[%c40, %c0_43] : memref<63x300xf32, #tpu.memory_space<vmem>>, vector<1x300xf32>
    tpu.vector_store %arg7[%c40, %c0_43], %82 {strides = array<i32>} : memref<63x300xf32, #tpu.memory_space<vmem>>, vector<1x300xf32>,
    %84 = vector.extract_strided_slice %1 {offsets = [0, 41], sizes = [1, 300], strides = [1, 1]} : vector<1x362xf32> to vector<1x300xf32>
    %c41 = arith.constant 41 : index
    %c0_44 = arith.constant 0 : index
    %85 = vector.load %arg7[%c41, %c0_44] : memref<63x300xf32, #tpu.memory_space<vmem>>, vector<1x300xf32>
    tpu.vector_store %arg7[%c41, %c0_44], %84 {strides = array<i32>} : memref<63x300xf32, #tpu.memory_space<vmem>>, vector<1x300xf32>,
    %86 = vector.extract_strided_slice %1 {offsets = [0, 42], sizes = [1, 300], strides = [1, 1]} : vector<1x362xf32> to vector<1x300xf32>
    %c42 = arith.constant 42 : index
    %c0_45 = arith.constant 0 : index
    %87 = vector.load %arg7[%c42, %c0_45] : memref<63x300xf32, #tpu.memory_space<vmem>>, vector<1x300xf32>
    tpu.vector_store %arg7[%c42, %c0_45], %86 {strides = array<i32>} : memref<63x300xf32, #tpu.memory_space<vmem>>, vector<1x300xf32>,
    %88 = vector.extract_strided_slice %1 {offsets = [0, 43], sizes = [1, 300], strides = [1, 1]} : vector<1x362xf32> to vector<1x300xf32>
    %c43 = arith.constant 43 : index
    %c0_46 = arith.constant 0 : index
    %89 = vector.load %arg7[%c43, %c0_46] : memref<63x300xf32, #tpu.memory_space<vmem>>, vector<1x300xf32>
    tpu.vector_store %arg7[%c43, %c0_46], %88 {strides = array<i32>} : memref<63x300xf32, #tpu.memory_space<vmem>>, vector<1x300xf32>,
    %90 = vector.extract_strided_slice %1 {offsets = [0, 44], sizes = [1, 300], strides = [1, 1]} : vector<1x362xf32> to vector<1x300xf32>
    %c44 = arith.constant 44 : index
    %c0_47 = arith.constant 0 : index
    %91 = vector.load %arg7[%c44, %c0_47] : memref<63x300xf32, #tpu.memory_space<vmem>>, vector<1x300xf32>
    tpu.vector_store %arg7[%c44, %c0_47], %90 {strides = array<i32>} : memref<63x300xf32, #tpu.memory_space<vmem>>, vector<1x300xf32>,
    %92 = vector.extract_strided_slice %1 {offsets = [0, 45], sizes = [1, 300], strides = [1, 1]} : vector<1x362xf32> to vector<1x300xf32>
    %c45 = arith.constant 45 : index
    %c0_48 = arith.constant 0 : index
    %93 = vector.load %arg7[%c45, %c0_48] : memref<63x300xf32, #tpu.memory_space<vmem>>, vector<1x300xf32>
    tpu.vector_store %arg7[%c45, %c0_48], %92 {strides = array<i32>} : memref<63x300xf32, #tpu.memory_space<vmem>>, vector<1x300xf32>,
    %94 = vector.extract_strided_slice %1 {offsets = [0, 46], sizes = [1, 300], strides = [1, 1]} : vector<1x362xf32> to vector<1x300xf32>
    %c46 = arith.constant 46 : index
    %c0_49 = arith.constant 0 : index
    %95 = vector.load %arg7[%c46, %c0_49] : memref<63x300xf32, #tpu.memory_space<vmem>>, vector<1x300xf32>
    tpu.vector_store %arg7[%c46, %c0_49], %94 {strides = array<i32>} : memref<63x300xf32, #tpu.memory_space<vmem>>, vector<1x300xf32>,
    %96 = vector.extract_strided_slice %1 {offsets = [0, 47], sizes = [1, 300], strides = [1, 1]} : vector<1x362xf32> to vector<1x300xf32>
    %c47 = arith.constant 47 : index
    %c0_50 = arith.constant 0 : index
    %97 = vector.load %arg7[%c47, %c0_50] : memref<63x300xf32, #tpu.memory_space<vmem>>, vector<1x300xf32>
    tpu.vector_store %arg7[%c47, %c0_50], %96 {strides = array<i32>} : memref<63x300xf32, #tpu.memory_space<vmem>>, vector<1x300xf32>,
    %98 = vector.extract_strided_slice %1 {offsets = [0, 48], sizes = [1, 300], strides = [1, 1]} : vector<1x362xf32> to vector<1x300xf32>
    %c48 = arith.constant 48 : index
    %c0_51 = arith.constant 0 : index
    %99 = vector.load %arg7[%c48, %c0_51] : memref<63x300xf32, #tpu.memory_space<vmem>>, vector<1x300xf32>
    tpu.vector_store %arg7[%c48, %c0_51], %98 {strides = array<i32>} : memref<63x300xf32, #tpu.memory_space<vmem>>, vector<1x300xf32>,
    %100 = vector.extract_strided_slice %1 {offsets = [0, 49], sizes = [1, 300], strides = [1, 1]} : vector<1x362xf32> to vector<1x300xf32>
    %c49 = arith.constant 49 : index
    %c0_52 = arith.constant 0 : index
    %101 = vector.load %arg7[%c49, %c0_52] : memref<63x300xf32, #tpu.memory_space<vmem>>, vector<1x300xf32>
    tpu.vector_store %arg7[%c49, %c0_52], %100 {strides = array<i32>} : memref<63x300xf32, #tpu.memory_space<vmem>>, vector<1x300xf32>,
    %102 = vector.extract_strided_slice %1 {offsets = [0, 50], sizes = [1, 300], strides = [1, 1]} : vector<1x362xf32> to vector<1x300xf32>
    %c50 = arith.constant 50 : index
    %c0_53 = arith.constant 0 : index
    %103 = vector.load %arg7[%c50, %c0_53] : memref<63x300xf32, #tpu.memory_space<vmem>>, vector<1x300xf32>
    tpu.vector_store %arg7[%c50, %c0_53], %102 {strides = array<i32>} : memref<63x300xf32, #tpu.memory_space<vmem>>, vector<1x300xf32>,
    %104 = vector.extract_strided_slice %1 {offsets = [0, 51], sizes = [1, 300], strides = [1, 1]} : vector<1x362xf32> to vector<1x300xf32>
    %c51 = arith.constant 51 : index
    %c0_54 = arith.constant 0 : index
    %105 = vector.load %arg7[%c51, %c0_54] : memref<63x300xf32, #tpu.memory_space<vmem>>, vector<1x300xf32>
    tpu.vector_store %arg7[%c51, %c0_54], %104 {strides = array<i32>} : memref<63x300xf32, #tpu.memory_space<vmem>>, vector<1x300xf32>,
    %106 = vector.extract_strided_slice %1 {offsets = [0, 52], sizes = [1, 300], strides = [1, 1]} : vector<1x362xf32> to vector<1x300xf32>
    %c52 = arith.constant 52 : index
    %c0_55 = arith.constant 0 : index
    %107 = vector.load %arg7[%c52, %c0_55] : memref<63x300xf32, #tpu.memory_space<vmem>>, vector<1x300xf32>
    tpu.vector_store %arg7[%c52, %c0_55], %106 {strides = array<i32>} : memref<63x300xf32, #tpu.memory_space<vmem>>, vector<1x300xf32>,
    %108 = vector.extract_strided_slice %1 {offsets = [0, 53], sizes = [1, 300], strides = [1, 1]} : vector<1x362xf32> to vector<1x300xf32>
    %c53 = arith.constant 53 : index
    %c0_56 = arith.constant 0 : index
    %109 = vector.load %arg7[%c53, %c0_56] : memref<63x300xf32, #tpu.memory_space<vmem>>, vector<1x300xf32>
    tpu.vector_store %arg7[%c53, %c0_56], %108 {strides = array<i32>} : memref<63x300xf32, #tpu.memory_space<vmem>>, vector<1x300xf32>,
    %110 = vector.extract_strided_slice %1 {offsets = [0, 54], sizes = [1, 300], strides = [1, 1]} : vector<1x362xf32> to vector<1x300xf32>
    %c54 = arith.constant 54 : index
    %c0_57 = arith.constant 0 : index
    %111 = vector.load %arg7[%c54, %c0_57] : memref<63x300xf32, #tpu.memory_space<vmem>>, vector<1x300xf32>
    tpu.vector_store %arg7[%c54, %c0_57], %110 {strides = array<i32>} : memref<63x300xf32, #tpu.memory_space<vmem>>, vector<1x300xf32>,
    %112 = vector.extract_strided_slice %1 {offsets = [0, 55], sizes = [1, 300], strides = [1, 1]} : vector<1x362xf32> to vector<1x300xf32>
    %c55 = arith.constant 55 : index
    %c0_58 = arith.constant 0 : index
    %113 = vector.load %arg7[%c55, %c0_58] : memref<63x300xf32, #tpu.memory_space<vmem>>, vector<1x300xf32>
    tpu.vector_store %arg7[%c55, %c0_58], %112 {strides = array<i32>} : memref<63x300xf32, #tpu.memory_space<vmem>>, vector<1x300xf32>,
    %114 = vector.extract_strided_slice %1 {offsets = [0, 56], sizes = [1, 300], strides = [1, 1]} : vector<1x362xf32> to vector<1x300xf32>
    %c56 = arith.constant 56 : index
    %c0_59 = arith.constant 0 : index
    %115 = vector.load %arg7[%c56, %c0_59] : memref<63x300xf32, #tpu.memory_space<vmem>>, vector<1x300xf32>
    tpu.vector_store %arg7[%c56, %c0_59], %114 {strides = array<i32>} : memref<63x300xf32, #tpu.memory_space<vmem>>, vector<1x300xf32>,
    %116 = vector.extract_strided_slice %1 {offsets = [0, 57], sizes = [1, 300], strides = [1, 1]} : vector<1x362xf32> to vector<1x300xf32>
    %c57 = arith.constant 57 : index
    %c0_60 = arith.constant 0 : index
    %117 = vector.load %arg7[%c57, %c0_60] : memref<63x300xf32, #tpu.memory_space<vmem>>, vector<1x300xf32>
    tpu.vector_store %arg7[%c57, %c0_60], %116 {strides = array<i32>} : memref<63x300xf32, #tpu.memory_space<vmem>>, vector<1x300xf32>,
    %118 = vector.extract_strided_slice %1 {offsets = [0, 58], sizes = [1, 300], strides = [1, 1]} : vector<1x362xf32> to vector<1x300xf32>
    %c58 = arith.constant 58 : index
    %c0_61 = arith.constant 0 : index
    %119 = vector.load %arg7[%c58, %c0_61] : memref<63x300xf32, #tpu.memory_space<vmem>>, vector<1x300xf32>
    tpu.vector_store %arg7[%c58, %c0_61], %118 {strides = array<i32>} : memref<63x300xf32, #tpu.memory_space<vmem>>, vector<1x300xf32>,
    %120 = vector.extract_strided_slice %1 {offsets = [0, 59], sizes = [1, 300], strides = [1, 1]} : vector<1x362xf32> to vector<1x300xf32>
    %c59 = arith.constant 59 : index
    %c0_62 = arith.constant 0 : index
    %121 = vector.load %arg7[%c59, %c0_62] : memref<63x300xf32, #tpu.memory_space<vmem>>, vector<1x300xf32>
    tpu.vector_store %arg7[%c59, %c0_62], %120 {strides = array<i32>} : memref<63x300xf32, #tpu.memory_space<vmem>>, vector<1x300xf32>,
    %122 = vector.extract_strided_slice %1 {offsets = [0, 60], sizes = [1, 300], strides = [1, 1]} : vector<1x362xf32> to vector<1x300xf32>
    %c60 = arith.constant 60 : index
    %c0_63 = arith.constant 0 : index
    %123 = vector.load %arg7[%c60, %c0_63] : memref<63x300xf32, #tpu.memory_space<vmem>>, vector<1x300xf32>
    tpu.vector_store %arg7[%c60, %c0_63], %122 {strides = array<i32>} : memref<63x300xf32, #tpu.memory_space<vmem>>, vector<1x300xf32>,
    %124 = vector.extract_strided_slice %1 {offsets = [0, 61], sizes = [1, 300], strides = [1, 1]} : vector<1x362xf32> to vector<1x300xf32>
    %c61 = arith.constant 61 : index
    %c0_64 = arith.constant 0 : index
    %125 = vector.load %arg7[%c61, %c0_64] : memref<63x300xf32, #tpu.memory_space<vmem>>, vector<1x300xf32>
    tpu.vector_store %arg7[%c61, %c0_64], %124 {strides = array<i32>} : memref<63x300xf32, #tpu.memory_space<vmem>>, vector<1x300xf32>,
    %126 = vector.extract_strided_slice %1 {offsets = [0, 62], sizes = [1, 300], strides = [1, 1]} : vector<1x362xf32> to vector<1x300xf32>
    %c62 = arith.constant 62 : index
    %c0_65 = arith.constant 0 : index
    %127 = vector.load %arg7[%c62, %c0_65] : memref<63x300xf32, #tpu.memory_space<vmem>>, vector<1x300xf32>
    tpu.vector_store %arg7[%c62, %c0_65], %126 {strides = array<i32>} : memref<63x300xf32, #tpu.memory_space<vmem>>, vector<1x300xf32>,
    %c0_66 = arith.constant 0 : index
    %c0_67 = arith.constant 0 : index
    %128 = vector.load %arg7[%c0_66, %c0_67] : memref<63x300xf32, #tpu.memory_space<vmem>>, vector<63x300xf32>
    %129 = arith.truncf %128 : vector<63x300xf32> to vector<63x300xbf16>
    %c0_68 = arith.constant 0 : index
    %c0_69 = arith.constant 0 : index
    %130 = vector.load %arg2[%c0_68, %c0_69] : memref<60x300xbf16, #tpu.memory_space<vmem>>, vector<60x300xbf16>
    %cst = arith.constant dense<0.000000e+00> : vector<60x63xf32>
    %131 = tpu.matmul %130, %129, %cst {dimension_numbers = #tpu.dot_dimension_numbers<[1], [1], [0], [0], [0, 0, 1, 0], [], []>} : vector<60x300xbf16>, vector<63x300xbf16>, vector<60x63xf32> -> vector<60x63xf32>
    %c0_70 = arith.constant 0 : index
    %c0_71 = arith.constant 0 : index
    %132 = vector.load %arg3[%c0_70, %c0_71] : memref<60x1xf32, #tpu.memory_space<vmem>>, vector<60x1xf32>
    %133 = vector.broadcast %132 : vector<60x1xf32> to vector<60x63xf32>
    %134 = arith.addf %131, %133 : vector<60x63xf32>
    %cst_72 = arith.constant 0.000000e+00 : f32
    %135 = vector.broadcast %cst_72 : f32 to vector<60x63xf32>
    %136 = arith.maximumf %134, %135 : vector<60x63xf32>
    %cst_73 = arith.constant 0.000000e+00 : f32
    %137 = vector.broadcast %cst_73 : f32 to vector<60x363xf32>
    %c0_74 = arith.constant 0 : index
    %c0_75 = arith.constant 0 : index
    %138 = vector.load %arg8[%c0_74, %c0_75] : memref<60x363xf32, #tpu.memory_space<vmem>>, vector<60x363xf32>
    tpu.vector_store %arg8[%c0_74, %c0_75], %137 {strides = array<i32>} : memref<60x363xf32, #tpu.memory_space<vmem>>, vector<60x363xf32>,
    %c0_76 = arith.constant 0 : index
    %c150 = arith.constant 150 : index
    %139 = vector.load %arg8[%c0_76, %c150] : memref<60x363xf32, #tpu.memory_space<vmem>>, vector<60x63xf32>
    tpu.vector_store %arg8[%c0_76, %c150], %136 {strides = array<i32>} : memref<60x363xf32, #tpu.memory_space<vmem>>, vector<60x63xf32>,
    %c0_77 = arith.constant 0 : index
    %c0_78 = arith.constant 0 : index
    %140 = vector.load %arg4[%c0_77, %c0_78] : memref<300x60xbf16, #tpu.memory_space<vmem>>, vector<300x60xbf16>
    %c0_79 = arith.constant 0 : index
    %c0_80 = arith.constant 0 : index
    %141 = vector.load %arg8[%c0_79, %c0_80] : memref<60x363xf32, #tpu.memory_space<vmem>>, vector<60x363xf32>
    %142 = arith.truncf %141 : vector<60x363xf32> to vector<60x363xbf16>
    %cst_81 = arith.constant dense<0.000000e+00> : vector<300x363xf32>
    %143 = tpu.matmul %140, %142, %cst_81 {dimension_numbers = #tpu.dot_dimension_numbers<[1], [0], [0], [1], [0, 0, 1, 1], [], []>} : vector<300x60xbf16>, vector<60x363xbf16>, vector<300x363xf32> -> vector<300x363xf32>
    %c0_82 = arith.constant 0 : index
    %c0_83 = arith.constant 0 : index
    %144 = vector.load %arg9[%c0_82, %c0_83] : memref<300x363xf32, #tpu.memory_space<vmem>>, vector<300x363xf32>
    tpu.vector_store %arg9[%c0_82, %c0_83], %143 {strides = array<i32>} : memref<300x363xf32, #tpu.memory_space<vmem>>, vector<300x363xf32>,
    %c0_84 = arith.constant 0 : index
    %c0_85 = arith.constant 0 : index
    %145 = vector.load %arg9[%c0_84, %c0_85] : memref<300x363xf32, #tpu.memory_space<vmem>>, vector<1x64xf32>
    %c1_86 = arith.constant 1 : index
    %c1_87 = arith.constant 1 : index
    %146 = vector.load %arg9[%c1_86, %c1_87] : memref<300x363xf32, #tpu.memory_space<vmem>>, vector<1x64xf32>
    %147 = arith.addf %145, %146 : vector<1x64xf32>
    %c2_88 = arith.constant 2 : index
    %c2_89 = arith.constant 2 : index
    %148 = vector.load %arg9[%c2_88, %c2_89] : memref<300x363xf32, #tpu.memory_space<vmem>>, vector<1x64xf32>
    %149 = arith.addf %147, %148 : vector<1x64xf32>
    %c3_90 = arith.constant 3 : index
    %c3_91 = arith.constant 3 : index
    %150 = vector.load %arg9[%c3_90, %c3_91] : memref<300x363xf32, #tpu.memory_space<vmem>>, vector<1x64xf32>
    %151 = arith.addf %149, %150 : vector<1x64xf32>
    %c4_92 = arith.constant 4 : index
    %c4_93 = arith.constant 4 : index
    %152 = vector.load %arg9[%c4_92, %c4_93] : memref<300x363xf32, #tpu.memory_space<vmem>>, vector<1x64xf32>
    %153 = arith.addf %151, %152 : vector<1x64xf32>
    %c5_94 = arith.constant 5 : index
    %c5_95 = arith.constant 5 : index
    %154 = vector.load %arg9[%c5_94, %c5_95] : memref<300x363xf32, #tpu.memory_space<vmem>>, vector<1x64xf32>
    %155 = arith.addf %153, %154 : vector<1x64xf32>
    %c6_96 = arith.constant 6 : index
    %c6_97 = arith.constant 6 : index
    %156 = vector.load %arg9[%c6_96, %c6_97] : memref<300x363xf32, #tpu.memory_space<vmem>>, vector<1x64xf32>
    %157 = arith.addf %155, %156 : vector<1x64xf32>
    %c7_98 = arith.constant 7 : index
    %c7_99 = arith.constant 7 : index
    %158 = vector.load %arg9[%c7_98, %c7_99] : memref<300x363xf32, #tpu.memory_space<vmem>>, vector<1x64xf32>
    %159 = arith.addf %157, %158 : vector<1x64xf32>
    %c8_100 = arith.constant 8 : index
    %c8_101 = arith.constant 8 : index
    %160 = vector.load %arg9[%c8_100, %c8_101] : memref<300x363xf32, #tpu.memory_space<vmem>>, vector<1x64xf32>
    %161 = arith.addf %159, %160 : vector<1x64xf32>
    %c9_102 = arith.constant 9 : index
    %c9_103 = arith.constant 9 : index
    %162 = vector.load %arg9[%c9_102, %c9_103] : memref<300x363xf32, #tpu.memory_space<vmem>>, vector<1x64xf32>
    %163 = arith.addf %161, %162 : vector<1x64xf32>
    %c10_104 = arith.constant 10 : index
    %c10_105 = arith.constant 10 : index
    %164 = vector.load %arg9[%c10_104, %c10_105] : memref<300x363xf32, #tpu.memory_space<vmem>>, vector<1x64xf32>
    %165 = arith.addf %163, %164 : vector<1x64xf32>
    %c11_106 = arith.constant 11 : index
    %c11_107 = arith.constant 11 : index
    %166 = vector.load %arg9[%c11_106, %c11_107] : memref<300x363xf32, #tpu.memory_space<vmem>>, vector<1x64xf32>
    %167 = arith.addf %165, %166 : vector<1x64xf32>
    %c12_108 = arith.constant 12 : index
    %c12_109 = arith.constant 12 : index
    %168 = vector.load %arg9[%c12_108, %c12_109] : memref<300x363xf32, #tpu.memory_space<vmem>>, vector<1x64xf32>
    %169 = arith.addf %167, %168 : vector<1x64xf32>
    %c13_110 = arith.constant 13 : index
    %c13_111 = arith.constant 13 : index
    %170 = vector.load %arg9[%c13_110, %c13_111] : memref<300x363xf32, #tpu.memory_space<vmem>>, vector<1x64xf32>
    %171 = arith.addf %169, %170 : vector<1x64xf32>
    %c14_112 = arith.constant 14 : index
    %c14_113 = arith.constant 14 : index
    %172 = vector.load %arg9[%c14_112, %c14_113] : memref<300x363xf32, #tpu.memory_space<vmem>>, vector<1x64xf32>
    %173 = arith.addf %171, %172 : vector<1x64xf32>
    %c15_114 = arith.constant 15 : index
    %c15_115 = arith.constant 15 : index
    %174 = vector.load %arg9[%c15_114, %c15_115] : memref<300x363xf32, #tpu.memory_space<vmem>>, vector<1x64xf32>
    %175 = arith.addf %173, %174 : vector<1x64xf32>
    %c16_116 = arith.constant 16 : index
    %c16_117 = arith.constant 16 : index
    %176 = vector.load %arg9[%c16_116, %c16_117] : memref<300x363xf32, #tpu.memory_space<vmem>>, vector<1x64xf32>
    %177 = arith.addf %175, %176 : vector<1x64xf32>
    %c17_118 = arith.constant 17 : index
    %c17_119 = arith.constant 17 : index
    %178 = vector.load %arg9[%c17_118, %c17_119] : memref<300x363xf32, #tpu.memory_space<vmem>>, vector<1x64xf32>
    %179 = arith.addf %177, %178 : vector<1x64xf32>
    %c18_120 = arith.constant 18 : index
    %c18_121 = arith.constant 18 : index
    %180 = vector.load %arg9[%c18_120, %c18_121] : memref<300x363xf32, #tpu.memory_space<vmem>>, vector<1x64xf32>
    %181 = arith.addf %179, %180 : vector<1x64xf32>
    %c19_122 = arith.constant 19 : index
    %c19_123 = arith.constant 19 : index
    %182 = vector.load %arg9[%c19_122, %c19_123] : memref<300x363xf32, #tpu.memory_space<vmem>>, vector<1x64xf32>
    %183 = arith.addf %181, %182 : vector<1x64xf32>
    %c20_124 = arith.constant 20 : index
    %c20_125 = arith.constant 20 : index
    %184 = vector.load %arg9[%c20_124, %c20_125] : memref<300x363xf32, #tpu.memory_space<vmem>>, vector<1x64xf32>
    %185 = arith.addf %183, %184 : vector<1x64xf32>
    %c21_126 = arith.constant 21 : index
    %c21_127 = arith.constant 21 : index
    %186 = vector.load %arg9[%c21_126, %c21_127] : memref<300x363xf32, #tpu.memory_space<vmem>>, vector<1x64xf32>
    %187 = arith.addf %185, %186 : vector<1x64xf32>
    %c22_128 = arith.constant 22 : index
    %c22_129 = arith.constant 22 : index
    %188 = vector.load %arg9[%c22_128, %c22_129] : memref<300x363xf32, #tpu.memory_space<vmem>>, vector<1x64xf32>
    %189 = arith.addf %187, %188 : vector<1x64xf32>
    %c23_130 = arith.constant 23 : index
    %c23_131 = arith.constant 23 : index
    %190 = vector.load %arg9[%c23_130, %c23_131] : memref<300x363xf32, #tpu.memory_space<vmem>>, vector<1x64xf32>
    %191 = arith.addf %189, %190 : vector<1x64xf32>
    %c24_132 = arith.constant 24 : index
    %c24_133 = arith.constant 24 : index
    %192 = vector.load %arg9[%c24_132, %c24_133] : memref<300x363xf32, #tpu.memory_space<vmem>>, vector<1x64xf32>
    %193 = arith.addf %191, %192 : vector<1x64xf32>
    %c25_134 = arith.constant 25 : index
    %c25_135 = arith.constant 25 : index
    %194 = vector.load %arg9[%c25_134, %c25_135] : memref<300x363xf32, #tpu.memory_space<vmem>>, vector<1x64xf32>
    %195 = arith.addf %193, %194 : vector<1x64xf32>
    %c26_136 = arith.constant 26 : index
    %c26_137 = arith.constant 26 : index
    %196 = vector.load %arg9[%c26_136, %c26_137] : memref<300x363xf32, #tpu.memory_space<vmem>>, vector<1x64xf32>
    %197 = arith.addf %195, %196 : vector<1x64xf32>
    %c27_138 = arith.constant 27 : index
    %c27_139 = arith.constant 27 : index
    %198 = vector.load %arg9[%c27_138, %c27_139] : memref<300x363xf32, #tpu.memory_space<vmem>>, vector<1x64xf32>
    %199 = arith.addf %197, %198 : vector<1x64xf32>
    %c28_140 = arith.constant 28 : index
    %c28_141 = arith.constant 28 : index
    %200 = vector.load %arg9[%c28_140, %c28_141] : memref<300x363xf32, #tpu.memory_space<vmem>>, vector<1x64xf32>
    %201 = arith.addf %199, %200 : vector<1x64xf32>
    %c29_142 = arith.constant 29 : index
    %c29_143 = arith.constant 29 : index
    %202 = vector.load %arg9[%c29_142, %c29_143] : memref<300x363xf32, #tpu.memory_space<vmem>>, vector<1x64xf32>
    %203 = arith.addf %201, %202 : vector<1x64xf32>
    %c30_144 = arith.constant 30 : index
    %c30_145 = arith.constant 30 : index
    %204 = vector.load %arg9[%c30_144, %c30_145] : memref<300x363xf32, #tpu.memory_space<vmem>>, vector<1x64xf32>
    %205 = arith.addf %203, %204 : vector<1x64xf32>
    %c31_146 = arith.constant 31 : index
    %c31_147 = arith.constant 31 : index
    %206 = vector.load %arg9[%c31_146, %c31_147] : memref<300x363xf32, #tpu.memory_space<vmem>>, vector<1x64xf32>
    %207 = arith.addf %205, %206 : vector<1x64xf32>
    %c32_148 = arith.constant 32 : index
    %c32_149 = arith.constant 32 : index
    %208 = vector.load %arg9[%c32_148, %c32_149] : memref<300x363xf32, #tpu.memory_space<vmem>>, vector<1x64xf32>
    %209 = arith.addf %207, %208 : vector<1x64xf32>
    %c33_150 = arith.constant 33 : index
    %c33_151 = arith.constant 33 : index
    %210 = vector.load %arg9[%c33_150, %c33_151] : memref<300x363xf32, #tpu.memory_space<vmem>>, vector<1x64xf32>
    %211 = arith.addf %209, %210 : vector<1x64xf32>
    %c34_152 = arith.constant 34 : index
    %c34_153 = arith.constant 34 : index
    %212 = vector.load %arg9[%c34_152, %c34_153] : memref<300x363xf32, #tpu.memory_space<vmem>>, vector<1x64xf32>
    %213 = arith.addf %211, %212 : vector<1x64xf32>
    %c35_154 = arith.constant 35 : index
    %c35_155 = arith.constant 35 : index
    %214 = vector.load %arg9[%c35_154, %c35_155] : memref<300x363xf32, #tpu.memory_space<vmem>>, vector<1x64xf32>
    %215 = arith.addf %213, %214 : vector<1x64xf32>
    %c36_156 = arith.constant 36 : index
    %c36_157 = arith.constant 36 : index
    %216 = vector.load %arg9[%c36_156, %c36_157] : memref<300x363xf32, #tpu.memory_space<vmem>>, vector<1x64xf32>
    %217 = arith.addf %215, %216 : vector<1x64xf32>
    %c37_158 = arith.constant 37 : index
    %c37_159 = arith.constant 37 : index
    %218 = vector.load %arg9[%c37_158, %c37_159] : memref<300x363xf32, #tpu.memory_space<vmem>>, vector<1x64xf32>
    %219 = arith.addf %217, %218 : vector<1x64xf32>
    %c38_160 = arith.constant 38 : index
    %c38_161 = arith.constant 38 : index
    %220 = vector.load %arg9[%c38_160, %c38_161] : memref<300x363xf32, #tpu.memory_space<vmem>>, vector<1x64xf32>
    %221 = arith.addf %219, %220 : vector<1x64xf32>
    %c39_162 = arith.constant 39 : index
    %c39_163 = arith.constant 39 : index
    %222 = vector.load %arg9[%c39_162, %c39_163] : memref<300x363xf32, #tpu.memory_space<vmem>>, vector<1x64xf32>
    %223 = arith.addf %221, %222 : vector<1x64xf32>
    %c40_164 = arith.constant 40 : index
    %c40_165 = arith.constant 40 : index
    %224 = vector.load %arg9[%c40_164, %c40_165] : memref<300x363xf32, #tpu.memory_space<vmem>>, vector<1x64xf32>
    %225 = arith.addf %223, %224 : vector<1x64xf32>
    %c41_166 = arith.constant 41 : index
    %c41_167 = arith.constant 41 : index
    %226 = vector.load %arg9[%c41_166, %c41_167] : memref<300x363xf32, #tpu.memory_space<vmem>>, vector<1x64xf32>
    %227 = arith.addf %225, %226 : vector<1x64xf32>
    %c42_168 = arith.constant 42 : index
    %c42_169 = arith.constant 42 : index
    %228 = vector.load %arg9[%c42_168, %c42_169] : memref<300x363xf32, #tpu.memory_space<vmem>>, vector<1x64xf32>
    %229 = arith.addf %227, %228 : vector<1x64xf32>
    %c43_170 = arith.constant 43 : index
    %c43_171 = arith.constant 43 : index
    %230 = vector.load %arg9[%c43_170, %c43_171] : memref<300x363xf32, #tpu.memory_space<vmem>>, vector<1x64xf32>
    %231 = arith.addf %229, %230 : vector<1x64xf32>
    %c44_172 = arith.constant 44 : index
    %c44_173 = arith.constant 44 : index
    %232 = vector.load %arg9[%c44_172, %c44_173] : memref<300x363xf32, #tpu.memory_space<vmem>>, vector<1x64xf32>
    %233 = arith.addf %231, %232 : vector<1x64xf32>
    %c45_174 = arith.constant 45 : index
    %c45_175 = arith.constant 45 : index
    %234 = vector.load %arg9[%c45_174, %c45_175] : memref<300x363xf32, #tpu.memory_space<vmem>>, vector<1x64xf32>
    %235 = arith.addf %233, %234 : vector<1x64xf32>
    %c46_176 = arith.constant 46 : index
    %c46_177 = arith.constant 46 : index
    %236 = vector.load %arg9[%c46_176, %c46_177] : memref<300x363xf32, #tpu.memory_space<vmem>>, vector<1x64xf32>
    %237 = arith.addf %235, %236 : vector<1x64xf32>
    %c47_178 = arith.constant 47 : index
    %c47_179 = arith.constant 47 : index
    %238 = vector.load %arg9[%c47_178, %c47_179] : memref<300x363xf32, #tpu.memory_space<vmem>>, vector<1x64xf32>
    %239 = arith.addf %237, %238 : vector<1x64xf32>
    %c48_180 = arith.constant 48 : index
    %c48_181 = arith.constant 48 : index
    %240 = vector.load %arg9[%c48_180, %c48_181] : memref<300x363xf32, #tpu.memory_space<vmem>>, vector<1x64xf32>
    %241 = arith.addf %239, %240 : vector<1x64xf32>
    %c49_182 = arith.constant 49 : index
    %c49_183 = arith.constant 49 : index
    %242 = vector.load %arg9[%c49_182, %c49_183] : memref<300x363xf32, #tpu.memory_space<vmem>>, vector<1x64xf32>
    %243 = arith.addf %241, %242 : vector<1x64xf32>
    %c50_184 = arith.constant 50 : index
    %c50_185 = arith.constant 50 : index
    %244 = vector.load %arg9[%c50_184, %c50_185] : memref<300x363xf32, #tpu.memory_space<vmem>>, vector<1x64xf32>
    %245 = arith.addf %243, %244 : vector<1x64xf32>
    %c51_186 = arith.constant 51 : index
    %c51_187 = arith.constant 51 : index
    %246 = vector.load %arg9[%c51_186, %c51_187] : memref<300x363xf32, #tpu.memory_space<vmem>>, vector<1x64xf32>
    %247 = arith.addf %245, %246 : vector<1x64xf32>
    %c52_188 = arith.constant 52 : index
    %c52_189 = arith.constant 52 : index
    %248 = vector.load %arg9[%c52_188, %c52_189] : memref<300x363xf32, #tpu.memory_space<vmem>>, vector<1x64xf32>
    %249 = arith.addf %247, %248 : vector<1x64xf32>
    %c53_190 = arith.constant 53 : index
    %c53_191 = arith.constant 53 : index
    %250 = vector.load %arg9[%c53_190, %c53_191] : memref<300x363xf32, #tpu.memory_space<vmem>>, vector<1x64xf32>
    %251 = arith.addf %249, %250 : vector<1x64xf32>
    %c54_192 = arith.constant 54 : index
    %c54_193 = arith.constant 54 : index
    %252 = vector.load %arg9[%c54_192, %c54_193] : memref<300x363xf32, #tpu.memory_space<vmem>>, vector<1x64xf32>
    %253 = arith.addf %251, %252 : vector<1x64xf32>
    %c55_194 = arith.constant 55 : index
    %c55_195 = arith.constant 55 : index
    %254 = vector.load %arg9[%c55_194, %c55_195] : memref<300x363xf32, #tpu.memory_space<vmem>>, vector<1x64xf32>
    %255 = arith.addf %253, %254 : vector<1x64xf32>
    %c56_196 = arith.constant 56 : index
    %c56_197 = arith.constant 56 : index
    %256 = vector.load %arg9[%c56_196, %c56_197] : memref<300x363xf32, #tpu.memory_space<vmem>>, vector<1x64xf32>
    %257 = arith.addf %255, %256 : vector<1x64xf32>
    %c57_198 = arith.constant 57 : index
    %c57_199 = arith.constant 57 : index
    %258 = vector.load %arg9[%c57_198, %c57_199] : memref<300x363xf32, #tpu.memory_space<vmem>>, vector<1x64xf32>
    %259 = arith.addf %257, %258 : vector<1x64xf32>
    %c58_200 = arith.constant 58 : index
    %c58_201 = arith.constant 58 : index
    %260 = vector.load %arg9[%c58_200, %c58_201] : memref<300x363xf32, #tpu.memory_space<vmem>>, vector<1x64xf32>
    %261 = arith.addf %259, %260 : vector<1x64xf32>
    %c59_202 = arith.constant 59 : index
    %c59_203 = arith.constant 59 : index
    %262 = vector.load %arg9[%c59_202, %c59_203] : memref<300x363xf32, #tpu.memory_space<vmem>>, vector<1x64xf32>
    %263 = arith.addf %261, %262 : vector<1x64xf32>
    %c60_204 = arith.constant 60 : index
    %c60_205 = arith.constant 60 : index
    %264 = vector.load %arg9[%c60_204, %c60_205] : memref<300x363xf32, #tpu.memory_space<vmem>>, vector<1x64xf32>
    %265 = arith.addf %263, %264 : vector<1x64xf32>
    %c61_206 = arith.constant 61 : index
    %c61_207 = arith.constant 61 : index
    %266 = vector.load %arg9[%c61_206, %c61_207] : memref<300x363xf32, #tpu.memory_space<vmem>>, vector<1x64xf32>
    %267 = arith.addf %265, %266 : vector<1x64xf32>
    %c62_208 = arith.constant 62 : index
    %c62_209 = arith.constant 62 : index
    %268 = vector.load %arg9[%c62_208, %c62_209] : memref<300x363xf32, #tpu.memory_space<vmem>>, vector<1x64xf32>
    %269 = arith.addf %267, %268 : vector<1x64xf32>
    %c63 = arith.constant 63 : index
    %c63_210 = arith.constant 63 : index
    %270 = vector.load %arg9[%c63, %c63_210] : memref<300x363xf32, #tpu.memory_space<vmem>>, vector<1x64xf32>
    %271 = arith.addf %269, %270 : vector<1x64xf32>
    %c64 = arith.constant 64 : index
    %c64_211 = arith.constant 64 : index
    %272 = vector.load %arg9[%c64, %c64_211] : memref<300x363xf32, #tpu.memory_space<vmem>>, vector<1x64xf32>
    %273 = arith.addf %271, %272 : vector<1x64xf32>
    %c65 = arith.constant 65 : index
    %c65_212 = arith.constant 65 : index
    %274 = vector.load %arg9[%c65, %c65_212] : memref<300x363xf32, #tpu.memory_space<vmem>>, vector<1x64xf32>
    %275 = arith.addf %273, %274 : vector<1x64xf32>
    %c66 = arith.constant 66 : index
    %c66_213 = arith.constant 66 : index
    %276 = vector.load %arg9[%c66, %c66_213] : memref<300x363xf32, #tpu.memory_space<vmem>>, vector<1x64xf32>
    %277 = arith.addf %275, %276 : vector<1x64xf32>
    %c67 = arith.constant 67 : index
    %c67_214 = arith.constant 67 : index
    %278 = vector.load %arg9[%c67, %c67_214] : memref<300x363xf32, #tpu.memory_space<vmem>>, vector<1x64xf32>
    %279 = arith.addf %277, %278 : vector<1x64xf32>
    %c68 = arith.constant 68 : index
    %c68_215 = arith.constant 68 : index
    %280 = vector.load %arg9[%c68, %c68_215] : memref<300x363xf32, #tpu.memory_space<vmem>>, vector<1x64xf32>
    %281 = arith.addf %279, %280 : vector<1x64xf32>
    %c69 = arith.constant 69 : index
    %c69_216 = arith.constant 69 : index
    %282 = vector.load %arg9[%c69, %c69_216] : memref<300x363xf32, #tpu.memory_space<vmem>>, vector<1x64xf32>
    %283 = arith.addf %281, %282 : vector<1x64xf32>
    %c70 = arith.constant 70 : index
    %c70_217 = arith.constant 70 : index
    %284 = vector.load %arg9[%c70, %c70_217] : memref<300x363xf32, #tpu.memory_space<vmem>>, vector<1x64xf32>
    %285 = arith.addf %283, %284 : vector<1x64xf32>
    %c71 = arith.constant 71 : index
    %c71_218 = arith.constant 71 : index
    %286 = vector.load %arg9[%c71, %c71_218] : memref<300x363xf32, #tpu.memory_space<vmem>>, vector<1x64xf32>
    %287 = arith.addf %285, %286 : vector<1x64xf32>
    %c72 = arith.constant 72 : index
    %c72_219 = arith.constant 72 : index
    %288 = vector.load %arg9[%c72, %c72_219] : memref<300x363xf32, #tpu.memory_space<vmem>>, vector<1x64xf32>
    %289 = arith.addf %287, %288 : vector<1x64xf32>
    %c73 = arith.constant 73 : index
    %c73_220 = arith.constant 73 : index
    %290 = vector.load %arg9[%c73, %c73_220] : memref<300x363xf32, #tpu.memory_space<vmem>>, vector<1x64xf32>
    %291 = arith.addf %289, %290 : vector<1x64xf32>
    %c74 = arith.constant 74 : index
    %c74_221 = arith.constant 74 : index
    %292 = vector.load %arg9[%c74, %c74_221] : memref<300x363xf32, #tpu.memory_space<vmem>>, vector<1x64xf32>
    %293 = arith.addf %291, %292 : vector<1x64xf32>
    %c75 = arith.constant 75 : index
    %c75_222 = arith.constant 75 : index
    %294 = vector.load %arg9[%c75, %c75_222] : memref<300x363xf32, #tpu.memory_space<vmem>>, vector<1x64xf32>
    %295 = arith.addf %293, %294 : vector<1x64xf32>
    %c76 = arith.constant 76 : index
    %c76_223 = arith.constant 76 : index
    %296 = vector.load %arg9[%c76, %c76_223] : memref<300x363xf32, #tpu.memory_space<vmem>>, vector<1x64xf32>
    %297 = arith.addf %295, %296 : vector<1x64xf32>
    %c77 = arith.constant 77 : index
    %c77_224 = arith.constant 77 : index
    %298 = vector.load %arg9[%c77, %c77_224] : memref<300x363xf32, #tpu.memory_space<vmem>>, vector<1x64xf32>
    %299 = arith.addf %297, %298 : vector<1x64xf32>
    %c78 = arith.constant 78 : index
    %c78_225 = arith.constant 78 : index
    %300 = vector.load %arg9[%c78, %c78_225] : memref<300x363xf32, #tpu.memory_space<vmem>>, vector<1x64xf32>
    %301 = arith.addf %299, %300 : vector<1x64xf32>
    %c79 = arith.constant 79 : index
    %c79_226 = arith.constant 79 : index
    %302 = vector.load %arg9[%c79, %c79_226] : memref<300x363xf32, #tpu.memory_space<vmem>>, vector<1x64xf32>
    %303 = arith.addf %301, %302 : vector<1x64xf32>
    %c80 = arith.constant 80 : index
    %c80_227 = arith.constant 80 : index
    %304 = vector.load %arg9[%c80, %c80_227] : memref<300x363xf32, #tpu.memory_space<vmem>>, vector<1x64xf32>
    %305 = arith.addf %303, %304 : vector<1x64xf32>
    %c81 = arith.constant 81 : index
    %c81_228 = arith.constant 81 : index
    %306 = vector.load %arg9[%c81, %c81_228] : memref<300x363xf32, #tpu.memory_space<vmem>>, vector<1x64xf32>
    %307 = arith.addf %305, %306 : vector<1x64xf32>
    %c82 = arith.constant 82 : index
    %c82_229 = arith.constant 82 : index
    %308 = vector.load %arg9[%c82, %c82_229] : memref<300x363xf32, #tpu.memory_space<vmem>>, vector<1x64xf32>
    %309 = arith.addf %307, %308 : vector<1x64xf32>
    %c83 = arith.constant 83 : index
    %c83_230 = arith.constant 83 : index
    %310 = vector.load %arg9[%c83, %c83_230] : memref<300x363xf32, #tpu.memory_space<vmem>>, vector<1x64xf32>
    %311 = arith.addf %309, %310 : vector<1x64xf32>
    %c84 = arith.constant 84 : index
    %c84_231 = arith.constant 84 : index
    %312 = vector.load %arg9[%c84, %c84_231] : memref<300x363xf32, #tpu.memory_space<vmem>>, vector<1x64xf32>
    %313 = arith.addf %311, %312 : vector<1x64xf32>
    %c85 = arith.constant 85 : index
    %c85_232 = arith.constant 85 : index
    %314 = vector.load %arg9[%c85, %c85_232] : memref<300x363xf32, #tpu.memory_space<vmem>>, vector<1x64xf32>
    %315 = arith.addf %313, %314 : vector<1x64xf32>
    %c86 = arith.constant 86 : index
    %c86_233 = arith.constant 86 : index
    %316 = vector.load %arg9[%c86, %c86_233] : memref<300x363xf32, #tpu.memory_space<vmem>>, vector<1x64xf32>
    %317 = arith.addf %315, %316 : vector<1x64xf32>
    %c87 = arith.constant 87 : index
    %c87_234 = arith.constant 87 : index
    %318 = vector.load %arg9[%c87, %c87_234] : memref<300x363xf32, #tpu.memory_space<vmem>>, vector<1x64xf32>
    %319 = arith.addf %317, %318 : vector<1x64xf32>
    %c88 = arith.constant 88 : index
    %c88_235 = arith.constant 88 : index
    %320 = vector.load %arg9[%c88, %c88_235] : memref<300x363xf32, #tpu.memory_space<vmem>>, vector<1x64xf32>
    %321 = arith.addf %319, %320 : vector<1x64xf32>
    %c89 = arith.constant 89 : index
    %c89_236 = arith.constant 89 : index
    %322 = vector.load %arg9[%c89, %c89_236] : memref<300x363xf32, #tpu.memory_space<vmem>>, vector<1x64xf32>
    %323 = arith.addf %321, %322 : vector<1x64xf32>
    %c90 = arith.constant 90 : index
    %c90_237 = arith.constant 90 : index
    %324 = vector.load %arg9[%c90, %c90_237] : memref<300x363xf32, #tpu.memory_space<vmem>>, vector<1x64xf32>
    %325 = arith.addf %323, %324 : vector<1x64xf32>
    %c91 = arith.constant 91 : index
    %c91_238 = arith.constant 91 : index
    %326 = vector.load %arg9[%c91, %c91_238] : memref<300x363xf32, #tpu.memory_space<vmem>>, vector<1x64xf32>
    %327 = arith.addf %325, %326 : vector<1x64xf32>
    %c92 = arith.constant 92 : index
    %c92_239 = arith.constant 92 : index
    %328 = vector.load %arg9[%c92, %c92_239] : memref<300x363xf32, #tpu.memory_space<vmem>>, vector<1x64xf32>
    %329 = arith.addf %327, %328 : vector<1x64xf32>
    %c93 = arith.constant 93 : index
    %c93_240 = arith.constant 93 : index
    %330 = vector.load %arg9[%c93, %c93_240] : memref<300x363xf32, #tpu.memory_space<vmem>>, vector<1x64xf32>
    %331 = arith.addf %329, %330 : vector<1x64xf32>
    %c94 = arith.constant 94 : index
    %c94_241 = arith.constant 94 : index
    %332 = vector.load %arg9[%c94, %c94_241] : memref<300x363xf32, #tpu.memory_space<vmem>>, vector<1x64xf32>
    %333 = arith.addf %331, %332 : vector<1x64xf32>
    %c95 = arith.constant 95 : index
    %c95_242 = arith.constant 95 : index
    %334 = vector.load %arg9[%c95, %c95_242] : memref<300x363xf32, #tpu.memory_space<vmem>>, vector<1x64xf32>
    %335 = arith.addf %333, %334 : vector<1x64xf32>
    %c96 = arith.constant 96 : index
    %c96_243 = arith.constant 96 : index
    %336 = vector.load %arg9[%c96, %c96_243] : memref<300x363xf32, #tpu.memory_space<vmem>>, vector<1x64xf32>
    %337 = arith.addf %335, %336 : vector<1x64xf32>
    %c97 = arith.constant 97 : index
    %c97_244 = arith.constant 97 : index
    %338 = vector.load %arg9[%c97, %c97_244] : memref<300x363xf32, #tpu.memory_space<vmem>>, vector<1x64xf32>
    %339 = arith.addf %337, %338 : vector<1x64xf32>
    %c98 = arith.constant 98 : index
    %c98_245 = arith.constant 98 : index
    %340 = vector.load %arg9[%c98, %c98_245] : memref<300x363xf32, #tpu.memory_space<vmem>>, vector<1x64xf32>
    %341 = arith.addf %339, %340 : vector<1x64xf32>
    %c99 = arith.constant 99 : index
    %c99_246 = arith.constant 99 : index
    %342 = vector.load %arg9[%c99, %c99_246] : memref<300x363xf32, #tpu.memory_space<vmem>>, vector<1x64xf32>
    %343 = arith.addf %341, %342 : vector<1x64xf32>
    %c100 = arith.constant 100 : index
    %c100_247 = arith.constant 100 : index
    %344 = vector.load %arg9[%c100, %c100_247] : memref<300x363xf32, #tpu.memory_space<vmem>>, vector<1x64xf32>
    %345 = arith.addf %343, %344 : vector<1x64xf32>
    %c101 = arith.constant 101 : index
    %c101_248 = arith.constant 101 : index
    %346 = vector.load %arg9[%c101, %c101_248] : memref<300x363xf32, #tpu.memory_space<vmem>>, vector<1x64xf32>
    %347 = arith.addf %345, %346 : vector<1x64xf32>
    %c102 = arith.constant 102 : index
    %c102_249 = arith.constant 102 : index
    %348 = vector.load %arg9[%c102, %c102_249] : memref<300x363xf32, #tpu.memory_space<vmem>>, vector<1x64xf32>
    %349 = arith.addf %347, %348 : vector<1x64xf32>
    %c103 = arith.constant 103 : index
    %c103_250 = arith.constant 103 : index
    %350 = vector.load %arg9[%c103, %c103_250] : memref<300x363xf32, #tpu.memory_space<vmem>>, vector<1x64xf32>
    %351 = arith.addf %349, %350 : vector<1x64xf32>
    %c104 = arith.constant 104 : index
    %c104_251 = arith.constant 104 : index
    %352 = vector.load %arg9[%c104, %c104_251] : memref<300x363xf32, #tpu.memory_space<vmem>>, vector<1x64xf32>
    %353 = arith.addf %351, %352 : vector<1x64xf32>
    %c105 = arith.constant 105 : index
    %c105_252 = arith.constant 105 : index
    %354 = vector.load %arg9[%c105, %c105_252] : memref<300x363xf32, #tpu.memory_space<vmem>>, vector<1x64xf32>
    %355 = arith.addf %353, %354 : vector<1x64xf32>
    %c106 = arith.constant 106 : index
    %c106_253 = arith.constant 106 : index
    %356 = vector.load %arg9[%c106, %c106_253] : memref<300x363xf32, #tpu.memory_space<vmem>>, vector<1x64xf32>
    %357 = arith.addf %355, %356 : vector<1x64xf32>
    %c107 = arith.constant 107 : index
    %c107_254 = arith.constant 107 : index
    %358 = vector.load %arg9[%c107, %c107_254] : memref<300x363xf32, #tpu.memory_space<vmem>>, vector<1x64xf32>
    %359 = arith.addf %357, %358 : vector<1x64xf32>
    %c108 = arith.constant 108 : index
    %c108_255 = arith.constant 108 : index
    %360 = vector.load %arg9[%c108, %c108_255] : memref<300x363xf32, #tpu.memory_space<vmem>>, vector<1x64xf32>
    %361 = arith.addf %359, %360 : vector<1x64xf32>
    %c109 = arith.constant 109 : index
    %c109_256 = arith.constant 109 : index
    %362 = vector.load %arg9[%c109, %c109_256] : memref<300x363xf32, #tpu.memory_space<vmem>>, vector<1x64xf32>
    %363 = arith.addf %361, %362 : vector<1x64xf32>
    %c110 = arith.constant 110 : index
    %c110_257 = arith.constant 110 : index
    %364 = vector.load %arg9[%c110, %c110_257] : memref<300x363xf32, #tpu.memory_space<vmem>>, vector<1x64xf32>
    %365 = arith.addf %363, %364 : vector<1x64xf32>
    %c111 = arith.constant 111 : index
    %c111_258 = arith.constant 111 : index
    %366 = vector.load %arg9[%c111, %c111_258] : memref<300x363xf32, #tpu.memory_space<vmem>>, vector<1x64xf32>
    %367 = arith.addf %365, %366 : vector<1x64xf32>
    %c112 = arith.constant 112 : index
    %c112_259 = arith.constant 112 : index
    %368 = vector.load %arg9[%c112, %c112_259] : memref<300x363xf32, #tpu.memory_space<vmem>>, vector<1x64xf32>
    %369 = arith.addf %367, %368 : vector<1x64xf32>
    %c113 = arith.constant 113 : index
    %c113_260 = arith.constant 113 : index
    %370 = vector.load %arg9[%c113, %c113_260] : memref<300x363xf32, #tpu.memory_space<vmem>>, vector<1x64xf32>
    %371 = arith.addf %369, %370 : vector<1x64xf32>
    %c114 = arith.constant 114 : index
    %c114_261 = arith.constant 114 : index
    %372 = vector.load %arg9[%c114, %c114_261] : memref<300x363xf32, #tpu.memory_space<vmem>>, vector<1x64xf32>
    %373 = arith.addf %371, %372 : vector<1x64xf32>
    %c115 = arith.constant 115 : index
    %c115_262 = arith.constant 115 : index
    %374 = vector.load %arg9[%c115, %c115_262] : memref<300x363xf32, #tpu.memory_space<vmem>>, vector<1x64xf32>
    %375 = arith.addf %373, %374 : vector<1x64xf32>
    %c116 = arith.constant 116 : index
    %c116_263 = arith.constant 116 : index
    %376 = vector.load %arg9[%c116, %c116_263] : memref<300x363xf32, #tpu.memory_space<vmem>>, vector<1x64xf32>
    %377 = arith.addf %375, %376 : vector<1x64xf32>
    %c117 = arith.constant 117 : index
    %c117_264 = arith.constant 117 : index
    %378 = vector.load %arg9[%c117, %c117_264] : memref<300x363xf32, #tpu.memory_space<vmem>>, vector<1x64xf32>
    %379 = arith.addf %377, %378 : vector<1x64xf32>
    %c118 = arith.constant 118 : index
    %c118_265 = arith.constant 118 : index
    %380 = vector.load %arg9[%c118, %c118_265] : memref<300x363xf32, #tpu.memory_space<vmem>>, vector<1x64xf32>
    %381 = arith.addf %379, %380 : vector<1x64xf32>
    %c119 = arith.constant 119 : index
    %c119_266 = arith.constant 119 : index
    %382 = vector.load %arg9[%c119, %c119_266] : memref<300x363xf32, #tpu.memory_space<vmem>>, vector<1x64xf32>
    %383 = arith.addf %381, %382 : vector<1x64xf32>
    %c120 = arith.constant 120 : index
    %c120_267 = arith.constant 120 : index
    %384 = vector.load %arg9[%c120, %c120_267] : memref<300x363xf32, #tpu.memory_space<vmem>>, vector<1x64xf32>
    %385 = arith.addf %383, %384 : vector<1x64xf32>
    %c121 = arith.constant 121 : index
    %c121_268 = arith.constant 121 : index
    %386 = vector.load %arg9[%c121, %c121_268] : memref<300x363xf32, #tpu.memory_space<vmem>>, vector<1x64xf32>
    %387 = arith.addf %385, %386 : vector<1x64xf32>
    %c122 = arith.constant 122 : index
    %c122_269 = arith.constant 122 : index
    %388 = vector.load %arg9[%c122, %c122_269] : memref<300x363xf32, #tpu.memory_space<vmem>>, vector<1x64xf32>
    %389 = arith.addf %387, %388 : vector<1x64xf32>
    %c123 = arith.constant 123 : index
    %c123_270 = arith.constant 123 : index
    %390 = vector.load %arg9[%c123, %c123_270] : memref<300x363xf32, #tpu.memory_space<vmem>>, vector<1x64xf32>
    %391 = arith.addf %389, %390 : vector<1x64xf32>
    %c124 = arith.constant 124 : index
    %c124_271 = arith.constant 124 : index
    %392 = vector.load %arg9[%c124, %c124_271] : memref<300x363xf32, #tpu.memory_space<vmem>>, vector<1x64xf32>
    %393 = arith.addf %391, %392 : vector<1x64xf32>
    %c125 = arith.constant 125 : index
    %c125_272 = arith.constant 125 : index
    %394 = vector.load %arg9[%c125, %c125_272] : memref<300x363xf32, #tpu.memory_space<vmem>>, vector<1x64xf32>
    %395 = arith.addf %393, %394 : vector<1x64xf32>
    %c126 = arith.constant 126 : index
    %c126_273 = arith.constant 126 : index
    %396 = vector.load %arg9[%c126, %c126_273] : memref<300x363xf32, #tpu.memory_space<vmem>>, vector<1x64xf32>
    %397 = arith.addf %395, %396 : vector<1x64xf32>
    %c127 = arith.constant 127 : index
    %c127_274 = arith.constant 127 : index
    %398 = vector.load %arg9[%c127, %c127_274] : memref<300x363xf32, #tpu.memory_space<vmem>>, vector<1x64xf32>
    %399 = arith.addf %397, %398 : vector<1x64xf32>
    %c128 = arith.constant 128 : index
    %c128_275 = arith.constant 128 : index
    %400 = vector.load %arg9[%c128, %c128_275] : memref<300x363xf32, #tpu.memory_space<vmem>>, vector<1x64xf32>
    %401 = arith.addf %399, %400 : vector<1x64xf32>
    %c129 = arith.constant 129 : index
    %c129_276 = arith.constant 129 : index
    %402 = vector.load %arg9[%c129, %c129_276] : memref<300x363xf32, #tpu.memory_space<vmem>>, vector<1x64xf32>
    %403 = arith.addf %401, %402 : vector<1x64xf32>
    %c130 = arith.constant 130 : index
    %c130_277 = arith.constant 130 : index
    %404 = vector.load %arg9[%c130, %c130_277] : memref<300x363xf32, #tpu.memory_space<vmem>>, vector<1x64xf32>
    %405 = arith.addf %403, %404 : vector<1x64xf32>
    %c131 = arith.constant 131 : index
    %c131_278 = arith.constant 131 : index
    %406 = vector.load %arg9[%c131, %c131_278] : memref<300x363xf32, #tpu.memory_space<vmem>>, vector<1x64xf32>
    %407 = arith.addf %405, %406 : vector<1x64xf32>
    %c132 = arith.constant 132 : index
    %c132_279 = arith.constant 132 : index
    %408 = vector.load %arg9[%c132, %c132_279] : memref<300x363xf32, #tpu.memory_space<vmem>>, vector<1x64xf32>
    %409 = arith.addf %407, %408 : vector<1x64xf32>
    %c133 = arith.constant 133 : index
    %c133_280 = arith.constant 133 : index
    %410 = vector.load %arg9[%c133, %c133_280] : memref<300x363xf32, #tpu.memory_space<vmem>>, vector<1x64xf32>
    %411 = arith.addf %409, %410 : vector<1x64xf32>
    %c134 = arith.constant 134 : index
    %c134_281 = arith.constant 134 : index
    %412 = vector.load %arg9[%c134, %c134_281] : memref<300x363xf32, #tpu.memory_space<vmem>>, vector<1x64xf32>
    %413 = arith.addf %411, %412 : vector<1x64xf32>
    %c135 = arith.constant 135 : index
    %c135_282 = arith.constant 135 : index
    %414 = vector.load %arg9[%c135, %c135_282] : memref<300x363xf32, #tpu.memory_space<vmem>>, vector<1x64xf32>
    %415 = arith.addf %413, %414 : vector<1x64xf32>
    %c136 = arith.constant 136 : index
    %c136_283 = arith.constant 136 : index
    %416 = vector.load %arg9[%c136, %c136_283] : memref<300x363xf32, #tpu.memory_space<vmem>>, vector<1x64xf32>
    %417 = arith.addf %415, %416 : vector<1x64xf32>
    %c137 = arith.constant 137 : index
    %c137_284 = arith.constant 137 : index
    %418 = vector.load %arg9[%c137, %c137_284] : memref<300x363xf32, #tpu.memory_space<vmem>>, vector<1x64xf32>
    %419 = arith.addf %417, %418 : vector<1x64xf32>
    %c138 = arith.constant 138 : index
    %c138_285 = arith.constant 138 : index
    %420 = vector.load %arg9[%c138, %c138_285] : memref<300x363xf32, #tpu.memory_space<vmem>>, vector<1x64xf32>
    %421 = arith.addf %419, %420 : vector<1x64xf32>
    %c139 = arith.constant 139 : index
    %c139_286 = arith.constant 139 : index
    %422 = vector.load %arg9[%c139, %c139_286] : memref<300x363xf32, #tpu.memory_space<vmem>>, vector<1x64xf32>
    %423 = arith.addf %421, %422 : vector<1x64xf32>
    %c140 = arith.constant 140 : index
    %c140_287 = arith.constant 140 : index
    %424 = vector.load %arg9[%c140, %c140_287] : memref<300x363xf32, #tpu.memory_space<vmem>>, vector<1x64xf32>
    %425 = arith.addf %423, %424 : vector<1x64xf32>
    %c141 = arith.constant 141 : index
    %c141_288 = arith.constant 141 : index
    %426 = vector.load %arg9[%c141, %c141_288] : memref<300x363xf32, #tpu.memory_space<vmem>>, vector<1x64xf32>
    %427 = arith.addf %425, %426 : vector<1x64xf32>
    %c142 = arith.constant 142 : index
    %c142_289 = arith.constant 142 : index
    %428 = vector.load %arg9[%c142, %c142_289] : memref<300x363xf32, #tpu.memory_space<vmem>>, vector<1x64xf32>
    %429 = arith.addf %427, %428 : vector<1x64xf32>
    %c143 = arith.constant 143 : index
    %c143_290 = arith.constant 143 : index
    %430 = vector.load %arg9[%c143, %c143_290] : memref<300x363xf32, #tpu.memory_space<vmem>>, vector<1x64xf32>
    %431 = arith.addf %429, %430 : vector<1x64xf32>
    %c144 = arith.constant 144 : index
    %c144_291 = arith.constant 144 : index
    %432 = vector.load %arg9[%c144, %c144_291] : memref<300x363xf32, #tpu.memory_space<vmem>>, vector<1x64xf32>
    %433 = arith.addf %431, %432 : vector<1x64xf32>
    %c145 = arith.constant 145 : index
    %c145_292 = arith.constant 145 : index
    %434 = vector.load %arg9[%c145, %c145_292] : memref<300x363xf32, #tpu.memory_space<vmem>>, vector<1x64xf32>
    %435 = arith.addf %433, %434 : vector<1x64xf32>
    %c146 = arith.constant 146 : index
    %c146_293 = arith.constant 146 : index
    %436 = vector.load %arg9[%c146, %c146_293] : memref<300x363xf32, #tpu.memory_space<vmem>>, vector<1x64xf32>
    %437 = arith.addf %435, %436 : vector<1x64xf32>
    %c147 = arith.constant 147 : index
    %c147_294 = arith.constant 147 : index
    %438 = vector.load %arg9[%c147, %c147_294] : memref<300x363xf32, #tpu.memory_space<vmem>>, vector<1x64xf32>
    %439 = arith.addf %437, %438 : vector<1x64xf32>
    %c148 = arith.constant 148 : index
    %c148_295 = arith.constant 148 : index
    %440 = vector.load %arg9[%c148, %c148_295] : memref<300x363xf32, #tpu.memory_space<vmem>>, vector<1x64xf32>
    %441 = arith.addf %439, %440 : vector<1x64xf32>
    %c149 = arith.constant 149 : index
    %c149_296 = arith.constant 149 : index
    %442 = vector.load %arg9[%c149, %c149_296] : memref<300x363xf32, #tpu.memory_space<vmem>>, vector<1x64xf32>
    %443 = arith.addf %441, %442 : vector<1x64xf32>
    %c150_297 = arith.constant 150 : index
    %c150_298 = arith.constant 150 : index
    %444 = vector.load %arg9[%c150_297, %c150_298] : memref<300x363xf32, #tpu.memory_space<vmem>>, vector<1x64xf32>
    %445 = arith.addf %443, %444 : vector<1x64xf32>
    %c151 = arith.constant 151 : index
    %c151_299 = arith.constant 151 : index
    %446 = vector.load %arg9[%c151, %c151_299] : memref<300x363xf32, #tpu.memory_space<vmem>>, vector<1x64xf32>
    %447 = arith.addf %445, %446 : vector<1x64xf32>
    %c152 = arith.constant 152 : index
    %c152_300 = arith.constant 152 : index
    %448 = vector.load %arg9[%c152, %c152_300] : memref<300x363xf32, #tpu.memory_space<vmem>>, vector<1x64xf32>
    %449 = arith.addf %447, %448 : vector<1x64xf32>
    %c153 = arith.constant 153 : index
    %c153_301 = arith.constant 153 : index
    %450 = vector.load %arg9[%c153, %c153_301] : memref<300x363xf32, #tpu.memory_space<vmem>>, vector<1x64xf32>
    %451 = arith.addf %449, %450 : vector<1x64xf32>
    %c154 = arith.constant 154 : index
    %c154_302 = arith.constant 154 : index
    %452 = vector.load %arg9[%c154, %c154_302] : memref<300x363xf32, #tpu.memory_space<vmem>>, vector<1x64xf32>
    %453 = arith.addf %451, %452 : vector<1x64xf32>
    %c155 = arith.constant 155 : index
    %c155_303 = arith.constant 155 : index
    %454 = vector.load %arg9[%c155, %c155_303] : memref<300x363xf32, #tpu.memory_space<vmem>>, vector<1x64xf32>
    %455 = arith.addf %453, %454 : vector<1x64xf32>
    %c156 = arith.constant 156 : index
    %c156_304 = arith.constant 156 : index
    %456 = vector.load %arg9[%c156, %c156_304] : memref<300x363xf32, #tpu.memory_space<vmem>>, vector<1x64xf32>
    %457 = arith.addf %455, %456 : vector<1x64xf32>
    %c157 = arith.constant 157 : index
    %c157_305 = arith.constant 157 : index
    %458 = vector.load %arg9[%c157, %c157_305] : memref<300x363xf32, #tpu.memory_space<vmem>>, vector<1x64xf32>
    %459 = arith.addf %457, %458 : vector<1x64xf32>
    %c158 = arith.constant 158 : index
    %c158_306 = arith.constant 158 : index
    %460 = vector.load %arg9[%c158, %c158_306] : memref<300x363xf32, #tpu.memory_space<vmem>>, vector<1x64xf32>
    %461 = arith.addf %459, %460 : vector<1x64xf32>
    %c159 = arith.constant 159 : index
    %c159_307 = arith.constant 159 : index
    %462 = vector.load %arg9[%c159, %c159_307] : memref<300x363xf32, #tpu.memory_space<vmem>>, vector<1x64xf32>
    %463 = arith.addf %461, %462 : vector<1x64xf32>
    %c160 = arith.constant 160 : index
    %c160_308 = arith.constant 160 : index
    %464 = vector.load %arg9[%c160, %c160_308] : memref<300x363xf32, #tpu.memory_space<vmem>>, vector<1x64xf32>
    %465 = arith.addf %463, %464 : vector<1x64xf32>
    %c161 = arith.constant 161 : index
    %c161_309 = arith.constant 161 : index
    %466 = vector.load %arg9[%c161, %c161_309] : memref<300x363xf32, #tpu.memory_space<vmem>>, vector<1x64xf32>
    %467 = arith.addf %465, %466 : vector<1x64xf32>
    %c162 = arith.constant 162 : index
    %c162_310 = arith.constant 162 : index
    %468 = vector.load %arg9[%c162, %c162_310] : memref<300x363xf32, #tpu.memory_space<vmem>>, vector<1x64xf32>
    %469 = arith.addf %467, %468 : vector<1x64xf32>
    %c163 = arith.constant 163 : index
    %c163_311 = arith.constant 163 : index
    %470 = vector.load %arg9[%c163, %c163_311] : memref<300x363xf32, #tpu.memory_space<vmem>>, vector<1x64xf32>
    %471 = arith.addf %469, %470 : vector<1x64xf32>
    %c164 = arith.constant 164 : index
    %c164_312 = arith.constant 164 : index
    %472 = vector.load %arg9[%c164, %c164_312] : memref<300x363xf32, #tpu.memory_space<vmem>>, vector<1x64xf32>
    %473 = arith.addf %471, %472 : vector<1x64xf32>
    %c165 = arith.constant 165 : index
    %c165_313 = arith.constant 165 : index
    %474 = vector.load %arg9[%c165, %c165_313] : memref<300x363xf32, #tpu.memory_space<vmem>>, vector<1x64xf32>
    %475 = arith.addf %473, %474 : vector<1x64xf32>
    %c166 = arith.constant 166 : index
    %c166_314 = arith.constant 166 : index
    %476 = vector.load %arg9[%c166, %c166_314] : memref<300x363xf32, #tpu.memory_space<vmem>>, vector<1x64xf32>
    %477 = arith.addf %475, %476 : vector<1x64xf32>
    %c167 = arith.constant 167 : index
    %c167_315 = arith.constant 167 : index
    %478 = vector.load %arg9[%c167, %c167_315] : memref<300x363xf32, #tpu.memory_space<vmem>>, vector<1x64xf32>
    %479 = arith.addf %477, %478 : vector<1x64xf32>
    %c168 = arith.constant 168 : index
    %c168_316 = arith.constant 168 : index
    %480 = vector.load %arg9[%c168, %c168_316] : memref<300x363xf32, #tpu.memory_space<vmem>>, vector<1x64xf32>
    %481 = arith.addf %479, %480 : vector<1x64xf32>
    %c169 = arith.constant 169 : index
    %c169_317 = arith.constant 169 : index
    %482 = vector.load %arg9[%c169, %c169_317] : memref<300x363xf32, #tpu.memory_space<vmem>>, vector<1x64xf32>
    %483 = arith.addf %481, %482 : vector<1x64xf32>
    %c170 = arith.constant 170 : index
    %c170_318 = arith.constant 170 : index
    %484 = vector.load %arg9[%c170, %c170_318] : memref<300x363xf32, #tpu.memory_space<vmem>>, vector<1x64xf32>
    %485 = arith.addf %483, %484 : vector<1x64xf32>
    %c171 = arith.constant 171 : index
    %c171_319 = arith.constant 171 : index
    %486 = vector.load %arg9[%c171, %c171_319] : memref<300x363xf32, #tpu.memory_space<vmem>>, vector<1x64xf32>
    %487 = arith.addf %485, %486 : vector<1x64xf32>
    %c172 = arith.constant 172 : index
    %c172_320 = arith.constant 172 : index
    %488 = vector.load %arg9[%c172, %c172_320] : memref<300x363xf32, #tpu.memory_space<vmem>>, vector<1x64xf32>
    %489 = arith.addf %487, %488 : vector<1x64xf32>
    %c173 = arith.constant 173 : index
    %c173_321 = arith.constant 173 : index
    %490 = vector.load %arg9[%c173, %c173_321] : memref<300x363xf32, #tpu.memory_space<vmem>>, vector<1x64xf32>
    %491 = arith.addf %489, %490 : vector<1x64xf32>
    %c174 = arith.constant 174 : index
    %c174_322 = arith.constant 174 : index
    %492 = vector.load %arg9[%c174, %c174_322] : memref<300x363xf32, #tpu.memory_space<vmem>>, vector<1x64xf32>
    %493 = arith.addf %491, %492 : vector<1x64xf32>
    %c175 = arith.constant 175 : index
    %c175_323 = arith.constant 175 : index
    %494 = vector.load %arg9[%c175, %c175_323] : memref<300x363xf32, #tpu.memory_space<vmem>>, vector<1x64xf32>
    %495 = arith.addf %493, %494 : vector<1x64xf32>
    %c176 = arith.constant 176 : index
    %c176_324 = arith.constant 176 : index
    %496 = vector.load %arg9[%c176, %c176_324] : memref<300x363xf32, #tpu.memory_space<vmem>>, vector<1x64xf32>
    %497 = arith.addf %495, %496 : vector<1x64xf32>
    %c177 = arith.constant 177 : index
    %c177_325 = arith.constant 177 : index
    %498 = vector.load %arg9[%c177, %c177_325] : memref<300x363xf32, #tpu.memory_space<vmem>>, vector<1x64xf32>
    %499 = arith.addf %497, %498 : vector<1x64xf32>
    %c178 = arith.constant 178 : index
    %c178_326 = arith.constant 178 : index
    %500 = vector.load %arg9[%c178, %c178_326] : memref<300x363xf32, #tpu.memory_space<vmem>>, vector<1x64xf32>
    %501 = arith.addf %499, %500 : vector<1x64xf32>
    %c179 = arith.constant 179 : index
    %c179_327 = arith.constant 179 : index
    %502 = vector.load %arg9[%c179, %c179_327] : memref<300x363xf32, #tpu.memory_space<vmem>>, vector<1x64xf32>
    %503 = arith.addf %501, %502 : vector<1x64xf32>
    %c180 = arith.constant 180 : index
    %c180_328 = arith.constant 180 : index
    %504 = vector.load %arg9[%c180, %c180_328] : memref<300x363xf32, #tpu.memory_space<vmem>>, vector<1x64xf32>
    %505 = arith.addf %503, %504 : vector<1x64xf32>
    %c181 = arith.constant 181 : index
    %c181_329 = arith.constant 181 : index
    %506 = vector.load %arg9[%c181, %c181_329] : memref<300x363xf32, #tpu.memory_space<vmem>>, vector<1x64xf32>
    %507 = arith.addf %505, %506 : vector<1x64xf32>
    %c182 = arith.constant 182 : index
    %c182_330 = arith.constant 182 : index
    %508 = vector.load %arg9[%c182, %c182_330] : memref<300x363xf32, #tpu.memory_space<vmem>>, vector<1x64xf32>
    %509 = arith.addf %507, %508 : vector<1x64xf32>
    %c183 = arith.constant 183 : index
    %c183_331 = arith.constant 183 : index
    %510 = vector.load %arg9[%c183, %c183_331] : memref<300x363xf32, #tpu.memory_space<vmem>>, vector<1x64xf32>
    %511 = arith.addf %509, %510 : vector<1x64xf32>
    %c184 = arith.constant 184 : index
    %c184_332 = arith.constant 184 : index
    %512 = vector.load %arg9[%c184, %c184_332] : memref<300x363xf32, #tpu.memory_space<vmem>>, vector<1x64xf32>
    %513 = arith.addf %511, %512 : vector<1x64xf32>
    %c185 = arith.constant 185 : index
    %c185_333 = arith.constant 185 : index
    %514 = vector.load %arg9[%c185, %c185_333] : memref<300x363xf32, #tpu.memory_space<vmem>>, vector<1x64xf32>
    %515 = arith.addf %513, %514 : vector<1x64xf32>
    %c186 = arith.constant 186 : index
    %c186_334 = arith.constant 186 : index
    %516 = vector.load %arg9[%c186, %c186_334] : memref<300x363xf32, #tpu.memory_space<vmem>>, vector<1x64xf32>
    %517 = arith.addf %515, %516 : vector<1x64xf32>
    %c187 = arith.constant 187 : index
    %c187_335 = arith.constant 187 : index
    %518 = vector.load %arg9[%c187, %c187_335] : memref<300x363xf32, #tpu.memory_space<vmem>>, vector<1x64xf32>
    %519 = arith.addf %517, %518 : vector<1x64xf32>
    %c188 = arith.constant 188 : index
    %c188_336 = arith.constant 188 : index
    %520 = vector.load %arg9[%c188, %c188_336] : memref<300x363xf32, #tpu.memory_space<vmem>>, vector<1x64xf32>
    %521 = arith.addf %519, %520 : vector<1x64xf32>
    %c189 = arith.constant 189 : index
    %c189_337 = arith.constant 189 : index
    %522 = vector.load %arg9[%c189, %c189_337] : memref<300x363xf32, #tpu.memory_space<vmem>>, vector<1x64xf32>
    %523 = arith.addf %521, %522 : vector<1x64xf32>
    %c190 = arith.constant 190 : index
    %c190_338 = arith.constant 190 : index
    %524 = vector.load %arg9[%c190, %c190_338] : memref<300x363xf32, #tpu.memory_space<vmem>>, vector<1x64xf32>
    %525 = arith.addf %523, %524 : vector<1x64xf32>
    %c191 = arith.constant 191 : index
    %c191_339 = arith.constant 191 : index
    %526 = vector.load %arg9[%c191, %c191_339] : memref<300x363xf32, #tpu.memory_space<vmem>>, vector<1x64xf32>
    %527 = arith.addf %525, %526 : vector<1x64xf32>
    %c192 = arith.constant 192 : index
    %c192_340 = arith.constant 192 : index
    %528 = vector.load %arg9[%c192, %c192_340] : memref<300x363xf32, #tpu.memory_space<vmem>>, vector<1x64xf32>
    %529 = arith.addf %527, %528 : vector<1x64xf32>
    %c193 = arith.constant 193 : index
    %c193_341 = arith.constant 193 : index
    %530 = vector.load %arg9[%c193, %c193_341] : memref<300x363xf32, #tpu.memory_space<vmem>>, vector<1x64xf32>
    %531 = arith.addf %529, %530 : vector<1x64xf32>
    %c194 = arith.constant 194 : index
    %c194_342 = arith.constant 194 : index
    %532 = vector.load %arg9[%c194, %c194_342] : memref<300x363xf32, #tpu.memory_space<vmem>>, vector<1x64xf32>
    %533 = arith.addf %531, %532 : vector<1x64xf32>
    %c195 = arith.constant 195 : index
    %c195_343 = arith.constant 195 : index
    %534 = vector.load %arg9[%c195, %c195_343] : memref<300x363xf32, #tpu.memory_space<vmem>>, vector<1x64xf32>
    %535 = arith.addf %533, %534 : vector<1x64xf32>
    %c196 = arith.constant 196 : index
    %c196_344 = arith.constant 196 : index
    %536 = vector.load %arg9[%c196, %c196_344] : memref<300x363xf32, #tpu.memory_space<vmem>>, vector<1x64xf32>
    %537 = arith.addf %535, %536 : vector<1x64xf32>
    %c197 = arith.constant 197 : index
    %c197_345 = arith.constant 197 : index
    %538 = vector.load %arg9[%c197, %c197_345] : memref<300x363xf32, #tpu.memory_space<vmem>>, vector<1x64xf32>
    %539 = arith.addf %537, %538 : vector<1x64xf32>
    %c198 = arith.constant 198 : index
    %c198_346 = arith.constant 198 : index
    %540 = vector.load %arg9[%c198, %c198_346] : memref<300x363xf32, #tpu.memory_space<vmem>>, vector<1x64xf32>
    %541 = arith.addf %539, %540 : vector<1x64xf32>
    %c199 = arith.constant 199 : index
    %c199_347 = arith.constant 199 : index
    %542 = vector.load %arg9[%c199, %c199_347] : memref<300x363xf32, #tpu.memory_space<vmem>>, vector<1x64xf32>
    %543 = arith.addf %541, %542 : vector<1x64xf32>
    %c200 = arith.constant 200 : index
    %c200_348 = arith.constant 200 : index
    %544 = vector.load %arg9[%c200, %c200_348] : memref<300x363xf32, #tpu.memory_space<vmem>>, vector<1x64xf32>
    %545 = arith.addf %543, %544 : vector<1x64xf32>
    %c201 = arith.constant 201 : index
    %c201_349 = arith.constant 201 : index
    %546 = vector.load %arg9[%c201, %c201_349] : memref<300x363xf32, #tpu.memory_space<vmem>>, vector<1x64xf32>
    %547 = arith.addf %545, %546 : vector<1x64xf32>
    %c202 = arith.constant 202 : index
    %c202_350 = arith.constant 202 : index
    %548 = vector.load %arg9[%c202, %c202_350] : memref<300x363xf32, #tpu.memory_space<vmem>>, vector<1x64xf32>
    %549 = arith.addf %547, %548 : vector<1x64xf32>
    %c203 = arith.constant 203 : index
    %c203_351 = arith.constant 203 : index
    %550 = vector.load %arg9[%c203, %c203_351] : memref<300x363xf32, #tpu.memory_space<vmem>>, vector<1x64xf32>
    %551 = arith.addf %549, %550 : vector<1x64xf32>
    %c204 = arith.constant 204 : index
    %c204_352 = arith.constant 204 : index
    %552 = vector.load %arg9[%c204, %c204_352] : memref<300x363xf32, #tpu.memory_space<vmem>>, vector<1x64xf32>
    %553 = arith.addf %551, %552 : vector<1x64xf32>
    %c205 = arith.constant 205 : index
    %c205_353 = arith.constant 205 : index
    %554 = vector.load %arg9[%c205, %c205_353] : memref<300x363xf32, #tpu.memory_space<vmem>>, vector<1x64xf32>
    %555 = arith.addf %553, %554 : vector<1x64xf32>
    %c206 = arith.constant 206 : index
    %c206_354 = arith.constant 206 : index
    %556 = vector.load %arg9[%c206, %c206_354] : memref<300x363xf32, #tpu.memory_space<vmem>>, vector<1x64xf32>
    %557 = arith.addf %555, %556 : vector<1x64xf32>
    %c207 = arith.constant 207 : index
    %c207_355 = arith.constant 207 : index
    %558 = vector.load %arg9[%c207, %c207_355] : memref<300x363xf32, #tpu.memory_space<vmem>>, vector<1x64xf32>
    %559 = arith.addf %557, %558 : vector<1x64xf32>
    %c208 = arith.constant 208 : index
    %c208_356 = arith.constant 208 : index
    %560 = vector.load %arg9[%c208, %c208_356] : memref<300x363xf32, #tpu.memory_space<vmem>>, vector<1x64xf32>
    %561 = arith.addf %559, %560 : vector<1x64xf32>
    %c209 = arith.constant 209 : index
    %c209_357 = arith.constant 209 : index
    %562 = vector.load %arg9[%c209, %c209_357] : memref<300x363xf32, #tpu.memory_space<vmem>>, vector<1x64xf32>
    %563 = arith.addf %561, %562 : vector<1x64xf32>
    %c210 = arith.constant 210 : index
    %c210_358 = arith.constant 210 : index
    %564 = vector.load %arg9[%c210, %c210_358] : memref<300x363xf32, #tpu.memory_space<vmem>>, vector<1x64xf32>
    %565 = arith.addf %563, %564 : vector<1x64xf32>
    %c211 = arith.constant 211 : index
    %c211_359 = arith.constant 211 : index
    %566 = vector.load %arg9[%c211, %c211_359] : memref<300x363xf32, #tpu.memory_space<vmem>>, vector<1x64xf32>
    %567 = arith.addf %565, %566 : vector<1x64xf32>
    %c212 = arith.constant 212 : index
    %c212_360 = arith.constant 212 : index
    %568 = vector.load %arg9[%c212, %c212_360] : memref<300x363xf32, #tpu.memory_space<vmem>>, vector<1x64xf32>
    %569 = arith.addf %567, %568 : vector<1x64xf32>
    %c213 = arith.constant 213 : index
    %c213_361 = arith.constant 213 : index
    %570 = vector.load %arg9[%c213, %c213_361] : memref<300x363xf32, #tpu.memory_space<vmem>>, vector<1x64xf32>
    %571 = arith.addf %569, %570 : vector<1x64xf32>
    %c214 = arith.constant 214 : index
    %c214_362 = arith.constant 214 : index
    %572 = vector.load %arg9[%c214, %c214_362] : memref<300x363xf32, #tpu.memory_space<vmem>>, vector<1x64xf32>
    %573 = arith.addf %571, %572 : vector<1x64xf32>
    %c215 = arith.constant 215 : index
    %c215_363 = arith.constant 215 : index
    %574 = vector.load %arg9[%c215, %c215_363] : memref<300x363xf32, #tpu.memory_space<vmem>>, vector<1x64xf32>
    %575 = arith.addf %573, %574 : vector<1x64xf32>
    %c216 = arith.constant 216 : index
    %c216_364 = arith.constant 216 : index
    %576 = vector.load %arg9[%c216, %c216_364] : memref<300x363xf32, #tpu.memory_space<vmem>>, vector<1x64xf32>
    %577 = arith.addf %575, %576 : vector<1x64xf32>
    %c217 = arith.constant 217 : index
    %c217_365 = arith.constant 217 : index
    %578 = vector.load %arg9[%c217, %c217_365] : memref<300x363xf32, #tpu.memory_space<vmem>>, vector<1x64xf32>
    %579 = arith.addf %577, %578 : vector<1x64xf32>
    %c218 = arith.constant 218 : index
    %c218_366 = arith.constant 218 : index
    %580 = vector.load %arg9[%c218, %c218_366] : memref<300x363xf32, #tpu.memory_space<vmem>>, vector<1x64xf32>
    %581 = arith.addf %579, %580 : vector<1x64xf32>
    %c219 = arith.constant 219 : index
    %c219_367 = arith.constant 219 : index
    %582 = vector.load %arg9[%c219, %c219_367] : memref<300x363xf32, #tpu.memory_space<vmem>>, vector<1x64xf32>
    %583 = arith.addf %581, %582 : vector<1x64xf32>
    %c220 = arith.constant 220 : index
    %c220_368 = arith.constant 220 : index
    %584 = vector.load %arg9[%c220, %c220_368] : memref<300x363xf32, #tpu.memory_space<vmem>>, vector<1x64xf32>
    %585 = arith.addf %583, %584 : vector<1x64xf32>
    %c221 = arith.constant 221 : index
    %c221_369 = arith.constant 221 : index
    %586 = vector.load %arg9[%c221, %c221_369] : memref<300x363xf32, #tpu.memory_space<vmem>>, vector<1x64xf32>
    %587 = arith.addf %585, %586 : vector<1x64xf32>
    %c222 = arith.constant 222 : index
    %c222_370 = arith.constant 222 : index
    %588 = vector.load %arg9[%c222, %c222_370] : memref<300x363xf32, #tpu.memory_space<vmem>>, vector<1x64xf32>
    %589 = arith.addf %587, %588 : vector<1x64xf32>
    %c223 = arith.constant 223 : index
    %c223_371 = arith.constant 223 : index
    %590 = vector.load %arg9[%c223, %c223_371] : memref<300x363xf32, #tpu.memory_space<vmem>>, vector<1x64xf32>
    %591 = arith.addf %589, %590 : vector<1x64xf32>
    %c224 = arith.constant 224 : index
    %c224_372 = arith.constant 224 : index
    %592 = vector.load %arg9[%c224, %c224_372] : memref<300x363xf32, #tpu.memory_space<vmem>>, vector<1x64xf32>
    %593 = arith.addf %591, %592 : vector<1x64xf32>
    %c225 = arith.constant 225 : index
    %c225_373 = arith.constant 225 : index
    %594 = vector.load %arg9[%c225, %c225_373] : memref<300x363xf32, #tpu.memory_space<vmem>>, vector<1x64xf32>
    %595 = arith.addf %593, %594 : vector<1x64xf32>
    %c226 = arith.constant 226 : index
    %c226_374 = arith.constant 226 : index
    %596 = vector.load %arg9[%c226, %c226_374] : memref<300x363xf32, #tpu.memory_space<vmem>>, vector<1x64xf32>
    %597 = arith.addf %595, %596 : vector<1x64xf32>
    %c227 = arith.constant 227 : index
    %c227_375 = arith.constant 227 : index
    %598 = vector.load %arg9[%c227, %c227_375] : memref<300x363xf32, #tpu.memory_space<vmem>>, vector<1x64xf32>
    %599 = arith.addf %597, %598 : vector<1x64xf32>
    %c228 = arith.constant 228 : index
    %c228_376 = arith.constant 228 : index
    %600 = vector.load %arg9[%c228, %c228_376] : memref<300x363xf32, #tpu.memory_space<vmem>>, vector<1x64xf32>
    %601 = arith.addf %599, %600 : vector<1x64xf32>
    %c229 = arith.constant 229 : index
    %c229_377 = arith.constant 229 : index
    %602 = vector.load %arg9[%c229, %c229_377] : memref<300x363xf32, #tpu.memory_space<vmem>>, vector<1x64xf32>
    %603 = arith.addf %601, %602 : vector<1x64xf32>
    %c230 = arith.constant 230 : index
    %c230_378 = arith.constant 230 : index
    %604 = vector.load %arg9[%c230, %c230_378] : memref<300x363xf32, #tpu.memory_space<vmem>>, vector<1x64xf32>
    %605 = arith.addf %603, %604 : vector<1x64xf32>
    %c231 = arith.constant 231 : index
    %c231_379 = arith.constant 231 : index
    %606 = vector.load %arg9[%c231, %c231_379] : memref<300x363xf32, #tpu.memory_space<vmem>>, vector<1x64xf32>
    %607 = arith.addf %605, %606 : vector<1x64xf32>
    %c232 = arith.constant 232 : index
    %c232_380 = arith.constant 232 : index
    %608 = vector.load %arg9[%c232, %c232_380] : memref<300x363xf32, #tpu.memory_space<vmem>>, vector<1x64xf32>
    %609 = arith.addf %607, %608 : vector<1x64xf32>
    %c233 = arith.constant 233 : index
    %c233_381 = arith.constant 233 : index
    %610 = vector.load %arg9[%c233, %c233_381] : memref<300x363xf32, #tpu.memory_space<vmem>>, vector<1x64xf32>
    %611 = arith.addf %609, %610 : vector<1x64xf32>
    %c234 = arith.constant 234 : index
    %c234_382 = arith.constant 234 : index
    %612 = vector.load %arg9[%c234, %c234_382] : memref<300x363xf32, #tpu.memory_space<vmem>>, vector<1x64xf32>
    %613 = arith.addf %611, %612 : vector<1x64xf32>
    %c235 = arith.constant 235 : index
    %c235_383 = arith.constant 235 : index
    %614 = vector.load %arg9[%c235, %c235_383] : memref<300x363xf32, #tpu.memory_space<vmem>>, vector<1x64xf32>
    %615 = arith.addf %613, %614 : vector<1x64xf32>
    %c236 = arith.constant 236 : index
    %c236_384 = arith.constant 236 : index
    %616 = vector.load %arg9[%c236, %c236_384] : memref<300x363xf32, #tpu.memory_space<vmem>>, vector<1x64xf32>
    %617 = arith.addf %615, %616 : vector<1x64xf32>
    %c237 = arith.constant 237 : index
    %c237_385 = arith.constant 237 : index
    %618 = vector.load %arg9[%c237, %c237_385] : memref<300x363xf32, #tpu.memory_space<vmem>>, vector<1x64xf32>
    %619 = arith.addf %617, %618 : vector<1x64xf32>
    %c238 = arith.constant 238 : index
    %c238_386 = arith.constant 238 : index
    %620 = vector.load %arg9[%c238, %c238_386] : memref<300x363xf32, #tpu.memory_space<vmem>>, vector<1x64xf32>
    %621 = arith.addf %619, %620 : vector<1x64xf32>
    %c239 = arith.constant 239 : index
    %c239_387 = arith.constant 239 : index
    %622 = vector.load %arg9[%c239, %c239_387] : memref<300x363xf32, #tpu.memory_space<vmem>>, vector<1x64xf32>
    %623 = arith.addf %621, %622 : vector<1x64xf32>
    %c240 = arith.constant 240 : index
    %c240_388 = arith.constant 240 : index
    %624 = vector.load %arg9[%c240, %c240_388] : memref<300x363xf32, #tpu.memory_space<vmem>>, vector<1x64xf32>
    %625 = arith.addf %623, %624 : vector<1x64xf32>
    %c241 = arith.constant 241 : index
    %c241_389 = arith.constant 241 : index
    %626 = vector.load %arg9[%c241, %c241_389] : memref<300x363xf32, #tpu.memory_space<vmem>>, vector<1x64xf32>
    %627 = arith.addf %625, %626 : vector<1x64xf32>
    %c242 = arith.constant 242 : index
    %c242_390 = arith.constant 242 : index
    %628 = vector.load %arg9[%c242, %c242_390] : memref<300x363xf32, #tpu.memory_space<vmem>>, vector<1x64xf32>
    %629 = arith.addf %627, %628 : vector<1x64xf32>
    %c243 = arith.constant 243 : index
    %c243_391 = arith.constant 243 : index
    %630 = vector.load %arg9[%c243, %c243_391] : memref<300x363xf32, #tpu.memory_space<vmem>>, vector<1x64xf32>
    %631 = arith.addf %629, %630 : vector<1x64xf32>
    %c244 = arith.constant 244 : index
    %c244_392 = arith.constant 244 : index
    %632 = vector.load %arg9[%c244, %c244_392] : memref<300x363xf32, #tpu.memory_space<vmem>>, vector<1x64xf32>
    %633 = arith.addf %631, %632 : vector<1x64xf32>
    %c245 = arith.constant 245 : index
    %c245_393 = arith.constant 245 : index
    %634 = vector.load %arg9[%c245, %c245_393] : memref<300x363xf32, #tpu.memory_space<vmem>>, vector<1x64xf32>
    %635 = arith.addf %633, %634 : vector<1x64xf32>
    %c246 = arith.constant 246 : index
    %c246_394 = arith.constant 246 : index
    %636 = vector.load %arg9[%c246, %c246_394] : memref<300x363xf32, #tpu.memory_space<vmem>>, vector<1x64xf32>
    %637 = arith.addf %635, %636 : vector<1x64xf32>
    %c247 = arith.constant 247 : index
    %c247_395 = arith.constant 247 : index
    %638 = vector.load %arg9[%c247, %c247_395] : memref<300x363xf32, #tpu.memory_space<vmem>>, vector<1x64xf32>
    %639 = arith.addf %637, %638 : vector<1x64xf32>
    %c248 = arith.constant 248 : index
    %c248_396 = arith.constant 248 : index
    %640 = vector.load %arg9[%c248, %c248_396] : memref<300x363xf32, #tpu.memory_space<vmem>>, vector<1x64xf32>
    %641 = arith.addf %639, %640 : vector<1x64xf32>
    %c249 = arith.constant 249 : index
    %c249_397 = arith.constant 249 : index
    %642 = vector.load %arg9[%c249, %c249_397] : memref<300x363xf32, #tpu.memory_space<vmem>>, vector<1x64xf32>
    %643 = arith.addf %641, %642 : vector<1x64xf32>
    %c250 = arith.constant 250 : index
    %c250_398 = arith.constant 250 : index
    %644 = vector.load %arg9[%c250, %c250_398] : memref<300x363xf32, #tpu.memory_space<vmem>>, vector<1x64xf32>
    %645 = arith.addf %643, %644 : vector<1x64xf32>
    %c251 = arith.constant 251 : index
    %c251_399 = arith.constant 251 : index
    %646 = vector.load %arg9[%c251, %c251_399] : memref<300x363xf32, #tpu.memory_space<vmem>>, vector<1x64xf32>
    %647 = arith.addf %645, %646 : vector<1x64xf32>
    %c252 = arith.constant 252 : index
    %c252_400 = arith.constant 252 : index
    %648 = vector.load %arg9[%c252, %c252_400] : memref<300x363xf32, #tpu.memory_space<vmem>>, vector<1x64xf32>
    %649 = arith.addf %647, %648 : vector<1x64xf32>
    %c253 = arith.constant 253 : index
    %c253_401 = arith.constant 253 : index
    %650 = vector.load %arg9[%c253, %c253_401] : memref<300x363xf32, #tpu.memory_space<vmem>>, vector<1x64xf32>
    %651 = arith.addf %649, %650 : vector<1x64xf32>
    %c254 = arith.constant 254 : index
    %c254_402 = arith.constant 254 : index
    %652 = vector.load %arg9[%c254, %c254_402] : memref<300x363xf32, #tpu.memory_space<vmem>>, vector<1x64xf32>
    %653 = arith.addf %651, %652 : vector<1x64xf32>
    %c255 = arith.constant 255 : index
    %c255_403 = arith.constant 255 : index
    %654 = vector.load %arg9[%c255, %c255_403] : memref<300x363xf32, #tpu.memory_space<vmem>>, vector<1x64xf32>
    %655 = arith.addf %653, %654 : vector<1x64xf32>
    %c256 = arith.constant 256 : index
    %c256_404 = arith.constant 256 : index
    %656 = vector.load %arg9[%c256, %c256_404] : memref<300x363xf32, #tpu.memory_space<vmem>>, vector<1x64xf32>
    %657 = arith.addf %655, %656 : vector<1x64xf32>
    %c257 = arith.constant 257 : index
    %c257_405 = arith.constant 257 : index
    %658 = vector.load %arg9[%c257, %c257_405] : memref<300x363xf32, #tpu.memory_space<vmem>>, vector<1x64xf32>
    %659 = arith.addf %657, %658 : vector<1x64xf32>
    %c258 = arith.constant 258 : index
    %c258_406 = arith.constant 258 : index
    %660 = vector.load %arg9[%c258, %c258_406] : memref<300x363xf32, #tpu.memory_space<vmem>>, vector<1x64xf32>
    %661 = arith.addf %659, %660 : vector<1x64xf32>
    %c259 = arith.constant 259 : index
    %c259_407 = arith.constant 259 : index
    %662 = vector.load %arg9[%c259, %c259_407] : memref<300x363xf32, #tpu.memory_space<vmem>>, vector<1x64xf32>
    %663 = arith.addf %661, %662 : vector<1x64xf32>
    %c260 = arith.constant 260 : index
    %c260_408 = arith.constant 260 : index
    %664 = vector.load %arg9[%c260, %c260_408] : memref<300x363xf32, #tpu.memory_space<vmem>>, vector<1x64xf32>
    %665 = arith.addf %663, %664 : vector<1x64xf32>
    %c261 = arith.constant 261 : index
    %c261_409 = arith.constant 261 : index
    %666 = vector.load %arg9[%c261, %c261_409] : memref<300x363xf32, #tpu.memory_space<vmem>>, vector<1x64xf32>
    %667 = arith.addf %665, %666 : vector<1x64xf32>
    %c262 = arith.constant 262 : index
    %c262_410 = arith.constant 262 : index
    %668 = vector.load %arg9[%c262, %c262_410] : memref<300x363xf32, #tpu.memory_space<vmem>>, vector<1x64xf32>
    %669 = arith.addf %667, %668 : vector<1x64xf32>
    %c263 = arith.constant 263 : index
    %c263_411 = arith.constant 263 : index
    %670 = vector.load %arg9[%c263, %c263_411] : memref<300x363xf32, #tpu.memory_space<vmem>>, vector<1x64xf32>
    %671 = arith.addf %669, %670 : vector<1x64xf32>
    %c264 = arith.constant 264 : index
    %c264_412 = arith.constant 264 : index
    %672 = vector.load %arg9[%c264, %c264_412] : memref<300x363xf32, #tpu.memory_space<vmem>>, vector<1x64xf32>
    %673 = arith.addf %671, %672 : vector<1x64xf32>
    %c265 = arith.constant 265 : index
    %c265_413 = arith.constant 265 : index
    %674 = vector.load %arg9[%c265, %c265_413] : memref<300x363xf32, #tpu.memory_space<vmem>>, vector<1x64xf32>
    %675 = arith.addf %673, %674 : vector<1x64xf32>
    %c266 = arith.constant 266 : index
    %c266_414 = arith.constant 266 : index
    %676 = vector.load %arg9[%c266, %c266_414] : memref<300x363xf32, #tpu.memory_space<vmem>>, vector<1x64xf32>
    %677 = arith.addf %675, %676 : vector<1x64xf32>
    %c267 = arith.constant 267 : index
    %c267_415 = arith.constant 267 : index
    %678 = vector.load %arg9[%c267, %c267_415] : memref<300x363xf32, #tpu.memory_space<vmem>>, vector<1x64xf32>
    %679 = arith.addf %677, %678 : vector<1x64xf32>
    %c268 = arith.constant 268 : index
    %c268_416 = arith.constant 268 : index
    %680 = vector.load %arg9[%c268, %c268_416] : memref<300x363xf32, #tpu.memory_space<vmem>>, vector<1x64xf32>
    %681 = arith.addf %679, %680 : vector<1x64xf32>
    %c269 = arith.constant 269 : index
    %c269_417 = arith.constant 269 : index
    %682 = vector.load %arg9[%c269, %c269_417] : memref<300x363xf32, #tpu.memory_space<vmem>>, vector<1x64xf32>
    %683 = arith.addf %681, %682 : vector<1x64xf32>
    %c270 = arith.constant 270 : index
    %c270_418 = arith.constant 270 : index
    %684 = vector.load %arg9[%c270, %c270_418] : memref<300x363xf32, #tpu.memory_space<vmem>>, vector<1x64xf32>
    %685 = arith.addf %683, %684 : vector<1x64xf32>
    %c271 = arith.constant 271 : index
    %c271_419 = arith.constant 271 : index
    %686 = vector.load %arg9[%c271, %c271_419] : memref<300x363xf32, #tpu.memory_space<vmem>>, vector<1x64xf32>
    %687 = arith.addf %685, %686 : vector<1x64xf32>
    %c272 = arith.constant 272 : index
    %c272_420 = arith.constant 272 : index
    %688 = vector.load %arg9[%c272, %c272_420] : memref<300x363xf32, #tpu.memory_space<vmem>>, vector<1x64xf32>
    %689 = arith.addf %687, %688 : vector<1x64xf32>
    %c273 = arith.constant 273 : index
    %c273_421 = arith.constant 273 : index
    %690 = vector.load %arg9[%c273, %c273_421] : memref<300x363xf32, #tpu.memory_space<vmem>>, vector<1x64xf32>
    %691 = arith.addf %689, %690 : vector<1x64xf32>
    %c274 = arith.constant 274 : index
    %c274_422 = arith.constant 274 : index
    %692 = vector.load %arg9[%c274, %c274_422] : memref<300x363xf32, #tpu.memory_space<vmem>>, vector<1x64xf32>
    %693 = arith.addf %691, %692 : vector<1x64xf32>
    %c275 = arith.constant 275 : index
    %c275_423 = arith.constant 275 : index
    %694 = vector.load %arg9[%c275, %c275_423] : memref<300x363xf32, #tpu.memory_space<vmem>>, vector<1x64xf32>
    %695 = arith.addf %693, %694 : vector<1x64xf32>
    %c276 = arith.constant 276 : index
    %c276_424 = arith.constant 276 : index
    %696 = vector.load %arg9[%c276, %c276_424] : memref<300x363xf32, #tpu.memory_space<vmem>>, vector<1x64xf32>
    %697 = arith.addf %695, %696 : vector<1x64xf32>
    %c277 = arith.constant 277 : index
    %c277_425 = arith.constant 277 : index
    %698 = vector.load %arg9[%c277, %c277_425] : memref<300x363xf32, #tpu.memory_space<vmem>>, vector<1x64xf32>
    %699 = arith.addf %697, %698 : vector<1x64xf32>
    %c278 = arith.constant 278 : index
    %c278_426 = arith.constant 278 : index
    %700 = vector.load %arg9[%c278, %c278_426] : memref<300x363xf32, #tpu.memory_space<vmem>>, vector<1x64xf32>
    %701 = arith.addf %699, %700 : vector<1x64xf32>
    %c279 = arith.constant 279 : index
    %c279_427 = arith.constant 279 : index
    %702 = vector.load %arg9[%c279, %c279_427] : memref<300x363xf32, #tpu.memory_space<vmem>>, vector<1x64xf32>
    %703 = arith.addf %701, %702 : vector<1x64xf32>
    %c280 = arith.constant 280 : index
    %c280_428 = arith.constant 280 : index
    %704 = vector.load %arg9[%c280, %c280_428] : memref<300x363xf32, #tpu.memory_space<vmem>>, vector<1x64xf32>
    %705 = arith.addf %703, %704 : vector<1x64xf32>
    %c281 = arith.constant 281 : index
    %c281_429 = arith.constant 281 : index
    %706 = vector.load %arg9[%c281, %c281_429] : memref<300x363xf32, #tpu.memory_space<vmem>>, vector<1x64xf32>
    %707 = arith.addf %705, %706 : vector<1x64xf32>
    %c282 = arith.constant 282 : index
    %c282_430 = arith.constant 282 : index
    %708 = vector.load %arg9[%c282, %c282_430] : memref<300x363xf32, #tpu.memory_space<vmem>>, vector<1x64xf32>
    %709 = arith.addf %707, %708 : vector<1x64xf32>
    %c283 = arith.constant 283 : index
    %c283_431 = arith.constant 283 : index
    %710 = vector.load %arg9[%c283, %c283_431] : memref<300x363xf32, #tpu.memory_space<vmem>>, vector<1x64xf32>
    %711 = arith.addf %709, %710 : vector<1x64xf32>
    %c284 = arith.constant 284 : index
    %c284_432 = arith.constant 284 : index
    %712 = vector.load %arg9[%c284, %c284_432] : memref<300x363xf32, #tpu.memory_space<vmem>>, vector<1x64xf32>
    %713 = arith.addf %711, %712 : vector<1x64xf32>
    %c285 = arith.constant 285 : index
    %c285_433 = arith.constant 285 : index
    %714 = vector.load %arg9[%c285, %c285_433] : memref<300x363xf32, #tpu.memory_space<vmem>>, vector<1x64xf32>
    %715 = arith.addf %713, %714 : vector<1x64xf32>
    %c286 = arith.constant 286 : index
    %c286_434 = arith.constant 286 : index
    %716 = vector.load %arg9[%c286, %c286_434] : memref<300x363xf32, #tpu.memory_space<vmem>>, vector<1x64xf32>
    %717 = arith.addf %715, %716 : vector<1x64xf32>
    %c287 = arith.constant 287 : index
    %c287_435 = arith.constant 287 : index
    %718 = vector.load %arg9[%c287, %c287_435] : memref<300x363xf32, #tpu.memory_space<vmem>>, vector<1x64xf32>
    %719 = arith.addf %717, %718 : vector<1x64xf32>
    %c288 = arith.constant 288 : index
    %c288_436 = arith.constant 288 : index
    %720 = vector.load %arg9[%c288, %c288_436] : memref<300x363xf32, #tpu.memory_space<vmem>>, vector<1x64xf32>
    %721 = arith.addf %719, %720 : vector<1x64xf32>
    %c289 = arith.constant 289 : index
    %c289_437 = arith.constant 289 : index
    %722 = vector.load %arg9[%c289, %c289_437] : memref<300x363xf32, #tpu.memory_space<vmem>>, vector<1x64xf32>
    %723 = arith.addf %721, %722 : vector<1x64xf32>
    %c290 = arith.constant 290 : index
    %c290_438 = arith.constant 290 : index
    %724 = vector.load %arg9[%c290, %c290_438] : memref<300x363xf32, #tpu.memory_space<vmem>>, vector<1x64xf32>
    %725 = arith.addf %723, %724 : vector<1x64xf32>
    %c291 = arith.constant 291 : index
    %c291_439 = arith.constant 291 : index
    %726 = vector.load %arg9[%c291, %c291_439] : memref<300x363xf32, #tpu.memory_space<vmem>>, vector<1x64xf32>
    %727 = arith.addf %725, %726 : vector<1x64xf32>
    %c292 = arith.constant 292 : index
    %c292_440 = arith.constant 292 : index
    %728 = vector.load %arg9[%c292, %c292_440] : memref<300x363xf32, #tpu.memory_space<vmem>>, vector<1x64xf32>
    %729 = arith.addf %727, %728 : vector<1x64xf32>
    %c293 = arith.constant 293 : index
    %c293_441 = arith.constant 293 : index
    %730 = vector.load %arg9[%c293, %c293_441] : memref<300x363xf32, #tpu.memory_space<vmem>>, vector<1x64xf32>
    %731 = arith.addf %729, %730 : vector<1x64xf32>
    %c294 = arith.constant 294 : index
    %c294_442 = arith.constant 294 : index
    %732 = vector.load %arg9[%c294, %c294_442] : memref<300x363xf32, #tpu.memory_space<vmem>>, vector<1x64xf32>
    %733 = arith.addf %731, %732 : vector<1x64xf32>
    %c295 = arith.constant 295 : index
    %c295_443 = arith.constant 295 : index
    %734 = vector.load %arg9[%c295, %c295_443] : memref<300x363xf32, #tpu.memory_space<vmem>>, vector<1x64xf32>
    %735 = arith.addf %733, %734 : vector<1x64xf32>
    %c296 = arith.constant 296 : index
    %c296_444 = arith.constant 296 : index
    %736 = vector.load %arg9[%c296, %c296_444] : memref<300x363xf32, #tpu.memory_space<vmem>>, vector<1x64xf32>
    %737 = arith.addf %735, %736 : vector<1x64xf32>
    %c297 = arith.constant 297 : index
    %c297_445 = arith.constant 297 : index
    %738 = vector.load %arg9[%c297, %c297_445] : memref<300x363xf32, #tpu.memory_space<vmem>>, vector<1x64xf32>
    %739 = arith.addf %737, %738 : vector<1x64xf32>
    %c298 = arith.constant 298 : index
    %c298_446 = arith.constant 298 : index
    %740 = vector.load %arg9[%c298, %c298_446] : memref<300x363xf32, #tpu.memory_space<vmem>>, vector<1x64xf32>
    %741 = arith.addf %739, %740 : vector<1x64xf32>
    %c299 = arith.constant 299 : index
    %c299_447 = arith.constant 299 : index
    %742 = vector.load %arg9[%c299, %c299_447] : memref<300x363xf32, #tpu.memory_space<vmem>>, vector<1x64xf32>
    %743 = arith.addf %741, %742 : vector<1x64xf32>
    %c0_448 = arith.constant 0 : index
    %744 = memref.load %arg5[%c0_448] : memref<1xf32, #tpu.memory_space<smem>>
    %745 = vector.broadcast %744 : f32 to vector<1x64xf32>
    %746 = arith.addf %743, %745 : vector<1x64xf32>
    %cst_449 = arith.constant 0.000000e+00 : f32
    %747 = vector.broadcast %cst_449 : f32 to vector<1x64xf32>
    %748 = arith.maximumf %746, %747 : vector<1x64xf32>
    %c0_450 = arith.constant 0 : index
    %c0_451 = arith.constant 0 : index
    %c0_452 = arith.constant 0 : index
    %749 = vector.load %arg6[%c0_450, %c0_451, %c0_452] : memref<1x1x64xf32, #tpu.memory_space<vmem>>, vector<1x1x64xf32>
    %750 = vector.shape_cast %749 : vector<1x1x64xf32> to vector<1x64xf32>
    %751 = vector.shape_cast %748 : vector<1x64xf32> to vector<1x1x64xf32>
    tpu.vector_store %arg6[%c0_450, %c0_451, %c0_452], %751 {strides = array<i32>} : memref<1x1x64xf32, #tpu.memory_space<vmem>>, vector<1x1x64xf32>,
    return
  }
  func.func @transform_0(%arg0: i32) -> (i32, i32, i32) {
    %c0_i32 = arith.constant 0 : i32
    %c0_i32_0 = arith.constant 0 : i32
    %c0_i32_1 = arith.constant 0 : i32
    return %arg0, %c0_i32, %c0_i32_0 : i32, i32, i32
  }
  func.func @transform_1(%arg0: i32) -> (i32, i32) {
    %c0_i32 = arith.constant 0 : i32
    %c0_i32_0 = arith.constant 0 : i32
    %c0_i32_1 = arith.constant 0 : i32
    return %c0_i32, %c0_i32_0 : i32, i32
  }
  func.func @transform_2(%arg0: i32) -> (i32, i32) {
    %c0_i32 = arith.constant 0 : i32
    %c0_i32_0 = arith.constant 0 : i32
    %c0_i32_1 = arith.constant 0 : i32
    return %c0_i32, %c0_i32_0 : i32, i32
  }
  func.func @transform_3(%arg0: i32) -> (i32, i32) {
    %c0_i32 = arith.constant 0 : i32
    %c0_i32_0 = arith.constant 0 : i32
    %c0_i32_1 = arith.constant 0 : i32
    return %c0_i32, %c0_i32_0 : i32, i32
  }
  func.func @transform_4(%arg0: i32) -> i32 {
    %c0_i32 = arith.constant 0 : i32
    %c0_i32_0 = arith.constant 0 : i32
    return %c0_i32 : i32
  }
  func.func @transform_5(%arg0: i32) -> (i32, i32, i32) {
    %c0_i32 = arith.constant 0 : i32
    %c0_i32_0 = arith.constant 0 : i32
    %c0_i32_1 = arith.constant 0 : i32
    return %arg0, %c0_i32, %c0_i32_0 : i32, i32, i32
  }
}

</mosaic_0001>

<llo_original>
// kernel: cnn_forward.1
$region0: #{cnn_forward.1}
  #allocation0 [shape = 'u32[]', space=smem, size = 0x4, offset = 0x4, fixed_abs, tag = 'smem constant byte address 0x4 - core index']
  #allocation1 [shape = 'u32[144,128]{1,0:T(1,128)}', space=vmem, size = 0x12000, scoped, tag = 'internal scratch']
  #allocation2 [shape = 'f32[63,300]{1,0:T(8,128)}', space=vmem, size = 0x18000, scoped, tag = 'scratch operand']
  #allocation3 [shape = 'f32[60,363]{1,0:T(8,128)}', space=vmem, size = 0x18000, scoped, tag = 'scratch operand']
  #allocation4 [shape = 'f32[300,363]{1,0:T(8,128)}', space=vmem, size = 0x72000, scoped, tag = 'scratch operand']
  #allocation5 [shape = 'f32[1]{0:T(128)S(6)}', space=smem, size = 0x200, scoped, tag = 'scoped memory for cnn_forward.1']
  %s0 = inlined_call_operand.vmem [shape: f32[2,1,362], index: 0, kind: input, shape index: {}]
  %s1 = inlined_call_operand.vmem [shape: bf16[60,300], index: 1, kind: input, shape index: {}]
  %s2 = inlined_call_operand.vmem [shape: f32[60,1], index: 2, kind: input, shape index: {}]
  %s3 = inlined_call_operand.vmem [shape: bf16[300,60], index: 3, kind: input, shape index: {}]
  %s4 = inlined_call_operand.<no memory space> [shape: f32[1], index: 4, kind: input, shape index: {}]
  %s5 = inlined_call_operand.hbm [shape: f32[2,1,64], index: 5, kind: output, shape index: {}]
  %s6 = sld [smem:[#allocation0]]
  $region53: #{cnn_forward.1} parent=0
    _
  %s8 = ssub.s32 1, %s6
  %s9 = scalar_select 0, %s8, %s6
  %10 = sst [smem:[#allocation5]] %s4
  $region1: #{cnn_forward.1} parent=0
    #allocation6 [shape = 'u8[1024]{0}', space=vmem, size = 0x400, scoped, tag = 'output window, operand 0']
    #allocation7 [shape = 's32[2]{0}', space=sflag, size = 0x8, scoped, tag = 'scoped memory for cnn_forward.1']
    %11 = vsyncpa [#allocation7], 0
    %s12 = scalar_lea.sflag [#allocation7], 1
    %13 = vsyncpa %s12, 0
    loop: start=0, step=1, limit=4
    $region2: #{cnn_forward.1} parent=1 // loop_pre_header
      _
    $region3: #{cnn_forward.1} parent=1 // loop_header
      %s15 = sphi 0, %s19
      %p16 = scmp.ge.s32.totalorder %s15, 4
      %s25 = sphi 0, %s27
      %s28 = sphi 0, %s25
      %s29 = sphi 0, %s28
      %s45 = sphi 0, %s29
      %s49 = sphi 0, %s49
      %s51 = sphi 0, %s49
      %s52 = sphi 0, %s51
      %s66 = sphi 0, %s52
      %s70 = sphi 0, %s70
      %s72 = sphi 0, %s70
      %s73 = sphi 0, %s72
      %s87 = sphi 0, %s73
      %s91 = sphi 0, %s91
      %s93 = sphi 0, %s91
      %s94 = sphi 0, %s93
      %s108 = sphi 0, %s94
      %s112 = sphi 0, %s112
      %s114 = sphi 0, %s112
      %s115 = sphi 0, %s114
      %s129 = sphi 0, %s115
      %s135 = sphi 0, %s137
      %s138 = sphi 0, %s135
      %s139 = sphi 0, %s138
      %s155 = sphi 0, %s139
    $region4: #{cnn_forward.1} parent=1 // loop_header_branch
      %18 = sbr.rel (%p16) target = $region8
    $region5: #{cnn_forward.1} parent=1 // loop_body
      %s20 = ssub.s32 %s15, 1
      %s21 = ssub.s32 %s15, 2
      %s22 = sadd.s32 %s15, 1
      %s23 = ssub.s32 %s15, %s22
      %p24 = scmp.eq.s32.totalorder %s23, 0
      %s26 = sadd.s32 %s25, 1
      %s27 = scalar_select %p24, %s25, %s26
      %p30 = pneg %p24
      %p31 = scmp.eq.s32.totalorder %s15, 1
      %p32 = por %p30, %p31
      %p33 = scmp.ne.s32.totalorder %s25, %s28
      %p34 = scmp.eq.s32.totalorder %s15, 0
      %p35 = por %p33, %p34
      %p36 = scmp.ne.s32.totalorder %s25, %s28
      %p37 = scmp.eq.s32.totalorder %s20, 1
      %p38 = por %p36, %p37
      %p39 = scmp.ne.s32.totalorder %s28, %s29
      %p40 = scmp.eq.s32.totalorder %s20, 0
      %p41 = por %p39, %p40
      %p42 = scmp.ne.s32.totalorder %s28, %s29
      %p43 = scmp.eq.s32.totalorder %s21, 1
      %p44 = por %p42, %p43
      %p46 = scmp.ne.s32.totalorder %s29, %s45
      %p47 = scmp.eq.s32.totalorder %s21, 0
      %p48 = por %p46, %p47
      %s50 = sadd.s32 %s49, 1
      %p53 = scmp.eq.s32.totalorder %s15, 1
      %p54 = scmp.ne.s32.totalorder %s49, %s51
      %p55 = scmp.eq.s32.totalorder %s15, 0
      %p56 = por %p54, %p55
      %p57 = scmp.ne.s32.totalorder %s49, %s51
      %p58 = scmp.eq.s32.totalorder %s20, 1
      %p59 = por %p57, %p58
      %p60 = scmp.ne.s32.totalorder %s51, %s52
      %p61 = scmp.eq.s32.totalorder %s20, 0
      %p62 = por %p60, %p61
      %p63 = scmp.ne.s32.totalorder %s51, %s52
      %p64 = scmp.eq.s32.totalorder %s21, 1
      %p65 = por %p63, %p64
      %p67 = scmp.ne.s32.totalorder %s52, %s66
      %p68 = scmp.eq.s32.totalorder %s21, 0
      %p69 = por %p67, %p68
      %s71 = sadd.s32 %s70, 1
      %p74 = scmp.eq.s32.totalorder %s15, 1
      %p75 = scmp.ne.s32.totalorder %s70, %s72
      %p76 = scmp.eq.s32.totalorder %s15, 0
      %p77 = por %p75, %p76
      %p78 = scmp.ne.s32.totalorder %s70, %s72
      %p79 = scmp.eq.s32.totalorder %s20, 1
      %p80 = por %p78, %p79
      %p81 = scmp.ne.s32.totalorder %s72, %s73
      %p82 = scmp.eq.s32.totalorder %s20, 0
      %p83 = por %p81, %p82
      %p84 = scmp.ne.s32.totalorder %s72, %s73
      %p85 = scmp.eq.s32.totalorder %s21, 1
      %p86 = por %p84, %p85
      %p88 = scmp.ne.s32.totalorder %s73, %s87
      %p89 = scmp.eq.s32.totalorder %s21, 0
      %p90 = por %p88, %p89
      %s92 = sadd.s32 %s91, 1
      %p95 = scmp.eq.s32.totalorder %s15, 1
      %p96 = scmp.ne.s32.totalorder %s91, %s93
      %p97 = scmp.eq.s32.totalorder %s15, 0
      %p98 = por %p96, %p97
      %p99 = scmp.ne.s32.totalorder %s91, %s93
      %p100 = scmp.eq.s32.totalorder %s20, 1
      %p101 = por %p99, %p100
      %p102 = scmp.ne.s32.totalorder %s93, %s94
      %p103 = scmp.eq.s32.totalorder %s20, 0
      %p104 = por %p102, %p103
      %p105 = scmp.ne.s32.totalorder %s93, %s94
      %p106 = scmp.eq.s32.totalorder %s21, 1
      %p107 = por %p105, %p106
      %p109 = scmp.ne.s32.totalorder %s94, %s108
      %p110 = scmp.eq.s32.totalorder %s21, 0
      %p111 = por %p109, %p110
      %s113 = sadd.s32 %s112, 1
      %p116 = scmp.eq.s32.totalorder %s15, 1
      %p117 = scmp.ne.s32.totalorder %s112, %s114
      %p118 = scmp.eq.s32.totalorder %s15, 0
      %p119 = por %p117, %p118
      %p120 = scmp.ne.s32.totalorder %s112, %s114
      %p121 = scmp.eq.s32.totalorder %s20, 1
      %p122 = por %p120, %p121
      %p123 = scmp.ne.s32.totalorder %s114, %s115
      %p124 = scmp.eq.s32.totalorder %s20, 0
      %p125 = por %p123, %p124
      %p126 = scmp.ne.s32.totalorder %s114, %s115
      %p127 = scmp.eq.s32.totalorder %s21, 1
      %p128 = por %p126, %p127
      %p130 = scmp.ne.s32.totalorder %s115, %s129
      %p131 = scmp.eq.s32.totalorder %s21, 0
      %p132 = por %p130, %p131
      %s133 = ssub.s32 %s15, %s22
      %p134 = scmp.eq.s32.totalorder %s133, 0
      %s136 = sadd.s32 %s135, 1
      %s137 = scalar_select %p134, %s135, %s136
      %p140 = pneg %p134
      %p141 = scmp.eq.s32.totalorder %s15, 1
      %p142 = por %p140, %p141
      %p143 = scmp.ne.s32.totalorder %s135, %s138
      %p144 = scmp.eq.s32.totalorder %s15, 0
      %p145 = por %p143, %p144
      %p146 = scmp.ne.s32.totalorder %s135, %s138
      %p147 = scmp.eq.s32.totalorder %s20, 1
      %p148 = por %p146, %p147
      %p149 = scmp.ne.s32.totalorder %s138, %s139
      %p150 = scmp.eq.s32.totalorder %s20, 0
      %p151 = por %p149, %p150
      %p152 = scmp.ne.s32.totalorder %s138, %s139
      %p153 = scmp.eq.s32.totalorder %s21, 1
      %p154 = por %p152, %p153
      %p156 = scmp.ne.s32.totalorder %s139, %s155
      %p157 = scmp.eq.s32.totalorder %s21, 0
      %p158 = por %p156, %p157
      %p159 = scmp.le.s32.totalorder 1, %s15
      %p160 = scmp.lt.s32.totalorder %s15, 3
      %p161 = pnand %p159, %p160
      %p162 = pneg %p161
      // Predicated region
      $region9: #{cnn_forward.1} parent=5 // pred_check
        _
      $region10: #{cnn_forward.1} parent=5 // pred_check_branch
        %164 = sbr.rel (%p161) target = $region12
      $region11: #{cnn_forward.1} parent=5 // pred_region
        %s165 = ssub.s32 %s15, 1
        // Predicated region
        $region13: #{cnn_forward.1} parent=11 // pred_check
          %p166 = pneg %p62
        $region14: #{cnn_forward.1} parent=11 // pred_check_branch
          %168 = sbr.rel (%p166) target = $region16
        $region15: #{cnn_forward.1} parent=11 // pred_region
          _
        $region16: #{cnn_forward.1} parent=11 // pred_fallthru
          _
        // Predicated region
        $region17: #{cnn_forward.1} parent=11 // pred_check
          %p169 = pneg %p83
        $region18: #{cnn_forward.1} parent=11 // pred_check_branch
          %171 = sbr.rel (%p169) target = $region20
        $region19: #{cnn_forward.1} parent=11 // pred_region
          _
        $region20: #{cnn_forward.1} parent=11 // pred_fallthru
          _
        // Predicated region
        $region21: #{cnn_forward.1} parent=11 // pred_check
          %p172 = pneg %p104
        $region22: #{cnn_forward.1} parent=11 // pred_check_branch
          %174 = sbr.rel (%p172) target = $region24
        $region23: #{cnn_forward.1} parent=11 // pred_region
          _
        $region24: #{cnn_forward.1} parent=11 // pred_fallthru
          _
        // Predicated region
        $region25: #{cnn_forward.1} parent=11 // pred_check
          %p175 = pneg %p125
        $region26: #{cnn_forward.1} parent=11 // pred_check_branch
          %177 = sbr.rel (%p175) target = $region28
        $region27: #{cnn_forward.1} parent=11 // pred_region
          _
        $region28: #{cnn_forward.1} parent=11 // pred_fallthru
          _
      $region12: #{cnn_forward.1} parent=5 // pred_fallthru
        _
      %p178 = scmp.lt.s32.totalorder %s15, 2
      // Predicated region
      $region29: #{cnn_forward.1} parent=5 // pred_check
        %p179 = pneg %p178
      $region30: #{cnn_forward.1} parent=5 // pred_check_branch
        %181 = sbr.rel (%p179) target = $region32
      $region31: #{cnn_forward.1} parent=5 // pred_region
        // Predicated region
        $region33: #{cnn_forward.1} parent=31 // pred_check
          %p182 = pneg %p35
        $region34: #{cnn_forward.1} parent=31 // pred_check_branch
          %184 = sbr.rel (%p182) target = $region36
        $region35: #{cnn_forward.1} parent=31 // pred_region
          %p185 = scmp.lt.s32.totalorder %s15, 1
          %s186 = scalar_select %p185, %s15, 1
          %s187 = smul.addr %s186, 3
          %s188 = scalar_lea.vmem %s0, %s187
        $region36: #{cnn_forward.1} parent=31 // pred_fallthru
          _
      $region32: #{cnn_forward.1} parent=5 // pred_fallthru
        _
      %p189 = scmp.le.s32.totalorder 1, %s15
      %p190 = scmp.lt.s32.totalorder %s15, 3
      %p191 = pnand %p189, %p190
      %p192 = pneg %p191
      // Predicated region
      $region37: #{cnn_forward.1} parent=5 // pred_check
        _
      $region38: #{cnn_forward.1} parent=5 // pred_check_branch
        %194 = sbr.rel (%p191) target = $region40
      $region39: #{cnn_forward.1} parent=5 // pred_region
        %s195 = ssub.s32 %s15, 1
        %p196 = scmp.lt.s32.totalorder %s20, 1
        %s197 = scalar_select %p196, %s20, 1
        %s198 = smul.addr %s197, 3
        %s199 = scalar_lea.vmem %s0, %s198
        %p200 = pneg %p41
        %p201 = pneg %p38
        %p202 = pneg %p62
        %p203 = pneg %p59
        %p204 = pneg %p83
        %p205 = pneg %p80
        %p206 = pneg %p104
        %p207 = pneg %p101
        %p208 = pneg %p125
        %p209 = pneg %p122
        %p210 = pneg %p151
        %p211 = pneg %p148
        %s212 = sand.u32 %s138, 1
        %s213 = scalar_lea.sflag [#allocation7], %s212
        %s214 = sand.u32 %s138, 1
        %s215 = scalar_lea.vmem [#allocation6], %s214
        %p216 = scmp.lt.s32.totalorder %s20, 1
        %s217 = scalar_select %p216, %s20, 1
        %s218 = smul.addr %s217, 3
        %s219 = scalar_lea.vmem %s0, %s218
        %v221 = vld [vmem:[%s219] sm:$0x7]
        %v222 = vlaneseq
        %vm223 = vcmp.ge.s32.totalorder %v222, 0
        %vm224 = vcmp.lt.s32.totalorder %v222, 300
        %vm225 = vmand %vm223, %vm224
        %226 = vst.msk [vmem:[#allocation2] ss:$8 sm:$0x7] %vm225, %v221
        %227 = vst.msk [vmem:[#allocation2] ss:$8 sm:$0x0] %vm225, %v221
        %229 = vrot.lane.b32.xlu0 %v221, 127
        %v230 = vpop.permute.xlu0 %229
        %v231 = vrot.slane %v230, 1
        %vm232 = vcmask 1039360
        %v233 = vsel %vm232, %v230, %v231
        %s235 = scalar_lea.vmem [#allocation2], 1
        %236 = vst.msk [vmem:[%s235] ss:$8 sm:$0x7] %vm225, %v233
        %237 = vst.msk [vmem:[%s235] ss:$8 sm:$0x0] %vm225, %v233
        %238 = vrot.lane.b32.xlu0 %v221, 126
        %v239 = vpop.permute.xlu0 %238
        %v240 = vrot.slane %v239, 1
        %vm241 = vcmask 1031168
        %v242 = vsel %vm241, %v239, %v240
        %s244 = scalar_lea.vmem [#allocation2], 2
        %245 = vst.msk [vmem:[%s244] ss:$8 sm:$0x7] %vm225, %v242
        %246 = vst.msk [vmem:[%s244] ss:$8 sm:$0x0] %vm225, %v242
        %247 = vrot.lane.b32.xlu0 %v221, 125
        %v248 = vpop.permute.xlu0 %247
        %v249 = vrot.slane %v248, 1
        %vm250 = vcmask 1022976
        %v251 = vsel %vm250, %v248, %v249
        %s253 = scalar_lea.vmem [#allocation2], 3
        %254 = vst.msk [vmem:[%s253] ss:$8 sm:$0x7] %vm225, %v251
        %255 = vst.msk [vmem:[%s253] ss:$8 sm:$0x0] %vm225, %v251
        %256 = vrot.lane.b32.xlu0 %v221, 124
        %v257 = vpop.permute.xlu0 %256
        %v258 = vrot.slane %v257, 1
        %vm259 = vcmask 1014784
        %v260 = vsel %vm259, %v257, %v258
        %s262 = scalar_lea.vmem [#allocation2], 4
        %263 = vst.msk [vmem:[%s262] ss:$8 sm:$0x7] %vm225, %v260
        %264 = vst.msk [vmem:[%s262] ss:$8 sm:$0x0] %vm225, %v260
        %265 = vrot.lane.b32.xlu0 %v221, 123
        %v266 = vpop.permute.xlu0 %265
        %v267 = vrot.slane %v266, 1
        %vm268 = vcmask 1006592
        %v269 = vsel %vm268, %v266, %v267
        %s271 = scalar_lea.vmem [#allocation2], 5
        %272 = vst.msk [vmem:[%s271] ss:$8 sm:$0x7] %vm225, %v269
        %273 = vst.msk [vmem:[%s271] ss:$8 sm:$0x0] %vm225, %v269
        %274 = vrot.lane.b32.xlu0 %v221, 122
        %v275 = vpop.permute.xlu0 %274
        %v276 = vrot.slane %v275, 1
        %vm277 = vcmask 998400
        %v278 = vsel %vm277, %v275, %v276
        %s280 = scalar_lea.vmem [#allocation2], 6
        %281 = vst.msk [vmem:[%s280] ss:$8 sm:$0x7] %vm225, %v278
        %282 = vst.msk [vmem:[%s280] ss:$8 sm:$0x0] %vm225, %v278
        %283 = vrot.lane.b32.xlu0 %v221, 121
        %v284 = vpop.permute.xlu0 %283
        %v285 = vrot.slane %v284, 1
        %vm286 = vcmask 990208
        %v287 = vsel %vm286, %v284, %v285
        %s289 = scalar_lea.vmem [#allocation2], 7
        %290 = vst.msk [vmem:[%s289] ss:$8 sm:$0x7] %vm225, %v287
        %291 = vst.msk [vmem:[%s289] ss:$8 sm:$0x0] %vm225, %v287
        %292 = vrot.lane.b32.xlu0 %v221, 120
        %v293 = vpop.permute.xlu0 %292
        %v294 = vrot.slane %v293, 1
        %vm295 = vcmask 982016
        %v296 = vsel %vm295, %v293, %v294
        %s298 = scalar_lea.vmem [#allocation2], 24
        %299 = vst.msk [vmem:[%s298] ss:$8 sm:$0x7] %vm225, %v296
        %300 = vst.msk [vmem:[%s298] ss:$8 sm:$0x0] %vm225, %v296
        %301 = vrot.lane.b32.xlu0 %v221, 119
        %v302 = vpop.permute.xlu0 %301
        %v303 = vrot.slane %v302, 1
        %vm304 = vcmask 973824
        %v305 = vsel %vm304, %v302, %v303
        %s307 = scalar_lea.vmem [#allocation2], 25
        %308 = vst.msk [vmem:[%s307] ss:$8 sm:$0x7] %vm225, %v305
        %309 = vst.msk [vmem:[%s307] ss:$8 sm:$0x0] %vm225, %v305
        %310 = vrot.lane.b32.xlu0 %v221, 118
        %v311 = vpop.permute.xlu0 %310
        %v312 = vrot.slane %v311, 1
        %vm313 = vcmask 965632
        %v314 = vsel %vm313, %v311, %v312
        %s316 = scalar_lea.vmem [#allocation2], 26
        %317 = vst.msk [vmem:[%s316] ss:$8 sm:$0x7] %vm225, %v314
        %318 = vst.msk [vmem:[%s316] ss:$8 sm:$0x0] %vm225, %v314
        %319 = vrot.lane.b32.xlu0 %v221, 117
        %v320 = vpop.permute.xlu0 %319
        %v321 = vrot.slane %v320, 1
        %vm322 = vcmask 957440
        %v323 = vsel %vm322, %v320, %v321
        %s325 = scalar_lea.vmem [#allocation2], 27
        %326 = vst.msk [vmem:[%s325] ss:$8 sm:$0x7] %vm225, %v323
        %327 = vst.msk [vmem:[%s325] ss:$8 sm:$0x0] %vm225, %v323
        %328 = vrot.lane.b32.xlu0 %v221, 116
        %v329 = vpop.permute.xlu0 %328
        %v330 = vrot.slane %v329, 1
        %vm331 = vcmask 949248
        %v332 = vsel %vm331, %v329, %v330
        %s334 = scalar_lea.vmem [#allocation2], 28
        %335 = vst.msk [vmem:[%s334] ss:$8 sm:$0x7] %vm225, %v332
        %336 = vst.msk [vmem:[%s334] ss:$8 sm:$0x0] %vm225, %v332
        %337 = vrot.lane.b32.xlu0 %v221, 115
        %v338 = vpop.permute.xlu0 %337
        %v339 = vrot.slane %v338, 1
        %vm340 = vcmask 941056
        %v341 = vsel %vm340, %v338, %v339
        %s343 = scalar_lea.vmem [#allocation2], 29
        %344 = vst.msk [vmem:[%s343] ss:$8 sm:$0x7] %vm225, %v341
        %345 = vst.msk [vmem:[%s343] ss:$8 sm:$0x0] %vm225, %v341
        %346 = vrot.lane.b32.xlu0 %v221, 114
        %v347 = vpop.permute.xlu0 %346
        %v348 = vrot.slane %v347, 1
        %vm349 = vcmask 932864
        %v350 = vsel %vm349, %v347, %v348
        %s352 = scalar_lea.vmem [#allocation2], 30
        %353 = vst.msk [vmem:[%s352] ss:$8 sm:$0x7] %vm225, %v350
        %354 = vst.msk [vmem:[%s352] ss:$8 sm:$0x0] %vm225, %v350
        %355 = vrot.lane.b32.xlu0 %v221, 113
        %v356 = vpop.permute.xlu0 %355
        %v357 = vrot.slane %v356, 1
        %vm358 = vcmask 924672
        %v359 = vsel %vm358, %v356, %v357
        %s361 = scalar_lea.vmem [#allocation2], 31
        %362 = vst.msk [vmem:[%s361] ss:$8 sm:$0x7] %vm225, %v359
        %363 = vst.msk [vmem:[%s361] ss:$8 sm:$0x0] %vm225, %v359
        %364 = vrot.lane.b32.xlu0 %v221, 112
        %v365 = vpop.permute.xlu0 %364
        %v366 = vrot.slane %v365, 1
        %vm367 = vcmask 916480
        %v368 = vsel %vm367, %v365, %v366
        %s370 = scalar_lea.vmem [#allocation2], 48
        %371 = vst.msk [vmem:[%s370] ss:$8 sm:$0x7] %vm225, %v368
        %372 = vst.msk [vmem:[%s370] ss:$8 sm:$0x0] %vm225, %v368
        %373 = vrot.lane.b32.xlu0 %v221, 111
        %v374 = vpop.permute.xlu0 %373
        %v375 = vrot.slane %v374, 1
        %vm376 = vcmask 908288
        %v377 = vsel %vm376, %v374, %v375
        %s379 = scalar_lea.vmem [#allocation2], 49
        %380 = vst.msk [vmem:[%s379] ss:$8 sm:$0x7] %vm225, %v377
        %381 = vst.msk [vmem:[%s379] ss:$8 sm:$0x0] %vm225, %v377
        %382 = vrot.lane.b32.xlu0 %v221, 110
        %v383 = vpop.permute.xlu0 %382
        %v384 = vrot.slane %v383, 1
        %vm385 = vcmask 900096
        %v386 = vsel %vm385, %v383, %v384
        %s388 = scalar_lea.vmem [#allocation2], 50
        %389 = vst.msk [vmem:[%s388] ss:$8 sm:$0x7] %vm225, %v386
        %390 = vst.msk [vmem:[%s388] ss:$8 sm:$0x0] %vm225, %v386
        %391 = vrot.lane.b32.xlu0 %v221, 109
        %v392 = vpop.permute.xlu0 %391
        %v393 = vrot.slane %v392, 1
        %vm394 = vcmask 891904
        %v395 = vsel %vm394, %v392, %v393
        %s397 = scalar_lea.vmem [#allocation2], 51
        %398 = vst.msk [vmem:[%s397] ss:$8 sm:$0x7] %vm225, %v395
        %399 = vst.msk [vmem:[%s397] ss:$8 sm:$0x0] %vm225, %v395
        %400 = vrot.lane.b32.xlu0 %v221, 108
        %v401 = vpop.permute.xlu0 %400
        %v402 = vrot.slane %v401, 1
        %vm403 = vcmask 883712
        %v404 = vsel %vm403, %v401, %v402
        %s406 = scalar_lea.vmem [#allocation2], 52
        %407 = vst.msk [vmem:[%s406] ss:$8 sm:$0x7] %vm225, %v404
        %408 = vst.msk [vmem:[%s406] ss:$8 sm:$0x0] %vm225, %v404
        %409 = vrot.lane.b32.xlu0 %v221, 107
        %v410 = vpop.permute.xlu0 %409
        %v411 = vrot.slane %v410, 1
        %vm412 = vcmask 875520
        %v413 = vsel %vm412, %v410, %v411
        %s415 = scalar_lea.vmem [#allocation2], 53
        %416 = vst.msk [vmem:[%s415] ss:$8 sm:$0x7] %vm225, %v413
        %417 = vst.msk [vmem:[%s415] ss:$8 sm:$0x0] %vm225, %v413
        %418 = vrot.lane.b32.xlu0 %v221, 106
        %v419 = vpop.permute.xlu0 %418
        %v420 = vrot.slane %v419, 1
        %vm421 = vcmask 867328
        %v422 = vsel %vm421, %v419, %v420
        %s424 = scalar_lea.vmem [#allocation2], 54
        %425 = vst.msk [vmem:[%s424] ss:$8 sm:$0x7] %vm225, %v422
        %426 = vst.msk [vmem:[%s424] ss:$8 sm:$0x0] %vm225, %v422
        %427 = vrot.lane.b32.xlu0 %v221, 105
        %v428 = vpop.permute.xlu0 %427
        %v429 = vrot.slane %v428, 1
        %vm430 = vcmask 859136
        %v431 = vsel %vm430, %v428, %v429
        %s433 = scalar_lea.vmem [#allocation2], 55
        %434 = vst.msk [vmem:[%s433] ss:$8 sm:$0x7] %vm225, %v431
        %435 = vst.msk [vmem:[%s433] ss:$8 sm:$0x0] %vm225, %v431
        %436 = vrot.lane.b32.xlu0 %v221, 104
        %v437 = vpop.permute.xlu0 %436
        %v438 = vrot.slane %v437, 1
        %vm439 = vcmask 850944
        %v440 = vsel %vm439, %v437, %v438
        %s442 = scalar_lea.vmem [#allocation2], 72
        %443 = vst.msk [vmem:[%s442] ss:$8 sm:$0x7] %vm225, %v440
        %444 = vst.msk [vmem:[%s442] ss:$8 sm:$0x0] %vm225, %v440
        %445 = vrot.lane.b32.xlu0 %v221, 103
        %v446 = vpop.permute.xlu0 %445
        %v447 = vrot.slane %v446, 1
        %vm448 = vcmask 842752
        %v449 = vsel %vm448, %v446, %v447
        %s451 = scalar_lea.vmem [#allocation2], 73
        %452 = vst.msk [vmem:[%s451] ss:$8 sm:$0x7] %vm225, %v449
        %453 = vst.msk [vmem:[%s451] ss:$8 sm:$0x0] %vm225, %v449
        %454 = vrot.lane.b32.xlu0 %v221, 102
        %v455 = vpop.permute.xlu0 %454
        %v456 = vrot.slane %v455, 1
        %vm457 = vcmask 834560
        %v458 = vsel %vm457, %v455, %v456
        %s460 = scalar_lea.vmem [#allocation2], 74
        %461 = vst.msk [vmem:[%s460] ss:$8 sm:$0x7] %vm225, %v458
        %462 = vst.msk [vmem:[%s460] ss:$8 sm:$0x0] %vm225, %v458
        %463 = vrot.lane.b32.xlu0 %v221, 101
        %v464 = vpop.permute.xlu0 %463
        %v465 = vrot.slane %v464, 1
        %vm466 = vcmask 826368
        %v467 = vsel %vm466, %v464, %v465
        %s469 = scalar_lea.vmem [#allocation2], 75
        %470 = vst.msk [vmem:[%s469] ss:$8 sm:$0x7] %vm225, %v467
        %471 = vst.msk [vmem:[%s469] ss:$8 sm:$0x0] %vm225, %v467
        %472 = vrot.lane.b32.xlu0 %v221, 100
        %v473 = vpop.permute.xlu0 %472
        %v474 = vrot.slane %v473, 1
        %vm475 = vcmask 818176
        %v476 = vsel %vm475, %v473, %v474
        %s478 = scalar_lea.vmem [#allocation2], 76
        %479 = vst.msk [vmem:[%s478] ss:$8 sm:$0x7] %vm225, %v476
        %480 = vst.msk [vmem:[%s478] ss:$8 sm:$0x0] %vm225, %v476
        %481 = vrot.lane.b32.xlu0 %v221, 99
        %v482 = vpop.permute.xlu0 %481
        %v483 = vrot.slane %v482, 1
        %vm484 = vcmask 809984
        %v485 = vsel %vm484, %v482, %v483
        %s487 = scalar_lea.vmem [#allocation2], 77
        %488 = vst.msk [vmem:[%s487] ss:$8 sm:$0x7] %vm225, %v485
        %489 = vst.msk [vmem:[%s487] ss:$8 sm:$0x0] %vm225, %v485
        %490 = vrot.lane.b32.xlu0 %v221, 98
        %v491 = vpop.permute.xlu0 %490
        %v492 = vrot.slane %v491, 1
        %vm493 = vcmask 801792
        %v494 = vsel %vm493, %v491, %v492
        %s496 = scalar_lea.vmem [#allocation2], 78
        %497 = vst.msk [vmem:[%s496] ss:$8 sm:$0x7] %vm225, %v494
        %498 = vst.msk [vmem:[%s496] ss:$8 sm:$0x0] %vm225, %v494
        %499 = vrot.lane.b32.xlu0 %v221, 97
        %v500 = vpop.permute.xlu0 %499
        %v501 = vrot.slane %v500, 1
        %vm502 = vcmask 793600
        %v503 = vsel %vm502, %v500, %v501
        %s505 = scalar_lea.vmem [#allocation2], 79
        %506 = vst.msk [vmem:[%s505] ss:$8 sm:$0x7] %vm225, %v503
        %507 = vst.msk [vmem:[%s505] ss:$8 sm:$0x0] %vm225, %v503
        %508 = vrot.lane.b32.xlu0 %v221, 96
        %v509 = vpop.permute.xlu0 %508
        %v510 = vrot.slane %v509, 1
        %vm511 = vcmask 785408
        %v512 = vsel %vm511, %v509, %v510
        %s514 = scalar_lea.vmem [#allocation2], 96
        %515 = vst.msk [vmem:[%s514] ss:$8 sm:$0x7] %vm225, %v512
        %516 = vst.msk [vmem:[%s514] ss:$8 sm:$0x0] %vm225, %v512
        %517 = vrot.lane.b32.xlu0 %v221, 95
        %v518 = vpop.permute.xlu0 %517
        %v519 = vrot.slane %v518, 1
        %vm520 = vcmask 777216
        %v521 = vsel %vm520, %v518, %v519
        %s523 = scalar_lea.vmem [#allocation2], 97
        %524 = vst.msk [vmem:[%s523] ss:$8 sm:$0x7] %vm225, %v521
        %525 = vst.msk [vmem:[%s523] ss:$8 sm:$0x0] %vm225, %v521
        %526 = vrot.lane.b32.xlu0 %v221, 94
        %v527 = vpop.permute.xlu0 %526
        %v528 = vrot.slane %v527, 1
        %vm529 = vcmask 769024
        %v530 = vsel %vm529, %v527, %v528
        %s532 = scalar_lea.vmem [#allocation2], 98
        %533 = vst.msk [vmem:[%s532] ss:$8 sm:$0x7] %vm225, %v530
        %534 = vst.msk [vmem:[%s532] ss:$8 sm:$0x0] %vm225, %v530
        %535 = vrot.lane.b32.xlu0 %v221, 93
        %v536 = vpop.permute.xlu0 %535
        %v537 = vrot.slane %v536, 1
        %vm538 = vcmask 760832
        %v539 = vsel %vm538, %v536, %v537
        %s541 = scalar_lea.vmem [#allocation2], 99
        %542 = vst.msk [vmem:[%s541] ss:$8 sm:$0x7] %vm225, %v539
        %543 = vst.msk [vmem:[%s541] ss:$8 sm:$0x0] %vm225, %v539
        %544 = vrot.lane.b32.xlu0 %v221, 92
        %v545 = vpop.permute.xlu0 %544
        %v546 = vrot.slane %v545, 1
        %vm547 = vcmask 752640
        %v548 = vsel %vm547, %v545, %v546
        %s550 = scalar_lea.vmem [#allocation2], 100
        %551 = vst.msk [vmem:[%s550] ss:$8 sm:$0x7] %vm225, %v548
        %552 = vst.msk [vmem:[%s550] ss:$8 sm:$0x0] %vm225, %v548
        %553 = vrot.lane.b32.xlu0 %v221, 91
        %v554 = vpop.permute.xlu0 %553
        %v555 = vrot.slane %v554, 1
        %vm556 = vcmask 744448
        %v557 = vsel %vm556, %v554, %v555
        %s559 = scalar_lea.vmem [#allocation2], 101
        %560 = vst.msk [vmem:[%s559] ss:$8 sm:$0x7] %vm225, %v557
        %561 = vst.msk [vmem:[%s559] ss:$8 sm:$0x0] %vm225, %v557
        %562 = vrot.lane.b32.xlu0 %v221, 90
        %v563 = vpop.permute.xlu0 %562
        %v564 = vrot.slane %v563, 1
        %vm565 = vcmask 736256
        %v566 = vsel %vm565, %v563, %v564
        %s568 = scalar_lea.vmem [#allocation2], 102
        %569 = vst.msk [vmem:[%s568] ss:$8 sm:$0x7] %vm225, %v566
        %570 = vst.msk [vmem:[%s568] ss:$8 sm:$0x0] %vm225, %v566
        %571 = vrot.lane.b32.xlu0 %v221, 89
        %v572 = vpop.permute.xlu0 %571
        %v573 = vrot.slane %v572, 1
        %vm574 = vcmask 728064
        %v575 = vsel %vm574, %v572, %v573
        %s577 = scalar_lea.vmem [#allocation2], 103
        %578 = vst.msk [vmem:[%s577] ss:$8 sm:$0x7] %vm225, %v575
        %579 = vst.msk [vmem:[%s577] ss:$8 sm:$0x0] %vm225, %v575
        %580 = vrot.lane.b32.xlu0 %v221, 88
        %v581 = vpop.permute.xlu0 %580
        %v582 = vrot.slane %v581, 1
        %vm583 = vcmask 719872
        %v584 = vsel %vm583, %v581, %v582
        %s586 = scalar_lea.vmem [#allocation2], 120
        %587 = vst.msk [vmem:[%s586] ss:$8 sm:$0x7] %vm225, %v584
        %588 = vst.msk [vmem:[%s586] ss:$8 sm:$0x0] %vm225, %v584
        %589 = vrot.lane.b32.xlu0 %v221, 87
        %v590 = vpop.permute.xlu0 %589
        %v591 = vrot.slane %v590, 1
        %vm592 = vcmask 711680
        %v593 = vsel %vm592, %v590, %v591
        %s595 = scalar_lea.vmem [#allocation2], 121
        %596 = vst.msk [vmem:[%s595] ss:$8 sm:$0x7] %vm225, %v593
        %597 = vst.msk [vmem:[%s595] ss:$8 sm:$0x0] %vm225, %v593
        %598 = vrot.lane.b32.xlu0 %v221, 86
        %v599 = vpop.permute.xlu0 %598
        %v600 = vrot.slane %v599, 1
        %vm601 = vcmask 703488
        %v602 = vsel %vm601, %v599, %v600
        %s604 = scalar_lea.vmem [#allocation2], 122
        %605 = vst.msk [vmem:[%s604] ss:$8 sm:$0x7] %vm225, %v602
        %606 = vst.msk [vmem:[%s604] ss:$8 sm:$0x0] %vm225, %v602
        %607 = vrot.lane.b32.xlu0 %v221, 85
        %v608 = vpop.permute.xlu0 %607
        %v609 = vrot.slane %v608, 1
        %vm610 = vcmask 695296
        %v611 = vsel %vm610, %v608, %v609
        %s613 = scalar_lea.vmem [#allocation2], 123
        %614 = vst.msk [vmem:[%s613] ss:$8 sm:$0x7] %vm225, %v611
        %615 = vst.msk [vmem:[%s613] ss:$8 sm:$0x0] %vm225, %v611
        %616 = vrot.lane.b32.xlu0 %v221, 84
        %v617 = vpop.permute.xlu0 %616
        %v618 = vrot.slane %v617, 1
        %vm619 = vcmask 687104
        %v620 = vsel %vm619, %v617, %v618
        %s622 = scalar_lea.vmem [#allocation2], 124
        %623 = vst.msk [vmem:[%s622] ss:$8 sm:$0x7] %vm225, %v620
        %624 = vst.msk [vmem:[%s622] ss:$8 sm:$0x0] %vm225, %v620
        %625 = vrot.lane.b32.xlu0 %v221, 83
        %v626 = vpop.permute.xlu0 %625
        %v627 = vrot.slane %v626, 1
        %vm628 = vcmask 678912
        %v629 = vsel %vm628, %v626, %v627
        %s631 = scalar_lea.vmem [#allocation2], 125
        %632 = vst.msk [vmem:[%s631] ss:$8 sm:$0x7] %vm225, %v629
        %633 = vst.msk [vmem:[%s631] ss:$8 sm:$0x0] %vm225, %v629
        %634 = vrot.lane.b32.xlu0 %v221, 82
        %v635 = vpop.permute.xlu0 %634
        %v636 = vrot.slane %v635, 1
        %vm637 = vcmask 670720
        %v638 = vsel %vm637, %v635, %v636
        %s640 = scalar_lea.vmem [#allocation2], 126
        %641 = vst.msk [vmem:[%s640] ss:$8 sm:$0x7] %vm225, %v638
        %642 = vst.msk [vmem:[%s640] ss:$8 sm:$0x0] %vm225, %v638
        %643 = vrot.lane.b32.xlu0 %v221, 81
        %v644 = vpop.permute.xlu0 %643
        %v645 = vrot.slane %v644, 1
        %vm646 = vcmask 662528
        %v647 = vsel %vm646, %v644, %v645
        %s649 = scalar_lea.vmem [#allocation2], 127
        %650 = vst.msk [vmem:[%s649] ss:$8 sm:$0x7] %vm225, %v647
        %651 = vst.msk [vmem:[%s649] ss:$8 sm:$0x0] %vm225, %v647
        %652 = vrot.lane.b32.xlu0 %v221, 80
        %v653 = vpop.permute.xlu0 %652
        %v654 = vrot.slane %v653, 1
        %vm655 = vcmask 654336
        %v656 = vsel %vm655, %v653, %v654
        %s658 = scalar_lea.vmem [#allocation2], 144
        %659 = vst.msk [vmem:[%s658] ss:$8 sm:$0x7] %vm225, %v656
        %660 = vst.msk [vmem:[%s658] ss:$8 sm:$0x0] %vm225, %v656
        %661 = vrot.lane.b32.xlu0 %v221, 79
        %v662 = vpop.permute.xlu0 %661
        %v663 = vrot.slane %v662, 1
        %vm664 = vcmask 646144
        %v665 = vsel %vm664, %v662, %v663
        %s667 = scalar_lea.vmem [#allocation2], 145
        %668 = vst.msk [vmem:[%s667] ss:$8 sm:$0x7] %vm225, %v665
        %669 = vst.msk [vmem:[%s667] ss:$8 sm:$0x0] %vm225, %v665
        %670 = vrot.lane.b32.xlu0 %v221, 78
        %v671 = vpop.permute.xlu0 %670
        %v672 = vrot.slane %v671, 1
        %vm673 = vcmask 637952
        %v674 = vsel %vm673, %v671, %v672
        %s676 = scalar_lea.vmem [#allocation2], 146
        %677 = vst.msk [vmem:[%s676] ss:$8 sm:$0x7] %vm225, %v674
        %678 = vst.msk [vmem:[%s676] ss:$8 sm:$0x0] %vm225, %v674
        %679 = vrot.lane.b32.xlu0 %v221, 77
        %v680 = vpop.permute.xlu0 %679
        %v681 = vrot.slane %v680, 1
        %vm682 = vcmask 629760
        %v683 = vsel %vm682, %v680, %v681
        %s685 = scalar_lea.vmem [#allocation2], 147
        %686 = vst.msk [vmem:[%s685] ss:$8 sm:$0x7] %vm225, %v683
        %687 = vst.msk [vmem:[%s685] ss:$8 sm:$0x0] %vm225, %v683
        %688 = vrot.lane.b32.xlu0 %v221, 76
        %v689 = vpop.permute.xlu0 %688
        %v690 = vrot.slane %v689, 1
        %vm691 = vcmask 621568
        %v692 = vsel %vm691, %v689, %v690
        %s694 = scalar_lea.vmem [#allocation2], 148
        %695 = vst.msk [vmem:[%s694] ss:$8 sm:$0x7] %vm225, %v692
        %696 = vst.msk [vmem:[%s694] ss:$8 sm:$0x0] %vm225, %v692
        %697 = vrot.lane.b32.xlu0 %v221, 75
        %v698 = vpop.permute.xlu0 %697
        %v699 = vrot.slane %v698, 1
        %vm700 = vcmask 613376
        %v701 = vsel %vm700, %v698, %v699
        %s703 = scalar_lea.vmem [#allocation2], 149
        %704 = vst.msk [vmem:[%s703] ss:$8 sm:$0x7] %vm225, %v701
        %705 = vst.msk [vmem:[%s703] ss:$8 sm:$0x0] %vm225, %v701
        %706 = vrot.lane.b32.xlu0 %v221, 74
        %v707 = vpop.permute.xlu0 %706
        %v708 = vrot.slane %v707, 1
        %vm709 = vcmask 605184
        %v710 = vsel %vm709, %v707, %v708
        %s712 = scalar_lea.vmem [#allocation2], 150
        %713 = vst.msk [vmem:[%s712] ss:$8 sm:$0x7] %vm225, %v710
        %714 = vst.msk [vmem:[%s712] ss:$8 sm:$0x0] %vm225, %v710
        %715 = vrot.lane.b32.xlu0 %v221, 73
        %v716 = vpop.permute.xlu0 %715
        %v717 = vrot.slane %v716, 1
        %vm718 = vcmask 596992
        %v719 = vsel %vm718, %v716, %v717
        %s721 = scalar_lea.vmem [#allocation2], 151
        %722 = vst.msk [vmem:[%s721] ss:$8 sm:$0x7] %vm225, %v719
        %723 = vst.msk [vmem:[%s721] ss:$8 sm:$0x0] %vm225, %v719
        %724 = vrot.lane.b32.xlu0 %v221, 72
        %v725 = vpop.permute.xlu0 %724
        %v726 = vrot.slane %v725, 1
        %vm727 = vcmask 588800
        %v728 = vsel %vm727, %v725, %v726
        %s730 = scalar_lea.vmem [#allocation2], 168
        %731 = vst.msk [vmem:[%s730] ss:$8 sm:$0x7] %vm225, %v728
        %732 = vst.msk [vmem:[%s730] ss:$8 sm:$0x0] %vm225, %v728
        %733 = vrot.lane.b32.xlu0 %v221, 71
        %v734 = vpop.permute.xlu0 %733
        %v735 = vrot.slane %v734, 1
        %vm736 = vcmask 580608
        %v737 = vsel %vm736, %v734, %v735
        %s739 = scalar_lea.vmem [#allocation2], 169
        %740 = vst.msk [vmem:[%s739] ss:$8 sm:$0x7] %vm225, %v737
        %741 = vst.msk [vmem:[%s739] ss:$8 sm:$0x0] %vm225, %v737
        %742 = vrot.lane.b32.xlu0 %v221, 70
        %v743 = vpop.permute.xlu0 %742
        %v744 = vrot.slane %v743, 1
        %vm745 = vcmask 572416
        %v746 = vsel %vm745, %v743, %v744
        %s748 = scalar_lea.vmem [#allocation2], 170
        %749 = vst.msk [vmem:[%s748] ss:$8 sm:$0x7] %vm225, %v746
        %750 = vst.msk [vmem:[%s748] ss:$8 sm:$0x0] %vm225, %v746
        %751 = vrot.lane.b32.xlu0 %v221, 69
        %v752 = vpop.permute.xlu0 %751
        %v753 = vrot.slane %v752, 1
        %vm754 = vcmask 564224
        %v755 = vsel %vm754, %v752, %v753
        %s757 = scalar_lea.vmem [#allocation2], 171
        %758 = vst.msk [vmem:[%s757] ss:$8 sm:$0x7] %vm225, %v755
        %759 = vst.msk [vmem:[%s757] ss:$8 sm:$0x0] %vm225, %v755
        %760 = vrot.lane.b32.xlu0 %v221, 68
        %v761 = vpop.permute.xlu0 %760
        %v762 = vrot.slane %v761, 1
        %vm763 = vcmask 556032
        %v764 = vsel %vm763, %v761, %v762
        %s766 = scalar_lea.vmem [#allocation2], 172
        %767 = vst.msk [vmem:[%s766] ss:$8 sm:$0x7] %vm225, %v764
        %768 = vst.msk [vmem:[%s766] ss:$8 sm:$0x0] %vm225, %v764
        %769 = vrot.lane.b32.xlu0 %v221, 67
        %v770 = vpop.permute.xlu0 %769
        %v771 = vrot.slane %v770, 1
        %vm772 = vcmask 547840
        %v773 = vsel %vm772, %v770, %v771
        %s775 = scalar_lea.vmem [#allocation2], 173
        %776 = vst.msk [vmem:[%s775] ss:$8 sm:$0x7] %vm225, %v773
        %777 = vst.msk [vmem:[%s775] ss:$8 sm:$0x0] %vm225, %v773
        %778 = vrot.lane.b32.xlu0 %v221, 66
        %v779 = vpop.permute.xlu0 %778
        %v780 = vrot.slane %v779, 1
        %vm781 = vcmask 539648
        %v782 = vsel %vm781, %v779, %v780
        %s784 = scalar_lea.vmem [#allocation2], 174
        %785 = vst.msk [vmem:[%s784] ss:$8 sm:$0x7] %vm225, %v782
        %786 = vst.msk [vmem:[%s784] ss:$8 sm:$0x0] %vm225, %v782
        %v787 = vld [vmem:[#allocation2] sm:$0xff]
        %v788 = vld [vmem:[#allocation2 + $0x8] sm:$0xff]
        %v789 = vld [vmem:[#allocation2 + $0x10] sm:$0xff]
        %v790 = vld [vmem:[#allocation2 + $0x18] sm:$0xff]
        %v791 = vld [vmem:[#allocation2 + $0x20] sm:$0xff]
        %v792 = vld [vmem:[#allocation2 + $0x28] sm:$0xff]
        %v793 = vld [vmem:[#allocation2 + $0x30] sm:$0xff]
        %v794 = vld [vmem:[#allocation2 + $0x38] sm:$0xff]
        %v795 = vld [vmem:[#allocation2 + $0x40] sm:$0xff]
        %v796 = vld [vmem:[#allocation2 + $0x48] sm:$0xff]
        %v797 = vld [vmem:[#allocation2 + $0x50] sm:$0xff]
        %v798 = vld [vmem:[#allocation2 + $0x58] sm:$0xff]
        %v799 = vld [vmem:[#allocation2 + $0x60] sm:$0xff]
        %v800 = vld [vmem:[#allocation2 + $0x68] sm:$0xff]
        %v801 = vld [vmem:[#allocation2 + $0x70] sm:$0xff]
        %v802 = vld [vmem:[#allocation2 + $0x78] sm:$0xff]
        %v803 = vld [vmem:[#allocation2 + $0x80] sm:$0xff]
        %v804 = vld [vmem:[#allocation2 + $0x88] sm:$0xff]
        %v805 = vld [vmem:[#allocation2 + $0x90] sm:$0xff]
        %v806 = vld [vmem:[#allocation2 + $0x98] sm:$0xff]
        %v807 = vld [vmem:[#allocation2 + $0xa0] sm:$0xff]
        %v808 = vld [vmem:[#allocation2 + $0xa8] sm:$0x7f]
        %v809 = vld [vmem:[#allocation2 + $0xb0] sm:$0x7f]
        %v810 = vld [vmem:[#allocation2 + $0xb8] sm:$0x7f]
        %v811 = vpack.c.bf16 %v790, %v787
        %v812 = vpack.c.bf16 %v791, %v788
        %v813 = vpack.c.bf16 %v792, %v789
        %v814 = vpack.c.bf16 %v796, %v793
        %v815 = vpack.c.bf16 %v797, %v794
        %v816 = vpack.c.bf16 %v798, %v795
        %v817 = vpack.c.bf16 %v802, %v799
        %v818 = vpack.c.bf16 %v803, %v800
        %v819 = vpack.c.bf16 %v804, %v801
        %v820 = vpack.c.bf16 %v808, %v805
        %v821 = vpack.c.bf16 %v809, %v806
        %v822 = vpack.c.bf16 %v810, %v807
        %v823 = vld [vmem:[%s1] sm:$0xff]
        %v824 = vld [vmem:[%s1 + $0x8] sm:$0xf]
        %v825 = vld [vmem:[%s1 + $0xc] sm:$0xff]
        %v826 = vld [vmem:[%s1 + $0x14] sm:$0xf]
        %v827 = vld [vmem:[%s1 + $0x18] sm:$0xff]
        %v828 = vld [vmem:[%s1 + $0x20] sm:$0xf]
        %v829 = vld [vmem:[%s1 + $0x24] sm:$0xff]
        %v830 = vld [vmem:[%s1 + $0x2c] sm:$0xf]
        %v831 = vld [vmem:[%s1 + $0x30] sm:$0xff]
        %v832 = vld [vmem:[%s1 + $0x38] sm:$0xf]
        %v833 = vld [vmem:[%s1 + $0x3c] sm:$0xff]
        %v834 = vld [vmem:[%s1 + $0x44] sm:$0xf]
        %v835 = vld [vmem:[%s1 + $0x48] sm:$0xff]
        %v836 = vld [vmem:[%s1 + $0x50] sm:$0xf]
        %v837 = vld [vmem:[%s1 + $0x54] sm:$0x33]
        %v838 = vld [vmem:[%s1 + $0x5c] sm:$0x3]
        %v839 = vld [vmem:[%s2] sm:$0xff]
        %v840 = vld [vmem:[%s2 + $0x8] sm:$0xff]
        %v841 = vld [vmem:[%s2 + $0x10] sm:$0xff]
        %v842 = vld [vmem:[%s2 + $0x18] sm:$0xff]
        %v843 = vld [vmem:[%s2 + $0x20] sm:$0xff]
        %v844 = vld [vmem:[%s2 + $0x28] sm:$0xff]
        %v845 = vld [vmem:[%s2 + $0x30] sm:$0xff]
        %v846 = vld [vmem:[%s2 + $0x38] sm:$0xf]
        %848 = vset.pattern.permute.xlu0 0
        %849 = vperm.xlu0 %848, %v839
        %v850 = vpop.permute.xlu0 %849
        %853 = vset.pattern.permute.xlu0 0
        %854 = vperm.xlu0 %853, %v840
        %v855 = vpop.permute.xlu0 %854
        %858 = vset.pattern.permute.xlu0 0
        %859 = vperm.xlu0 %858, %v841
        %v860 = vpop.permute.xlu0 %859
        %863 = vset.pattern.permute.xlu0 0
        %864 = vperm.xlu0 %863, %v842
        %v865 = vpop.permute.xlu0 %864
        %868 = vset.pattern.permute.xlu0 0
        %869 = vperm.xlu0 %868, %v843
        %v870 = vpop.permute.xlu0 %869
        %873 = vset.pattern.permute.xlu0 0
        %874 = vperm.xlu0 %873, %v844
        %v875 = vpop.permute.xlu0 %874
        %878 = vset.pattern.permute.xlu0 0
        %879 = vperm.xlu0 %878, %v845
        %v880 = vpop.permute.xlu0 %879
        %883 = vset.pattern.permute.xlu0 0
        %884 = vperm.xlu0 %883, %v846
        %v885 = vpop.permute.xlu0 %884
        %v903 = vunpack.c.l.b16 %v823
        %v904 = vunpack.c.h.b16 %v823
        %v905 = vunpack.c.l.b16 %v824
        %v906 = vunpack.c.l.b16 %v825
        %v907 = vunpack.c.h.b16 %v825
        %v908 = vunpack.c.l.b16 %v826
        %v909 = vunpack.c.l.b16 %v827
        %v910 = vunpack.c.h.b16 %v827
        %v911 = vunpack.c.l.b16 %v828
        %v912 = vunpack.c.l.b16 %v829
        %v913 = vunpack.c.h.b16 %v829
        %v914 = vunpack.c.l.b16 %v830
        %v915 = vunpack.c.l.b16 %v831
        %v916 = vunpack.c.h.b16 %v831
        %v917 = vunpack.c.l.b16 %v832
        %v918 = vunpack.c.l.b16 %v833
        %v919 = vunpack.c.h.b16 %v833
        %v920 = vunpack.c.l.b16 %v834
        %v921 = vunpack.c.l.b16 %v835
        %v922 = vunpack.c.h.b16 %v835
        %v923 = vunpack.c.l.b16 %v836
        %v924 = vunpack.c.l.b16 %v837
        %v925 = vunpack.c.h.b16 %v837
        %v926 = vunpack.c.l.b16 %v838
        %v927 = vpack.c.b16 %v906, %v903
        %v928 = vpack.c.b16 %v907, %v904
        %v929 = vpack.c.b16 %v908, %v905
        %v930 = vpack.c.b16 %v912, %v909
        %v931 = vpack.c.b16 %v913, %v910
        %v932 = vpack.c.b16 %v914, %v911
        %v933 = vpack.c.b16 %v918, %v915
        %v934 = vpack.c.b16 %v919, %v916
        %v935 = vpack.c.b16 %v920, %v917
        %v936 = vpack.c.b16 %v924, %v921
        %v937 = vpack.c.b16 %v925, %v922
        %v938 = vpack.c.b16 %v926, %v923
        %vm947 = vcmask 359424
        %v949 = vsel %vm947, %v929, 0
        %v952 = vsel %vm947, %v932, 0
        %v955 = vsel %vm947, %v935, 0
        %v958 = vsel %vm947, %v938, 0
        %v961 = vsel %vm947, %v813, 0
        %v964 = vsel %vm947, %v816, 0
        %v967 = vsel %vm947, %v819, 0
        %v970 = vsel %vm947, %v822, 0
        %972 = vmatprep.subr.bf16.mxu0 0
        %973 = vmatpush1.bf16.xpose.msra.mxu0 0
        %974 = vmatprep.subr.bf16.mxu0 0
        %975 = vmatpush1.bf16.xpose.msra.mxu0 0
        %976 = vmatprep.subr.bf16.mxu0 0
        %977 = vmatpush1.bf16.xpose.msra.mxu0 0
        %978 = vmatprep.subr.bf16.mxu0 0
        %979 = vmatpush1.bf16.xpose.msra.mxu0 0
        %980 = vmatprep.subr.bf16.mxu0 %v821
        %981 = vmatpush1.bf16.xpose.msra.mxu0 %v820
        %982 = vmatprep.subr.bf16.mxu0 %v818
        %983 = vmatpush1.bf16.xpose.msra.mxu0 %v817
        %984 = vmatprep.subr.bf16.mxu0 %v815
        %985 = vmatpush1.bf16.xpose.msra.mxu0 %v814
        %986 = vmatprep.subr.bf16.mxu0 %v812
        %987 = vmatpush1.bf16.xpose.msra.mxu0 %v811
        %988 = vmatprep.subr.bf16.mxu0 0
        %989 = vmatpush2.bf16.xpose.msra.mxu0 0
        %990 = vmatprep.subr.bf16.mxu0 0
        %991 = vmatpush2.bf16.xpose.msra.mxu0 0
        %992 = vmatprep.subr.bf16.mxu0 0
        %993 = vmatpush2.bf16.xpose.msra.mxu0 0
        %994 = vmatprep.subr.bf16.mxu0 0
        %995 = vmatpush2.bf16.xpose.msra.mxu0 0
        %996 = vmatprep.subr.bf16.mxu0 0
        %997 = vmatpush2.bf16.xpose.msra.mxu0 0
        %998 = vmatprep.subr.bf16.mxu0 0
        %999 = vmatpush2.bf16.xpose.msra.mxu0 0
        %1000 = vmatprep.subr.bf16.mxu0 0
        %1001 = vmatpush2.bf16.xpose.msra.mxu0 0
        %1002 = vmatprep.subr.bf16.mxu0 0
        %1003 = vmatpush2.bf16.xpose.msra.mxu0 0
        %1004 = vmatprep.mubr.bf16.mxu0 %v928
        %1005 = vmatmul.mubr.bf16.gmra.mxu0 %v927
        %v1006 = vpop.f32.mrf.mxu0
        %v1007 = vadd.f32 %v850, %v1006
        %v1008 = vpop.f32.mrf.mxu0
        %v1009 = vpop.f32.mrf.mxu0
        %v1010 = vadd.f32 %v855, %v1009
        %v1011 = vpop.f32.mrf.mxu0
        %1012 = vmatprep.mubr.bf16.mxu0 %v931
        %1013 = vmatmul.mubr.bf16.gmra.mxu0 %v930
        %v1014 = vpop.f32.mrf.mxu0
        %v1015 = vadd.f32 %v860, %v1014
        %v1016 = vpop.f32.mrf.mxu0
        %v1017 = vpop.f32.mrf.mxu0
        %v1018 = vadd.f32 %v865, %v1017
        %v1019 = vpop.f32.mrf.mxu0
        %1020 = vmatprep.mubr.bf16.mxu0 %v934
        %1021 = vmatmul.mubr.bf16.gmra.mxu0 %v933
        %v1022 = vpop.f32.mrf.mxu0
        %v1023 = vadd.f32 %v870, %v1022
        %v1024 = vpop.f32.mrf.mxu0
        %v1025 = vpop.f32.mrf.mxu0
        %v1026 = vadd.f32 %v875, %v1025
        %v1027 = vpop.f32.mrf.mxu0
        %1028 = vmatprep.mubr.bf16.mxu0 %v937
        %1029 = vmatmul.mubr.bf16.gmra.mxu0 %v936
        %v1030 = vpop.f32.mrf.mxu0
        %v1031 = vadd.f32 %v880, %v1030
        %v1032 = vpop.f32.mrf.mxu0
        %v1033 = vpop.f32.mrf.mxu0
        %v1034 = vadd.f32 %v885, %v1033
        %v1035 = vpop.f32.mrf.mxu0
        %1036 = vdwg.mxu0
        %1037 = vmatprep.subr.bf16.mxu0 0
        %1038 = vmatpush1.bf16.xpose.msra.mxu0 0
        %1039 = vmatprep.subr.bf16.mxu0 0
        %1040 = vmatpush1.bf16.xpose.msra.mxu0 0
        %1041 = vmatprep.subr.bf16.mxu0 0
        %1042 = vmatpush1.bf16.xpose.msra.mxu0 0
        %1043 = vmatprep.subr.bf16.mxu0 0
        %1044 = vmatpush1.bf16.xpose.msra.mxu0 0
        %1045 = vmatprep.subr.bf16.mxu0 0
        %1046 = vmatpush1.bf16.xpose.msra.mxu0 %v970
        %1047 = vmatprep.subr.bf16.mxu0 0
        %1048 = vmatpush1.bf16.xpose.msra.mxu0 %v967
        %1049 = vmatprep.subr.bf16.mxu0 0
        %1050 = vmatpush1.bf16.xpose.msra.mxu0 %v964
        %1051 = vmatprep.subr.bf16.mxu0 0
        %1052 = vmatpush1.bf16.xpose.msra.mxu0 %v961
        %1053 = vmatprep.subr.bf16.mxu0 0
        %1054 = vmatpush2.bf16.xpose.msra.mxu0 0
        %1055 = vmatprep.subr.bf16.mxu0 0
        %1056 = vmatpush2.bf16.xpose.msra.mxu0 0
        %1057 = vmatprep.subr.bf16.mxu0 0
        %1058 = vmatpush2.bf16.xpose.msra.mxu0 0
        %1059 = vmatprep.subr.bf16.mxu0 0
        %1060 = vmatpush2.bf16.xpose.msra.mxu0 0
        %1061 = vmatprep.subr.bf16.mxu0 0
        %1062 = vmatpush2.bf16.xpose.msra.mxu0 0
        %1063 = vmatprep.subr.bf16.mxu0 0
        %1064 = vmatpush2.bf16.xpose.msra.mxu0 0
        %1065 = vmatprep.subr.bf16.mxu0 0
        %1066 = vmatpush2.bf16.xpose.msra.mxu0 0
        %1067 = vmatprep.subr.bf16.mxu0 0
        %1068 = vmatpush2.bf16.xpose.msra.mxu0 0
        %1069 = vmatprep.mubr.bf16.mxu0 0
        %1070 = vmatmul.mubr.bf16.gmra.mxu0 %v949
        %v1071 = vpop.f32.mrf.mxu0
        %v1072 = vadd.f32 %v1007, %v1071
        %v1073 = vpop.f32.mrf.mxu0
        %v1074 = vpop.f32.mrf.mxu0
        %v1075 = vadd.f32 %v1010, %v1074
        %v1076 = vpop.f32.mrf.mxu0
        %1077 = vmatprep.mubr.bf16.mxu0 0
        %1078 = vmatmul.mubr.bf16.gmra.mxu0 %v952
        %v1079 = vpop.f32.mrf.mxu0
        %v1080 = vadd.f32 %v1015, %v1079
        %v1081 = vpop.f32.mrf.mxu0
        %v1082 = vpop.f32.mrf.mxu0
        %v1083 = vadd.f32 %v1018, %v1082
        %v1084 = vpop.f32.mrf.mxu0
        %1085 = vmatprep.mubr.bf16.mxu0 0
        %1086 = vmatmul.mubr.bf16.gmra.mxu0 %v955
        %v1087 = vpop.f32.mrf.mxu0
        %v1088 = vadd.f32 %v1023, %v1087
        %v1089 = vpop.f32.mrf.mxu0
        %v1090 = vpop.f32.mrf.mxu0
        %v1091 = vadd.f32 %v1026, %v1090
        %v1092 = vpop.f32.mrf.mxu0
        %1093 = vmatprep.mubr.bf16.mxu0 0
        %1094 = vmatmul.mubr.bf16.gmra.mxu0 %v958
        %v1095 = vpop.f32.mrf.mxu0
        %v1096 = vadd.f32 %v1031, %v1095
        %v1097 = vpop.f32.mrf.mxu0
        %v1098 = vpop.f32.mrf.mxu0
        %v1099 = vadd.f32 %v1034, %v1098
        %v1100 = vpop.f32.mrf.mxu0
        %1101 = vdwg.mxu0
        %v1102 = vmax.f32 %v1072, 0.0
        %v1103 = vmax.f32 %v1075, 0.0
        %v1104 = vmax.f32 %v1080, 0.0
        %v1105 = vmax.f32 %v1083, 0.0
        %v1106 = vmax.f32 %v1088, 0.0
        %v1107 = vmax.f32 %v1091, 0.0
        %v1108 = vmax.f32 %v1096, 0.0
        %v1109 = vmax.f32 %v1099, 0.0
        %1110 = vst [vmem:[#allocation3] sm:$0xff] 0.0
        %1111 = vst [vmem:[#allocation3 + $0x8] sm:$0xff] 0.0
        %1112 = vst.msk [vmem:[#allocation3 + $0x10] sm:$0xff] %vm412, 0.0
        %1113 = vst [vmem:[#allocation3 + $0x18] sm:$0xff] 0.0
        %1114 = vst [vmem:[#allocation3 + $0x20] sm:$0xff] 0.0
        %1115 = vst.msk [vmem:[#allocation3 + $0x28] sm:$0xff] %vm412, 0.0
        %1116 = vst [vmem:[#allocation3 + $0x30] sm:$0xff] 0.0
        %1117 = vst [vmem:[#allocation3 + $0x38] sm:$0xff] 0.0
        %1118 = vst.msk [vmem:[#allocation3 + $0x40] sm:$0xff] %vm412, 0.0
        %1119 = vst [vmem:[#allocation3 + $0x48] sm:$0xff] 0.0
        %1120 = vst [vmem:[#allocation3 + $0x50] sm:$0xff] 0.0
        %1121 = vst.msk [vmem:[#allocation3 + $0x58] sm:$0xff] %vm412, 0.0
        %1122 = vst [vmem:[#allocation3 + $0x60] sm:$0xff] 0.0
        %1123 = vst [vmem:[#allocation3 + $0x68] sm:$0xff] 0.0
        %1124 = vst.msk [vmem:[#allocation3 + $0x70] sm:$0xff] %vm412, 0.0
        %1125 = vst [vmem:[#allocation3 + $0x78] sm:$0xff] 0.0
        %1126 = vst [vmem:[#allocation3 + $0x80] sm:$0xff] 0.0
        %1127 = vst.msk [vmem:[#allocation3 + $0x88] sm:$0xff] %vm412, 0.0
        %1128 = vst [vmem:[#allocation3 + $0x90] sm:$0xff] 0.0
        %1129 = vst [vmem:[#allocation3 + $0x98] sm:$0xff] 0.0
        %1130 = vst.msk [vmem:[#allocation3 + $0xa0] sm:$0xff] %vm412, 0.0
        %1131 = vst [vmem:[#allocation3 + $0xa8] sm:$0xf] 0.0
        %1132 = vst [vmem:[#allocation3 + $0xb0] sm:$0xf] 0.0
        %vm1133 = vcmask 871424
        %1134 = vst.msk [vmem:[#allocation3 + $0xb8] sm:$0xf] %vm1133, 0.0
        %1143 = vrot.lane.b32.xlu0 %v1102, 22
        %v1144 = vpop.permute.xlu0 %1143
        %1145 = vrot.lane.b32.xlu0 %v1103, 22
        %v1146 = vpop.permute.xlu0 %1145
        %1147 = vrot.lane.b32.xlu0 %v1104, 22
        %v1148 = vpop.permute.xlu0 %1147
        %1149 = vrot.lane.b32.xlu0 %v1105, 22
        %v1150 = vpop.permute.xlu0 %1149
        %1151 = vrot.lane.b32.xlu0 %v1106, 22
        %v1152 = vpop.permute.xlu0 %1151
        %1153 = vrot.lane.b32.xlu0 %v1107, 22
        %v1154 = vpop.permute.xlu0 %1153
        %1155 = vrot.lane.b32.xlu0 %v1108, 22
        %v1156 = vpop.permute.xlu0 %1155
        %1157 = vrot.lane.b32.xlu0 %v1109, 22
        %v1158 = vpop.permute.xlu0 %1157
        %vm1167 = vcmask 695472
        %1168 = vst.msk [vmem:[#allocation3 + $0x8] sm:$0xff] %vm1167, %v1144
        %1169 = vst.msk [vmem:[#allocation3 + $0x20] sm:$0xff] %vm1167, %v1146
        %1170 = vst.msk [vmem:[#allocation3 + $0x38] sm:$0xff] %vm1167, %v1148
        %1171 = vst.msk [vmem:[#allocation3 + $0x50] sm:$0xff] %vm1167, %v1150
        %1172 = vst.msk [vmem:[#allocation3 + $0x68] sm:$0xff] %vm1167, %v1152
        %1173 = vst.msk [vmem:[#allocation3 + $0x80] sm:$0xff] %vm1167, %v1154
        %1174 = vst.msk [vmem:[#allocation3 + $0x98] sm:$0xff] %vm1167, %v1156
        %vm1175 = vcmask 691376
        %1176 = vst.msk [vmem:[#allocation3 + $0xb0] sm:$0xf] %vm1175, %v1158
        %v1177 = vld [vmem:[%s3] sm:$0xf]
        %v1178 = vld [vmem:[%s3 + $0x4] sm:$0xf]
        %v1179 = vld [vmem:[%s3 + $0x8] sm:$0xf]
        %v1180 = vld [vmem:[%s3 + $0xc] sm:$0xf]
        %v1181 = vld [vmem:[%s3 + $0x10] sm:$0xf]
        %v1182 = vld [vmem:[%s3 + $0x14] sm:$0xf]
        %v1183 = vld [vmem:[%s3 + $0x18] sm:$0xf]
        %v1184 = vld [vmem:[%s3 + $0x1c] sm:$0xf]
        %v1185 = vld [vmem:[%s3 + $0x20] sm:$0xf]
        %v1186 = vld [vmem:[%s3 + $0x24] sm:$0xf]
        %v1187 = vld [vmem:[%s3 + $0x28] sm:$0xf]
        %v1188 = vld [vmem:[%s3 + $0x2c] sm:$0xf]
        %v1189 = vld [vmem:[%s3 + $0x30] sm:$0xf]
        %v1190 = vld [vmem:[%s3 + $0x34] sm:$0xf]
        %v1191 = vld [vmem:[%s3 + $0x38] sm:$0xf]
        %v1192 = vld [vmem:[%s3 + $0x3c] sm:$0xf]
        %v1193 = vld [vmem:[%s3 + $0x40] sm:$0xf]
        %v1194 = vld [vmem:[%s3 + $0x44] sm:$0xf]
        %v1195 = vld [vmem:[%s3 + $0x48] sm:$0xf]
        %v1196 = vld [vmem:[%s3 + $0x4c] sm:$0xf]
        %v1197 = vld [vmem:[%s3 + $0x50] sm:$0xf]
        %v1198 = vld [vmem:[%s3 + $0x54] sm:$0xf]
        %v1199 = vld [vmem:[%s3 + $0x58] sm:$0xf]
        %v1200 = vld [vmem:[%s3 + $0x5c] sm:$0xf]
        %v1201 = vld [vmem:[%s3 + $0x60] sm:$0xf]
        %v1202 = vld [vmem:[%s3 + $0x64] sm:$0xf]
        %v1203 = vld [vmem:[%s3 + $0x68] sm:$0xf]
        %v1204 = vld [vmem:[%s3 + $0x6c] sm:$0xf]
        %v1205 = vld [vmem:[%s3 + $0x70] sm:$0xf]
        %v1206 = vld [vmem:[%s3 + $0x74] sm:$0xf]
        %v1207 = vld [vmem:[%s3 + $0x78] sm:$0xf]
        %v1208 = vld [vmem:[%s3 + $0x7c] sm:$0xf]
        %v1209 = vld [vmem:[%s3 + $0x80] sm:$0xf]
        %v1210 = vld [vmem:[%s3 + $0x84] sm:$0xf]
        %v1211 = vld [vmem:[%s3 + $0x88] sm:$0xf]
        %v1212 = vld [vmem:[%s3 + $0x8c] sm:$0xf]
        %v1213 = vld [vmem:[%s3 + $0x90] sm:$0xf]
        %v1214 = vld [vmem:[%s3 + $0x94] sm:$0x3]
        %v1215 = vld [vmem:[#allocation3] sm:$0xff]
        %v1216 = vld [vmem:[#allocation3 + $0x8] sm:$0xff]
        %v1217 = vld [vmem:[#allocation3 + $0x10] sm:$0xff]
        %v1218 = vld [vmem:[#allocation3 + $0x18] sm:$0xff]
        %v1219 = vld [vmem:[#allocation3 + $0x20] sm:$0xff]
        %v1220 = vld [vmem:[#allocation3 + $0x28] sm:$0xff]
        %v1221 = vld [vmem:[#allocation3 + $0x30] sm:$0xff]
        %v1222 = vld [vmem:[#allocation3 + $0x38] sm:$0xff]
        %v1223 = vld [vmem:[#allocation3 + $0x40] sm:$0xff]
        %v1224 = vld [vmem:[#allocation3 + $0x48] sm:$0xff]
        %v1225 = vld [vmem:[#allocation3 + $0x50] sm:$0xff]
        %v1226 = vld [vmem:[#allocation3 + $0x58] sm:$0xff]
        %v1227 = vld [vmem:[#allocation3 + $0x60] sm:$0xff]
        %v1228 = vld [vmem:[#allocation3 + $0x68] sm:$0xff]
        %v1229 = vld [vmem:[#allocation3 + $0x70] sm:$0xff]
        %v1230 = vld [vmem:[#allocation3 + $0x78] sm:$0xff]
        %v1231 = vld [vmem:[#allocation3 + $0x80] sm:$0xff]
        %v1232 = vld [vmem:[#allocation3 + $0x88] sm:$0xff]
        %v1233 = vld [vmem:[#allocation3 + $0x90] sm:$0xff]
        %v1234 = vld [vmem:[#allocation3 + $0x98] sm:$0xff]
        %v1235 = vld [vmem:[#allocation3 + $0xa0] sm:$0xff]
        %v1236 = vld [vmem:[#allocation3 + $0xa8] sm:$0xf]
        %v1237 = vld [vmem:[#allocation3 + $0xb0] sm:$0xf]
        %v1238 = vld [vmem:[#allocation3 + $0xb8] sm:$0xf]
        %v1239 = vpack.c.bf16 %v1218, %v1215
        %v1240 = vpack.c.bf16 %v1219, %v1216
        %v1241 = vpack.c.bf16 %v1220, %v1217
        %v1242 = vpack.c.bf16 %v1224, %v1221
        %v1243 = vpack.c.bf16 %v1225, %v1222
        %v1244 = vpack.c.bf16 %v1226, %v1223
        %v1245 = vpack.c.bf16 %v1230, %v1227
        %v1246 = vpack.c.bf16 %v1231, %v1228
        %v1247 = vpack.c.bf16 %v1232, %v1229
        %v1248 = vpack.c.bf16 %v1236, %v1233
        %v1249 = vpack.c.bf16 %v1237, %v1234
        %v1250 = vpack.c.bf16 %v1238, %v1235
        %v1289 = vunpack.c.l.b16 %v1177
        %v1290 = vunpack.c.l.b16 %v1178
        %v1291 = vunpack.c.l.b16 %v1179
        %v1292 = vunpack.c.l.b16 %v1180
        %v1293 = vunpack.c.l.b16 %v1181
        %v1294 = vunpack.c.l.b16 %v1182
        %v1295 = vunpack.c.l.b16 %v1183
        %v1296 = vunpack.c.l.b16 %v1184
        %v1297 = vunpack.c.l.b16 %v1185
        %v1298 = vunpack.c.l.b16 %v1186
        %v1299 = vunpack.c.l.b16 %v1187
        %v1300 = vunpack.c.l.b16 %v1188
        %v1301 = vunpack.c.l.b16 %v1189
        %v1302 = vunpack.c.l.b16 %v1190
        %v1303 = vunpack.c.l.b16 %v1191
        %v1304 = vunpack.c.l.b16 %v1192
        %v1305 = vunpack.c.l.b16 %v1193
        %v1306 = vunpack.c.l.b16 %v1194
        %v1307 = vunpack.c.l.b16 %v1195
        %v1308 = vunpack.c.l.b16 %v1196
        %v1309 = vunpack.c.l.b16 %v1197
        %v1310 = vunpack.c.l.b16 %v1198
        %v1311 = vunpack.c.l.b16 %v1199
        %v1312 = vunpack.c.l.b16 %v1200
        %v1313 = vunpack.c.l.b16 %v1201
        %v1314 = vunpack.c.l.b16 %v1202
        %v1315 = vunpack.c.l.b16 %v1203
        %v1316 = vunpack.c.l.b16 %v1204
        %v1317 = vunpack.c.l.b16 %v1205
        %v1318 = vunpack.c.l.b16 %v1206
        %v1319 = vunpack.c.l.b16 %v1207
        %v1320 = vunpack.c.l.b16 %v1208
        %v1321 = vunpack.c.l.b16 %v1209
        %v1322 = vunpack.c.l.b16 %v1210
        %v1323 = vunpack.c.l.b16 %v1211
        %v1324 = vunpack.c.l.b16 %v1212
        %v1325 = vunpack.c.l.b16 %v1213
        %v1326 = vunpack.c.l.b16 %v1214
        %v1327 = vpack.c.b16 %v1290, %v1289
        %v1328 = vpack.c.b16 %v1292, %v1291
        %v1329 = vpack.c.b16 %v1294, %v1293
        %v1330 = vpack.c.b16 %v1296, %v1295
        %v1331 = vpack.c.b16 %v1298, %v1297
        %v1332 = vpack.c.b16 %v1300, %v1299
        %v1333 = vpack.c.b16 %v1302, %v1301
        %v1334 = vpack.c.b16 %v1304, %v1303
        %v1335 = vpack.c.b16 %v1306, %v1305
        %v1336 = vpack.c.b16 %v1308, %v1307
        %v1337 = vpack.c.b16 %v1310, %v1309
        %v1338 = vpack.c.b16 %v1312, %v1311
        %v1339 = vpack.c.b16 %v1314, %v1313
        %v1340 = vpack.c.b16 %v1316, %v1315
        %v1341 = vpack.c.b16 %v1318, %v1317
        %v1342 = vpack.c.b16 %v1320, %v1319
        %v1343 = vpack.c.b16 %v1322, %v1321
        %v1344 = vpack.c.b16 %v1324, %v1323
        %v1345 = vpack.c.b16 %v1326, %v1325
        %vm1346 = vcmask 490496
        %v1348 = vsel %vm1346, %v1327, 0
        %v1351 = vsel %vm1346, %v1328, 0
        %v1354 = vsel %vm1346, %v1329, 0
        %v1357 = vsel %vm1346, %v1330, 0
        %v1360 = vsel %vm1346, %v1331, 0
        %v1363 = vsel %vm1346, %v1332, 0
        %v1366 = vsel %vm1346, %v1333, 0
        %v1369 = vsel %vm1346, %v1334, 0
        %v1372 = vsel %vm1346, %v1335, 0
        %v1375 = vsel %vm1346, %v1336, 0
        %v1378 = vsel %vm1346, %v1337, 0
        %v1381 = vsel %vm1346, %v1338, 0
        %v1384 = vsel %vm1346, %v1339, 0
        %v1387 = vsel %vm1346, %v1340, 0
        %v1390 = vsel %vm1346, %v1341, 0
        %v1393 = vsel %vm1346, %v1342, 0
        %v1396 = vsel %vm1346, %v1343, 0
        %v1399 = vsel %vm1346, %v1344, 0
        %v1402 = vsel %vm1346, %v1345, 0
        %vm1404 = vcmask 1045504
        %v1406 = vsel %vm1404, %v1248, 0
        %v1409 = vsel %vm1404, %v1249, 0
        %v1412 = vsel %vm1404, %v1250, 0
        %1414 = vmatprep.subr.bf16.mxu0 0
        %1415 = vmatpush1.bf16.msra.mxu0 0
        %1416 = vmatprep.subr.bf16.mxu0 0
        %1417 = vmatpush1.bf16.msra.mxu0 0
        %1418 = vmatprep.subr.bf16.mxu0 0
        %1419 = vmatpush1.bf16.msra.mxu0 0
        %1420 = vmatprep.subr.bf16.mxu0 0
        %1421 = vmatpush1.bf16.msra.mxu0 0
        %1422 = vmatprep.subr.bf16.mxu0 %v1409
        %1423 = vmatpush1.bf16.msra.mxu0 %v1406
        %1424 = vmatprep.subr.bf16.mxu0 %v1246
        %1425 = vmatpush1.bf16.msra.mxu0 %v1245
        %1426 = vmatprep.subr.bf16.mxu0 %v1243
        %1427 = vmatpush1.bf16.msra.mxu0 %v1242
        %1428 = vmatprep.subr.bf16.mxu0 %v1240
        %1429 = vmatpush1.bf16.msra.mxu0 %v1239
        %1430 = vmatprep.subr.bf16.mxu0 0
        %1431 = vmatpush2.bf16.msra.mxu0 0
        %1432 = vmatprep.subr.bf16.mxu0 0
        %1433 = vmatpush2.bf16.msra.mxu0 0
        %1434 = vmatprep.subr.bf16.mxu0 0
        %1435 = vmatpush2.bf16.msra.mxu0 0
        %1436 = vmatprep.subr.bf16.mxu0 0
        %1437 = vmatpush2.bf16.msra.mxu0 0
        %1438 = vmatprep.subr.bf16.mxu0 0
        %1439 = vmatpush2.bf16.msra.mxu0 0
        %1440 = vmatprep.subr.bf16.mxu0 0
        %1441 = vmatpush2.bf16.msra.mxu0 0
        %1442 = vmatprep.subr.bf16.mxu0 0
        %1443 = vmatpush2.bf16.msra.mxu0 0
        %1444 = vmatprep.subr.bf16.mxu0 0
        %1445 = vmatpush2.bf16.msra.mxu0 0
        %1446 = vmatprep.mubr.bf16.mxu0 0
        %1447 = vmatmul.mubr.bf16.gmra.mxu0 %v1348
        %v1448 = vpop.f32.mrf.mxu0
        %v1449 = vadd.f32 0.0, %v1448
        %v1450 = vpop.f32.mrf.mxu0
        %v1451 = vadd.f32 0.0, %v1450
        %v1452 = vpop.f32.mrf.mxu0
        %v1453 = vadd.f32 0.0, %v1452
        %v1454 = vpop.f32.mrf.mxu0
        %v1455 = vadd.f32 0.0, %v1454
        %1456 = vmatprep.mubr.bf16.mxu0 0
        %1457 = vmatmul.mubr.bf16.gmra.mxu0 %v1351
        %v1458 = vpop.f32.mrf.mxu0
        %v1459 = vadd.f32 0.0, %v1458
        %v1460 = vpop.f32.mrf.mxu0
        %v1461 = vadd.f32 0.0, %v1460
        %v1462 = vpop.f32.mrf.mxu0
        %v1463 = vadd.f32 0.0, %v1462
        %v1464 = vpop.f32.mrf.mxu0
        %v1465 = vadd.f32 0.0, %v1464
        %1466 = vmatprep.mubr.bf16.mxu0 0
        %1467 = vmatmul.mubr.bf16.gmra.mxu0 %v1354
        %v1468 = vpop.f32.mrf.mxu0
        %v1469 = vadd.f32 0.0, %v1468
        %v1470 = vpop.f32.mrf.mxu0
        %v1471 = vadd.f32 0.0, %v1470
        %v1472 = vpop.f32.mrf.mxu0
        %v1473 = vadd.f32 0.0, %v1472
        %v1474 = vpop.f32.mrf.mxu0
        %v1475 = vadd.f32 0.0, %v1474
        %1476 = vmatprep.mubr.bf16.mxu0 0
        %1477 = vmatmul.mubr.bf16.gmra.mxu0 %v1357
        %v1478 = vpop.f32.mrf.mxu0
        %v1479 = vadd.f32 0.0, %v1478
        %v1480 = vpop.f32.mrf.mxu0
        %v1481 = vadd.f32 0.0, %v1480
        %v1482 = vpop.f32.mrf.mxu0
        %v1483 = vadd.f32 0.0, %v1482
        %v1484 = vpop.f32.mrf.mxu0
        %v1485 = vadd.f32 0.0, %v1484
        %1486 = vmatprep.mubr.bf16.mxu0 0
        %1487 = vmatmul.mubr.bf16.gmra.mxu0 %v1360
        %v1488 = vpop.f32.mrf.mxu0
        %v1489 = vadd.f32 0.0, %v1488
        %v1490 = vpop.f32.mrf.mxu0
        %v1491 = vadd.f32 0.0, %v1490
        %v1492 = vpop.f32.mrf.mxu0
        %v1493 = vadd.f32 0.0, %v1492
        %v1494 = vpop.f32.mrf.mxu0
        %v1495 = vadd.f32 0.0, %v1494
        %1496 = vmatprep.mubr.bf16.mxu0 0
        %1497 = vmatmul.mubr.bf16.gmra.mxu0 %v1363
        %v1498 = vpop.f32.mrf.mxu0
        %v1499 = vadd.f32 0.0, %v1498
        %v1500 = vpop.f32.mrf.mxu0
        %v1501 = vadd.f32 0.0, %v1500
        %v1502 = vpop.f32.mrf.mxu0
        %v1503 = vadd.f32 0.0, %v1502
        %v1504 = vpop.f32.mrf.mxu0
        %v1505 = vadd.f32 0.0, %v1504
        %1506 = vmatprep.mubr.bf16.mxu0 0
        %1507 = vmatmul.mubr.bf16.gmra.mxu0 %v1366
        %v1508 = vpop.f32.mrf.mxu0
        %v1509 = vadd.f32 0.0, %v1508
        %v1510 = vpop.f32.mrf.mxu0
        %v1511 = vadd.f32 0.0, %v1510
        %v1512 = vpop.f32.mrf.mxu0
        %v1513 = vadd.f32 0.0, %v1512
        %v1514 = vpop.f32.mrf.mxu0
        %v1515 = vadd.f32 0.0, %v1514
        %1516 = vmatprep.mubr.bf16.mxu0 0
        %1517 = vmatmul.mubr.bf16.gmra.mxu0 %v1369
        %v1518 = vpop.f32.mrf.mxu0
        %v1519 = vadd.f32 0.0, %v1518
        %v1520 = vpop.f32.mrf.mxu0
        %v1521 = vadd.f32 0.0, %v1520
        %v1522 = vpop.f32.mrf.mxu0
        %v1523 = vadd.f32 0.0, %v1522
        %v1524 = vpop.f32.mrf.mxu0
        %v1525 = vadd.f32 0.0, %v1524
        %1526 = vmatprep.mubr.bf16.mxu0 0
        %1527 = vmatmul.mubr.bf16.gmra.mxu0 %v1372
        %v1528 = vpop.f32.mrf.mxu0
        %v1529 = vadd.f32 0.0, %v1528
        %v1530 = vpop.f32.mrf.mxu0
        %v1531 = vadd.f32 0.0, %v1530
        %v1532 = vpop.f32.mrf.mxu0
        %v1533 = vadd.f32 0.0, %v1532
        %v1534 = vpop.f32.mrf.mxu0
        %v1535 = vadd.f32 0.0, %v1534
        %1536 = vmatprep.mubr.bf16.mxu0 0
        %1537 = vmatmul.mubr.bf16.gmra.mxu0 %v1375
        %v1538 = vpop.f32.mrf.mxu0
        %v1539 = vadd.f32 0.0, %v1538
        %v1540 = vpop.f32.mrf.mxu0
        %v1541 = vadd.f32 0.0, %v1540
        %v1542 = vpop.f32.mrf.mxu0
        %v1543 = vadd.f32 0.0, %v1542
        %v1544 = vpop.f32.mrf.mxu0
        %v1545 = vadd.f32 0.0, %v1544
        %1546 = vmatprep.mubr.bf16.mxu0 0
        %1547 = vmatmul.mubr.bf16.gmra.mxu0 %v1378
        %v1548 = vpop.f32.mrf.mxu0
        %v1549 = vadd.f32 0.0, %v1548
        %v1550 = vpop.f32.mrf.mxu0
        %v1551 = vadd.f32 0.0, %v1550
        %v1552 = vpop.f32.mrf.mxu0
        %v1553 = vadd.f32 0.0, %v1552
        %v1554 = vpop.f32.mrf.mxu0
        %v1555 = vadd.f32 0.0, %v1554
        %1556 = vmatprep.mubr.bf16.mxu0 0
        %1557 = vmatmul.mubr.bf16.gmra.mxu0 %v1381
        %v1558 = vpop.f32.mrf.mxu0
        %v1559 = vadd.f32 0.0, %v1558
        %v1560 = vpop.f32.mrf.mxu0
        %v1561 = vadd.f32 0.0, %v1560
        %v1562 = vpop.f32.mrf.mxu0
        %v1563 = vadd.f32 0.0, %v1562
        %v1564 = vpop.f32.mrf.mxu0
        %v1565 = vadd.f32 0.0, %v1564
        %1566 = vmatprep.mubr.bf16.mxu0 0
        %1567 = vmatmul.mubr.bf16.gmra.mxu0 %v1384
        %v1568 = vpop.f32.mrf.mxu0
        %v1569 = vadd.f32 0.0, %v1568
        %v1570 = vpop.f32.mrf.mxu0
        %v1571 = vadd.f32 0.0, %v1570
        %v1572 = vpop.f32.mrf.mxu0
        %v1573 = vadd.f32 0.0, %v1572
        %v1574 = vpop.f32.mrf.mxu0
        %v1575 = vadd.f32 0.0, %v1574
        %1576 = vmatprep.mubr.bf16.mxu0 0
        %1577 = vmatmul.mubr.bf16.gmra.mxu0 %v1387
        %v1578 = vpop.f32.mrf.mxu0
        %v1579 = vadd.f32 0.0, %v1578
        %v1580 = vpop.f32.mrf.mxu0
        %v1581 = vadd.f32 0.0, %v1580
        %v1582 = vpop.f32.mrf.mxu0
        %v1583 = vadd.f32 0.0, %v1582
        %v1584 = vpop.f32.mrf.mxu0
        %v1585 = vadd.f32 0.0, %v1584
        %1586 = vmatprep.mubr.bf16.mxu0 0
        %1587 = vmatmul.mubr.bf16.gmra.mxu0 %v1390
        %v1588 = vpop.f32.mrf.mxu0
        %v1589 = vadd.f32 0.0, %v1588
        %v1590 = vpop.f32.mrf.mxu0
        %v1591 = vadd.f32 0.0, %v1590
        %v1592 = vpop.f32.mrf.mxu0
        %v1593 = vadd.f32 0.0, %v1592
        %v1594 = vpop.f32.mrf.mxu0
        %v1595 = vadd.f32 0.0, %v1594
        %1596 = vmatprep.mubr.bf16.mxu0 0
        %1597 = vmatmul.mubr.bf16.gmra.mxu0 %v1393
        %v1598 = vpop.f32.mrf.mxu0
        %v1599 = vadd.f32 0.0, %v1598
        %v1600 = vpop.f32.mrf.mxu0
        %v1601 = vadd.f32 0.0, %v1600
        %v1602 = vpop.f32.mrf.mxu0
        %v1603 = vadd.f32 0.0, %v1602
        %v1604 = vpop.f32.mrf.mxu0
        %v1605 = vadd.f32 0.0, %v1604
        %1606 = vmatprep.mubr.bf16.mxu0 0
        %1607 = vmatmul.mubr.bf16.gmra.mxu0 %v1396
        %v1608 = vpop.f32.mrf.mxu0
        %v1609 = vadd.f32 0.0, %v1608
        %v1610 = vpop.f32.mrf.mxu0
        %v1611 = vadd.f32 0.0, %v1610
        %v1612 = vpop.f32.mrf.mxu0
        %v1613 = vadd.f32 0.0, %v1612
        %v1614 = vpop.f32.mrf.mxu0
        %v1615 = vadd.f32 0.0, %v1614
        %1616 = vmatprep.mubr.bf16.mxu0 0
        %1617 = vmatmul.mubr.bf16.gmra.mxu0 %v1399
        %v1618 = vpop.f32.mrf.mxu0
        %v1619 = vadd.f32 0.0, %v1618
        %v1620 = vpop.f32.mrf.mxu0
        %v1621 = vadd.f32 0.0, %v1620
        %v1622 = vpop.f32.mrf.mxu0
        %v1623 = vadd.f32 0.0, %v1622
        %v1624 = vpop.f32.mrf.mxu0
        %v1625 = vadd.f32 0.0, %v1624
        %1626 = vmatprep.mubr.bf16.mxu0 0
        %1627 = vmatmul.mubr.bf16.gmra.mxu0 %v1402
        %v1628 = vpop.f32.mrf.mxu0
        %v1629 = vadd.f32 0.0, %v1628
        %v1630 = vpop.f32.mrf.mxu0
        %v1631 = vadd.f32 0.0, %v1630
        %v1632 = vpop.f32.mrf.mxu0
        %v1633 = vadd.f32 0.0, %v1632
        %v1634 = vpop.f32.mrf.mxu0
        %v1635 = vadd.f32 0.0, %v1634
        %1636 = vdwg.mxu0
        %1637 = vmatprep.subr.bf16.mxu0 0
        %1638 = vmatpush1.bf16.msra.mxu0 0
        %1639 = vmatprep.subr.bf16.mxu0 0
        %1640 = vmatpush1.bf16.msra.mxu0 0
        %1641 = vmatprep.subr.bf16.mxu0 0
        %1642 = vmatpush1.bf16.msra.mxu0 0
        %1643 = vmatprep.subr.bf16.mxu0 0
        %1644 = vmatpush1.bf16.msra.mxu0 0
        %1645 = vmatprep.subr.bf16.mxu0 0
        %1646 = vmatpush1.bf16.msra.mxu0 %v1412
        %1647 = vmatprep.subr.bf16.mxu0 0
        %1648 = vmatpush1.bf16.msra.mxu0 %v1247
        %1649 = vmatprep.subr.bf16.mxu0 0
        %1650 = vmatpush1.bf16.msra.mxu0 %v1244
        %1651 = vmatprep.subr.bf16.mxu0 0
        %1652 = vmatpush1.bf16.msra.mxu0 %v1241
        %1653 = vmatprep.subr.bf16.mxu0 0
        %1654 = vmatpush2.bf16.msra.mxu0 0
        %1655 = vmatprep.subr.bf16.mxu0 0
        %1656 = vmatpush2.bf16.msra.mxu0 0
        %1657 = vmatprep.subr.bf16.mxu0 0
        %1658 = vmatpush2.bf16.msra.mxu0 0
        %1659 = vmatprep.subr.bf16.mxu0 0
        %1660 = vmatpush2.bf16.msra.mxu0 0
        %1661 = vmatprep.subr.bf16.mxu0 0
        %1662 = vmatpush2.bf16.msra.mxu0 0
        %1663 = vmatprep.subr.bf16.mxu0 0
        %1664 = vmatpush2.bf16.msra.mxu0 0
        %1665 = vmatprep.subr.bf16.mxu0 0
        %1666 = vmatpush2.bf16.msra.mxu0 0
        %1667 = vmatprep.subr.bf16.mxu0 0
        %1668 = vmatpush2.bf16.msra.mxu0 0
        %1669 = vmatprep.mubr.bf16.mxu0 0
        %1670 = vmatmul.mubr.bf16.gmra.mxu0 %v1348
        %v1671 = vpop.f32.mrf.mxu0
        %v1672 = vadd.f32 0.0, %v1671
        %v1673 = vpop.f32.mrf.mxu0
        %v1674 = vpop.f32.mrf.mxu0
        %v1675 = vadd.f32 0.0, %v1674
        %v1676 = vpop.f32.mrf.mxu0
        %1677 = vmatprep.mubr.bf16.mxu0 0
        %1678 = vmatmul.mubr.bf16.gmra.mxu0 %v1351
        %v1679 = vpop.f32.mrf.mxu0
        %v1680 = vadd.f32 0.0, %v1679
        %v1681 = vpop.f32.mrf.mxu0
        %v1682 = vpop.f32.mrf.mxu0
        %v1683 = vadd.f32 0.0, %v1682
        %v1684 = vpop.f32.mrf.mxu0
        %1685 = vmatprep.mubr.bf16.mxu0 0
        %1686 = vmatmul.mubr.bf16.gmra.mxu0 %v1354
        %v1687 = vpop.f32.mrf.mxu0
        %v1688 = vadd.f32 0.0, %v1687
        %v1689 = vpop.f32.mrf.mxu0
        %v1690 = vpop.f32.mrf.mxu0
        %v1691 = vadd.f32 0.0, %v1690
        %v1692 = vpop.f32.mrf.mxu0
        %1693 = vmatprep.mubr.bf16.mxu0 0
        %1694 = vmatmul.mubr.bf16.gmra.mxu0 %v1357
        %v1695 = vpop.f32.mrf.mxu0
        %v1696 = vadd.f32 0.0, %v1695
        %v1697 = vpop.f32.mrf.mxu0
        %v1698 = vpop.f32.mrf.mxu0
        %v1699 = vadd.f32 0.0, %v1698
        %v1700 = vpop.f32.mrf.mxu0
        %1701 = vmatprep.mubr.bf16.mxu0 0
        %1702 = vmatmul.mubr.bf16.gmra.mxu0 %v1360
        %v1703 = vpop.f32.mrf.mxu0
        %v1704 = vadd.f32 0.0, %v1703
        %v1705 = vpop.f32.mrf.mxu0
        %v1706 = vpop.f32.mrf.mxu0
        %v1707 = vadd.f32 0.0, %v1706
        %v1708 = vpop.f32.mrf.mxu0
        %1709 = vmatprep.mubr.bf16.mxu0 0
        %1710 = vmatmul.mubr.bf16.gmra.mxu0 %v1363
        %v1711 = vpop.f32.mrf.mxu0
        %v1712 = vadd.f32 0.0, %v1711
        %v1713 = vpop.f32.mrf.mxu0
        %v1714 = vpop.f32.mrf.mxu0
        %v1715 = vadd.f32 0.0, %v1714
        %v1716 = vpop.f32.mrf.mxu0
        %1717 = vmatprep.mubr.bf16.mxu0 0
        %1718 = vmatmul.mubr.bf16.gmra.mxu0 %v1366
        %v1719 = vpop.f32.mrf.mxu0
        %v1720 = vadd.f32 0.0, %v1719
        %v1721 = vpop.f32.mrf.mxu0
        %v1722 = vpop.f32.mrf.mxu0
        %v1723 = vadd.f32 0.0, %v1722
        %v1724 = vpop.f32.mrf.mxu0
        %1725 = vmatprep.mubr.bf16.mxu0 0
        %1726 = vmatmul.mubr.bf16.gmra.mxu0 %v1369
        %v1727 = vpop.f32.mrf.mxu0
        %v1728 = vadd.f32 0.0, %v1727
        %v1729 = vpop.f32.mrf.mxu0
        %v1730 = vpop.f32.mrf.mxu0
        %v1731 = vadd.f32 0.0, %v1730
        %v1732 = vpop.f32.mrf.mxu0
        %1733 = vmatprep.mubr.bf16.mxu0 0
        %1734 = vmatmul.mubr.bf16.gmra.mxu0 %v1372
        %v1735 = vpop.f32.mrf.mxu0
        %v1736 = vadd.f32 0.0, %v1735
        %v1737 = vpop.f32.mrf.mxu0
        %v1738 = vpop.f32.mrf.mxu0
        %v1739 = vadd.f32 0.0, %v1738
        %v1740 = vpop.f32.mrf.mxu0
        %1741 = vmatprep.mubr.bf16.mxu0 0
        %1742 = vmatmul.mubr.bf16.gmra.mxu0 %v1375
        %v1743 = vpop.f32.mrf.mxu0
        %v1744 = vadd.f32 0.0, %v1743
        %v1745 = vpop.f32.mrf.mxu0
        %v1746 = vpop.f32.mrf.mxu0
        %v1747 = vadd.f32 0.0, %v1746
        %v1748 = vpop.f32.mrf.mxu0
        %1749 = vmatprep.mubr.bf16.mxu0 0
        %1750 = vmatmul.mubr.bf16.gmra.mxu0 %v1378
        %v1751 = vpop.f32.mrf.mxu0
        %v1752 = vadd.f32 0.0, %v1751
        %v1753 = vpop.f32.mrf.mxu0
        %v1754 = vpop.f32.mrf.mxu0
        %v1755 = vadd.f32 0.0, %v1754
        %v1756 = vpop.f32.mrf.mxu0
        %1757 = vmatprep.mubr.bf16.mxu0 0
        %1758 = vmatmul.mubr.bf16.gmra.mxu0 %v1381
        %v1759 = vpop.f32.mrf.mxu0
        %v1760 = vadd.f32 0.0, %v1759
        %v1761 = vpop.f32.mrf.mxu0
        %v1762 = vpop.f32.mrf.mxu0
        %v1763 = vadd.f32 0.0, %v1762
        %v1764 = vpop.f32.mrf.mxu0
        %1765 = vmatprep.mubr.bf16.mxu0 0
        %1766 = vmatmul.mubr.bf16.gmra.mxu0 %v1384
        %v1767 = vpop.f32.mrf.mxu0
        %v1768 = vadd.f32 0.0, %v1767
        %v1769 = vpop.f32.mrf.mxu0
        %v1770 = vpop.f32.mrf.mxu0
        %v1771 = vadd.f32 0.0, %v1770
        %v1772 = vpop.f32.mrf.mxu0
        %1773 = vmatprep.mubr.bf16.mxu0 0
        %1774 = vmatmul.mubr.bf16.gmra.mxu0 %v1387
        %v1775 = vpop.f32.mrf.mxu0
        %v1776 = vadd.f32 0.0, %v1775
        %v1777 = vpop.f32.mrf.mxu0
        %v1778 = vpop.f32.mrf.mxu0
        %v1779 = vadd.f32 0.0, %v1778
        %v1780 = vpop.f32.mrf.mxu0
        %1781 = vmatprep.mubr.bf16.mxu0 0
        %1782 = vmatmul.mubr.bf16.gmra.mxu0 %v1390
        %v1783 = vpop.f32.mrf.mxu0
        %v1784 = vadd.f32 0.0, %v1783
        %v1785 = vpop.f32.mrf.mxu0
        %v1786 = vpop.f32.mrf.mxu0
        %v1787 = vadd.f32 0.0, %v1786
        %v1788 = vpop.f32.mrf.mxu0
        %1789 = vmatprep.mubr.bf16.mxu0 0
        %1790 = vmatmul.mubr.bf16.gmra.mxu0 %v1393
        %v1791 = vpop.f32.mrf.mxu0
        %v1792 = vadd.f32 0.0, %v1791
        %v1793 = vpop.f32.mrf.mxu0
        %v1794 = vpop.f32.mrf.mxu0
        %v1795 = vadd.f32 0.0, %v1794
        %v1796 = vpop.f32.mrf.mxu0
        %1797 = vmatprep.mubr.bf16.mxu0 0
        %1798 = vmatmul.mubr.bf16.gmra.mxu0 %v1396
        %v1799 = vpop.f32.mrf.mxu0
        %v1800 = vadd.f32 0.0, %v1799
        %v1801 = vpop.f32.mrf.mxu0
        %v1802 = vpop.f32.mrf.mxu0
        %v1803 = vadd.f32 0.0, %v1802
        %v1804 = vpop.f32.mrf.mxu0
        %1805 = vmatprep.mubr.bf16.mxu0 0
        %1806 = vmatmul.mubr.bf16.gmra.mxu0 %v1399
        %v1807 = vpop.f32.mrf.mxu0
        %v1808 = vadd.f32 0.0, %v1807
        %v1809 = vpop.f32.mrf.mxu0
        %v1810 = vpop.f32.mrf.mxu0
        %v1811 = vadd.f32 0.0, %v1810
        %v1812 = vpop.f32.mrf.mxu0
        %1813 = vmatprep.mubr.bf16.mxu0 0
        %1814 = vmatmul.mubr.bf16.gmra.mxu0 %v1402
        %v1815 = vpop.f32.mrf.mxu0
        %v1816 = vadd.f32 0.0, %v1815
        %v1817 = vpop.f32.mrf.mxu0
        %v1818 = vpop.f32.mrf.mxu0
        %v1819 = vadd.f32 0.0, %v1818
        %v1820 = vpop.f32.mrf.mxu0
        %1821 = vdwg.mxu0
        %1822 = vst [vmem:[#allocation4] sm:$0xff] %v1449
        %1823 = vst [vmem:[#allocation4 + $0x8] sm:$0xff] %v1451
        %1824 = vst.msk [vmem:[#allocation4 + $0x10] sm:$0xff] %vm412, %v1672
        %1825 = vst [vmem:[#allocation4 + $0x18] sm:$0xff] %v1453
        %1826 = vst [vmem:[#allocation4 + $0x20] sm:$0xff] %v1455
        %1827 = vst.msk [vmem:[#allocation4 + $0x28] sm:$0xff] %vm412, %v1675
        %1828 = vst [vmem:[#allocation4 + $0x30] sm:$0xff] %v1459
        %1829 = vst [vmem:[#allocation4 + $0x38] sm:$0xff] %v1461
        %1830 = vst.msk [vmem:[#allocation4 + $0x40] sm:$0xff] %vm412, %v1680
        %1831 = vst [vmem:[#allocation4 + $0x48] sm:$0xff] %v1463
        %1832 = vst [vmem:[#allocation4 + $0x50] sm:$0xff] %v1465
        %1833 = vst.msk [vmem:[#allocation4 + $0x58] sm:$0xff] %vm412, %v1683
        %1834 = vst [vmem:[#allocation4 + $0x60] sm:$0xff] %v1469
        %1835 = vst [vmem:[#allocation4 + $0x68] sm:$0xff] %v1471
        %1836 = vst.msk [vmem:[#allocation4 + $0x70] sm:$0xff] %vm412, %v1688
        %1837 = vst [vmem:[#allocation4 + $0x78] sm:$0xff] %v1473
        %1838 = vst [vmem:[#allocation4 + $0x80] sm:$0xff] %v1475
        %1839 = vst.msk [vmem:[#allocation4 + $0x88] sm:$0xff] %vm412, %v1691
        %1840 = vst [vmem:[#allocation4 + $0x90] sm:$0xff] %v1479
        %1841 = vst [vmem:[#allocation4 + $0x98] sm:$0xff] %v1481
        %1842 = vst.msk [vmem:[#allocation4 + $0xa0] sm:$0xff] %vm412, %v1696
        %1843 = vst [vmem:[#allocation4 + $0xa8] sm:$0xff] %v1483
        %1844 = vst [vmem:[#allocation4 + $0xb0] sm:$0xff] %v1485
        %1845 = vst.msk [vmem:[#allocation4 + $0xb8] sm:$0xff] %vm412, %v1699
        %1846 = vst [vmem:[#allocation4 + $0xc0] sm:$0xff] %v1489
        %1847 = vst [vmem:[#allocation4 + $0xc8] sm:$0xff] %v1491
        %1848 = vst.msk [vmem:[#allocation4 + $0xd0] sm:$0xff] %vm412, %v1704
        %1849 = vst [vmem:[#allocation4 + $0xd8] sm:$0xff] %v1493
        %1850 = vst [vmem:[#allocation4 + $0xe0] sm:$0xff] %v1495
        %1851 = vst.msk [vmem:[#allocation4 + $0xe8] sm:$0xff] %vm412, %v1707
        %1852 = vst [vmem:[#allocation4 + $0xf0] sm:$0xff] %v1499
        %1853 = vst [vmem:[#allocation4 + $0xf8] sm:$0xff] %v1501
        %1854 = vst.msk [vmem:[#allocation4 + $0x100] sm:$0xff] %vm412, %v1712
        %1855 = vst [vmem:[#allocation4 + $0x108] sm:$0xff] %v1503
        %1856 = vst [vmem:[#allocation4 + $0x110] sm:$0xff] %v1505
        %1857 = vst.msk [vmem:[#allocation4 + $0x118] sm:$0xff] %vm412, %v1715
        %1858 = vst [vmem:[#allocation4 + $0x120] sm:$0xff] %v1509
        %1859 = vst [vmem:[#allocation4 + $0x128] sm:$0xff] %v1511
        %1860 = vst.msk [vmem:[#allocation4 + $0x130] sm:$0xff] %vm412, %v1720
        %1861 = vst [vmem:[#allocation4 + $0x138] sm:$0xff] %v1513
        %1862 = vst [vmem:[#allocation4 + $0x140] sm:$0xff] %v1515
        %1863 = vst.msk [vmem:[#allocation4 + $0x148] sm:$0xff] %vm412, %v1723
        %1864 = vst [vmem:[#allocation4 + $0x150] sm:$0xff] %v1519
        %1865 = vst [vmem:[#allocation4 + $0x158] sm:$0xff] %v1521
        %1866 = vst.msk [vmem:[#allocation4 + $0x160] sm:$0xff] %vm412, %v1728
        %1867 = vst [vmem:[#allocation4 + $0x168] sm:$0xff] %v1523
        %1868 = vst [vmem:[#allocation4 + $0x170] sm:$0xff] %v1525
        %1869 = vst.msk [vmem:[#allocation4 + $0x178] sm:$0xff] %vm412, %v1731
        %1870 = vst [vmem:[#allocation4 + $0x180] sm:$0xff] %v1529
        %1871 = vst [vmem:[#allocation4 + $0x188] sm:$0xff] %v1531
        %1872 = vst.msk [vmem:[#allocation4 + $0x190] sm:$0xff] %vm412, %v1736
        %1873 = vst [vmem:[#allocation4 + $0x198] sm:$0xff] %v1533
        %1874 = vst [vmem:[#allocation4 + $0x1a0] sm:$0xff] %v1535
        %1875 = vst.msk [vmem:[#allocation4 + $0x1a8] sm:$0xff] %vm412, %v1739
        %1876 = vst [vmem:[#allocation4 + $0x1b0] sm:$0xff] %v1539
        %1877 = vst [vmem:[#allocation4 + $0x1b8] sm:$0xff] %v1541
        %1878 = vst.msk [vmem:[#allocation4 + $0x1c0] sm:$0xff] %vm412, %v1744
        %1879 = vst [vmem:[#allocation4 + $0x1c8] sm:$0xff] %v1543
        %1880 = vst [vmem:[#allocation4 + $0x1d0] sm:$0xff] %v1545
        %1881 = vst.msk [vmem:[#allocation4 + $0x1d8] sm:$0xff] %vm412, %v1747
        %1882 = vst [vmem:[#allocation4 + $0x1e0] sm:$0xff] %v1549
        %1883 = vst [vmem:[#allocation4 + $0x1e8] sm:$0xff] %v1551
        %1884 = vst.msk [vmem:[#allocation4 + $0x1f0] sm:$0xff] %vm412, %v1752
        %1885 = vst [vmem:[#allocation4 + $0x1f8] sm:$0xff] %v1553
        %1886 = vst [vmem:[#allocation4 + $0x200] sm:$0xff] %v1555
        %1887 = vst.msk [vmem:[#allocation4 + $0x208] sm:$0xff] %vm412, %v1755
        %1888 = vst [vmem:[#allocation4 + $0x210] sm:$0xff] %v1559
        %1889 = vst [vmem:[#allocation4 + $0x218] sm:$0xff] %v1561
        %1890 = vst.msk [vmem:[#allocation4 + $0x220] sm:$0xff] %vm412, %v1760
        %1891 = vst [vmem:[#allocation4 + $0x228] sm:$0xff] %v1563
        %1892 = vst [vmem:[#allocation4 + $0x230] sm:$0xff] %v1565
        %1893 = vst.msk [vmem:[#allocation4 + $0x238] sm:$0xff] %vm412, %v1763
        %1894 = vst [vmem:[#allocation4 + $0x240] sm:$0xff] %v1569
        %1895 = vst [vmem:[#allocation4 + $0x248] sm:$0xff] %v1571
        %1896 = vst.msk [vmem:[#allocation4 + $0x250] sm:$0xff] %vm412, %v1768
        %1897 = vst [vmem:[#allocation4 + $0x258] sm:$0xff] %v1573
        %1898 = vst [vmem:[#allocation4 + $0x260] sm:$0xff] %v1575
        %1899 = vst.msk [vmem:[#allocation4 + $0x268] sm:$0xff] %vm412, %v1771
        %1900 = vst [vmem:[#allocation4 + $0x270] sm:$0xff] %v1579
        %1901 = vst [vmem:[#allocation4 + $0x278] sm:$0xff] %v1581
        %1902 = vst.msk [vmem:[#allocation4 + $0x280] sm:$0xff] %vm412, %v1776
        %1903 = vst [vmem:[#allocation4 + $0x288] sm:$0xff] %v1583
        %1904 = vst [vmem:[#allocation4 + $0x290] sm:$0xff] %v1585
        %1905 = vst.msk [vmem:[#allocation4 + $0x298] sm:$0xff] %vm412, %v1779
        %1906 = vst [vmem:[#allocation4 + $0x2a0] sm:$0xff] %v1589
        %1907 = vst [vmem:[#allocation4 + $0x2a8] sm:$0xff] %v1591
        %1908 = vst.msk [vmem:[#allocation4 + $0x2b0] sm:$0xff] %vm412, %v1784
        %1909 = vst [vmem:[#allocation4 + $0x2b8] sm:$0xff] %v1593
        %1910 = vst [vmem:[#allocation4 + $0x2c0] sm:$0xff] %v1595
        %1911 = vst.msk [vmem:[#allocation4 + $0x2c8] sm:$0xff] %vm412, %v1787
        %1912 = vst [vmem:[#allocation4 + $0x2d0] sm:$0xff] %v1599
        %1913 = vst [vmem:[#allocation4 + $0x2d8] sm:$0xff] %v1601
        %1914 = vst.msk [vmem:[#allocation4 + $0x2e0] sm:$0xff] %vm412, %v1792
        %1915 = vst [vmem:[#allocation4 + $0x2e8] sm:$0xff] %v1603
        %1916 = vst [vmem:[#allocation4 + $0x2f0] sm:$0xff] %v1605
        %1917 = vst.msk [vmem:[#allocation4 + $0x2f8] sm:$0xff] %vm412, %v1795
        %1918 = vst [vmem:[#allocation4 + $0x300] sm:$0xff] %v1609
        %1919 = vst [vmem:[#allocation4 + $0x308] sm:$0xff] %v1611
        %1920 = vst.msk [vmem:[#allocation4 + $0x310] sm:$0xff] %vm412, %v1800
        %1921 = vst [vmem:[#allocation4 + $0x318] sm:$0xff] %v1613
        %1922 = vst [vmem:[#allocation4 + $0x320] sm:$0xff] %v1615
        %1923 = vst.msk [vmem:[#allocation4 + $0x328] sm:$0xff] %vm412, %v1803
        %1924 = vst [vmem:[#allocation4 + $0x330] sm:$0xff] %v1619
        %1925 = vst [vmem:[#allocation4 + $0x338] sm:$0xff] %v1621
        %1926 = vst.msk [vmem:[#allocation4 + $0x340] sm:$0xff] %vm412, %v1808
        %1927 = vst [vmem:[#allocation4 + $0x348] sm:$0xff] %v1623
        %1928 = vst [vmem:[#allocation4 + $0x350] sm:$0xff] %v1625
        %1929 = vst.msk [vmem:[#allocation4 + $0x358] sm:$0xff] %vm412, %v1811
        %1930 = vst [vmem:[#allocation4 + $0x360] sm:$0xff] %v1629
        %1931 = vst [vmem:[#allocation4 + $0x368] sm:$0xff] %v1631
        %1932 = vst.msk [vmem:[#allocation4 + $0x370] sm:$0xff] %vm412, %v1816
        %1933 = vst [vmem:[#allocation4 + $0x378] sm:$0xf] %v1633
        %1934 = vst [vmem:[#allocation4 + $0x380] sm:$0xf] %v1635
        %1935 = vst.msk [vmem:[#allocation4 + $0x388] sm:$0xf] %vm1133, %v1819
        %v1936 = vld [vmem:[#allocation4] ss:$0 sm:$0xff]
        %v1937 = vld [vmem:[#allocation4 + $0x1] ss:$0 sm:$0xff]
        %1939 = vrot.lane.b32.xlu0 %v1937, 127
        %v1940 = vpop.permute.xlu0 %1939
        %v1942 = vadd.f32 %v1936, %v1940
        %v1943 = vld [vmem:[#allocation4 + $0x2] ss:$0 sm:$0xff]
        %1945 = vrot.lane.b32.xlu0 %v1943, 126
        %v1946 = vpop.permute.xlu0 %1945
        %v1948 = vadd.f32 %v1942, %v1946
        %v1949 = vld [vmem:[#allocation4 + $0x3] ss:$0 sm:$0xff]
        %1951 = vrot.lane.b32.xlu0 %v1949, 125
        %v1952 = vpop.permute.xlu0 %1951
        %v1954 = vadd.f32 %v1948, %v1952
        %v1955 = vld [vmem:[#allocation4 + $0x4] ss:$0 sm:$0xff]
        %1957 = vrot.lane.b32.xlu0 %v1955, 124
        %v1958 = vpop.permute.xlu0 %1957
        %v1960 = vadd.f32 %v1954, %v1958
        %v1961 = vld [vmem:[#allocation4 + $0x5] ss:$0 sm:$0xff]
        %1963 = vrot.lane.b32.xlu0 %v1961, 123
        %v1964 = vpop.permute.xlu0 %1963
        %v1966 = vadd.f32 %v1960, %v1964
        %v1967 = vld [vmem:[#allocation4 + $0x6] ss:$0 sm:$0xff]
        %1969 = vrot.lane.b32.xlu0 %v1967, 122
        %v1970 = vpop.permute.xlu0 %1969
        %v1972 = vadd.f32 %v1966, %v1970
        %v1973 = vld [vmem:[#allocation4 + $0x7] ss:$0 sm:$0xff]
        %1975 = vrot.lane.b32.xlu0 %v1973, 121
        %v1976 = vpop.permute.xlu0 %1975
        %v1978 = vadd.f32 %v1972, %v1976
        %v1979 = vld [vmem:[#allocation4 + $0x18] ss:$0 sm:$0xff]
        %1981 = vrot.lane.b32.xlu0 %v1979, 120
        %v1982 = vpop.permute.xlu0 %1981
        %v1984 = vadd.f32 %v1978, %v1982
        %v1985 = vld [vmem:[#allocation4 + $0x19] ss:$0 sm:$0xff]
        %1987 = vrot.lane.b32.xlu0 %v1985, 119
        %v1988 = vpop.permute.xlu0 %1987
        %v1990 = vadd.f32 %v1984, %v1988
        %v1991 = vld [vmem:[#allocation4 + $0x1a] ss:$0 sm:$0xff]
        %1993 = vrot.lane.b32.xlu0 %v1991, 118
        %v1994 = vpop.permute.xlu0 %1993
        %v1996 = vadd.f32 %v1990, %v1994
        %v1997 = vld [vmem:[#allocation4 + $0x1b] ss:$0 sm:$0xff]
        %1999 = vrot.lane.b32.xlu0 %v1997, 117
        %v2000 = vpop.permute.xlu0 %1999
        %v2002 = vadd.f32 %v1996, %v2000
        %v2003 = vld [vmem:[#allocation4 + $0x1c] ss:$0 sm:$0xff]
        %2005 = vrot.lane.b32.xlu0 %v2003, 116
        %v2006 = vpop.permute.xlu0 %2005
        %v2008 = vadd.f32 %v2002, %v2006
        %v2009 = vld [vmem:[#allocation4 + $0x1d] ss:$0 sm:$0xff]
        %2011 = vrot.lane.b32.xlu0 %v2009, 115
        %v2012 = vpop.permute.xlu0 %2011
        %v2014 = vadd.f32 %v2008, %v2012
        %v2015 = vld [vmem:[#allocation4 + $0x1e] ss:$0 sm:$0xff]
        %2017 = vrot.lane.b32.xlu0 %v2015, 114
        %v2018 = vpop.permute.xlu0 %2017
        %v2020 = vadd.f32 %v2014, %v2018
        %v2021 = vld [vmem:[#allocation4 + $0x1f] ss:$0 sm:$0xff]
        %2023 = vrot.lane.b32.xlu0 %v2021, 113
        %v2024 = vpop.permute.xlu0 %2023
        %v2026 = vadd.f32 %v2020, %v2024
        %v2027 = vld [vmem:[#allocation4 + $0x30] ss:$0 sm:$0xff]
        %2029 = vrot.lane.b32.xlu0 %v2027, 112
        %v2030 = vpop.permute.xlu0 %2029
        %v2032 = vadd.f32 %v2026, %v2030
        %v2033 = vld [vmem:[#allocation4 + $0x31] ss:$0 sm:$0xff]
        %2035 = vrot.lane.b32.xlu0 %v2033, 111
        %v2036 = vpop.permute.xlu0 %2035
        %v2038 = vadd.f32 %v2032, %v2036
        %v2039 = vld [vmem:[#allocation4 + $0x32] ss:$0 sm:$0xff]
        %2041 = vrot.lane.b32.xlu0 %v2039, 110
        %v2042 = vpop.permute.xlu0 %2041
        %v2044 = vadd.f32 %v2038, %v2042
        %v2045 = vld [vmem:[#allocation4 + $0x33] ss:$0 sm:$0xff]
        %2047 = vrot.lane.b32.xlu0 %v2045, 109
        %v2048 = vpop.permute.xlu0 %2047
        %v2050 = vadd.f32 %v2044, %v2048
        %v2051 = vld [vmem:[#allocation4 + $0x34] ss:$0 sm:$0xff]
        %2053 = vrot.lane.b32.xlu0 %v2051, 108
        %v2054 = vpop.permute.xlu0 %2053
        %v2056 = vadd.f32 %v2050, %v2054
        %v2057 = vld [vmem:[#allocation4 + $0x35] ss:$0 sm:$0xff]
        %2059 = vrot.lane.b32.xlu0 %v2057, 107
        %v2060 = vpop.permute.xlu0 %2059
        %v2062 = vadd.f32 %v2056, %v2060
        %v2063 = vld [vmem:[#allocation4 + $0x36] ss:$0 sm:$0xff]
        %2065 = vrot.lane.b32.xlu0 %v2063, 106
        %v2066 = vpop.permute.xlu0 %2065
        %v2068 = vadd.f32 %v2062, %v2066
        %v2069 = vld [vmem:[#allocation4 + $0x37] ss:$0 sm:$0xff]
        %2071 = vrot.lane.b32.xlu0 %v2069, 105
        %v2072 = vpop.permute.xlu0 %2071
        %v2074 = vadd.f32 %v2068, %v2072
        %v2075 = vld [vmem:[#allocation4 + $0x48] ss:$0 sm:$0xff]
        %2077 = vrot.lane.b32.xlu0 %v2075, 104
        %v2078 = vpop.permute.xlu0 %2077
        %v2080 = vadd.f32 %v2074, %v2078
        %v2081 = vld [vmem:[#allocation4 + $0x49] ss:$0 sm:$0xff]
        %2083 = vrot.lane.b32.xlu0 %v2081, 103
        %v2084 = vpop.permute.xlu0 %2083
        %v2086 = vadd.f32 %v2080, %v2084
        %v2087 = vld [vmem:[#allocation4 + $0x4a] ss:$0 sm:$0xff]
        %2089 = vrot.lane.b32.xlu0 %v2087, 102
        %v2090 = vpop.permute.xlu0 %2089
        %v2092 = vadd.f32 %v2086, %v2090
        %v2093 = vld [vmem:[#allocation4 + $0x4b] ss:$0 sm:$0xff]
        %2095 = vrot.lane.b32.xlu0 %v2093, 101
        %v2096 = vpop.permute.xlu0 %2095
        %v2098 = vadd.f32 %v2092, %v2096
        %v2099 = vld [vmem:[#allocation4 + $0x4c] ss:$0 sm:$0xff]
        %2101 = vrot.lane.b32.xlu0 %v2099, 100
        %v2102 = vpop.permute.xlu0 %2101
        %v2104 = vadd.f32 %v2098, %v2102
        %v2105 = vld [vmem:[#allocation4 + $0x4d] ss:$0 sm:$0xff]
        %2107 = vrot.lane.b32.xlu0 %v2105, 99
        %v2108 = vpop.permute.xlu0 %2107
        %v2110 = vadd.f32 %v2104, %v2108
        %v2111 = vld [vmem:[#allocation4 + $0x4e] ss:$0 sm:$0xff]
        %2113 = vrot.lane.b32.xlu0 %v2111, 98
        %v2114 = vpop.permute.xlu0 %2113
        %v2116 = vadd.f32 %v2110, %v2114
        %v2117 = vld [vmem:[#allocation4 + $0x4f] ss:$0 sm:$0xff]
        %2119 = vrot.lane.b32.xlu0 %v2117, 97
        %v2120 = vpop.permute.xlu0 %2119
        %v2122 = vadd.f32 %v2116, %v2120
        %v2123 = vld [vmem:[#allocation4 + $0x60] ss:$0 sm:$0xff]
        %2125 = vrot.lane.b32.xlu0 %v2123, 96
        %v2126 = vpop.permute.xlu0 %2125
        %v2128 = vadd.f32 %v2122, %v2126
        %v2129 = vld [vmem:[#allocation4 + $0x61] ss:$0 sm:$0xff]
        %2131 = vrot.lane.b32.xlu0 %v2129, 95
        %v2132 = vpop.permute.xlu0 %2131
        %v2134 = vadd.f32 %v2128, %v2132
        %v2135 = vld [vmem:[#allocation4 + $0x62] ss:$0 sm:$0xff]
        %2137 = vrot.lane.b32.xlu0 %v2135, 94
        %v2138 = vpop.permute.xlu0 %2137
        %v2140 = vadd.f32 %v2134, %v2138
        %v2141 = vld [vmem:[#allocation4 + $0x63] ss:$0 sm:$0xff]
        %2143 = vrot.lane.b32.xlu0 %v2141, 93
        %v2144 = vpop.permute.xlu0 %2143
        %v2146 = vadd.f32 %v2140, %v2144
        %v2147 = vld [vmem:[#allocation4 + $0x64] ss:$0 sm:$0xff]
        %2149 = vrot.lane.b32.xlu0 %v2147, 92
        %v2150 = vpop.permute.xlu0 %2149
        %v2152 = vadd.f32 %v2146, %v2150
        %v2153 = vld [vmem:[#allocation4 + $0x65] ss:$0 sm:$0xff]
        %2155 = vrot.lane.b32.xlu0 %v2153, 91
        %v2156 = vpop.permute.xlu0 %2155
        %v2158 = vadd.f32 %v2152, %v2156
        %v2159 = vld [vmem:[#allocation4 + $0x66] ss:$0 sm:$0xff]
        %2161 = vrot.lane.b32.xlu0 %v2159, 90
        %v2162 = vpop.permute.xlu0 %2161
        %v2164 = vadd.f32 %v2158, %v2162
        %v2165 = vld [vmem:[#allocation4 + $0x67] ss:$0 sm:$0xff]
        %2167 = vrot.lane.b32.xlu0 %v2165, 89
        %v2168 = vpop.permute.xlu0 %2167
        %v2170 = vadd.f32 %v2164, %v2168
        %v2171 = vld [vmem:[#allocation4 + $0x78] ss:$0 sm:$0xff]
        %2173 = vrot.lane.b32.xlu0 %v2171, 88
        %v2174 = vpop.permute.xlu0 %2173
        %v2176 = vadd.f32 %v2170, %v2174
        %v2177 = vld [vmem:[#allocation4 + $0x79] ss:$0 sm:$0xff]
        %2179 = vrot.lane.b32.xlu0 %v2177, 87
        %v2180 = vpop.permute.xlu0 %2179
        %v2182 = vadd.f32 %v2176, %v2180
        %v2183 = vld [vmem:[#allocation4 + $0x7a] ss:$0 sm:$0xff]
        %2185 = vrot.lane.b32.xlu0 %v2183, 86
        %v2186 = vpop.permute.xlu0 %2185
        %v2188 = vadd.f32 %v2182, %v2186
        %v2189 = vld [vmem:[#allocation4 + $0x7b] ss:$0 sm:$0xff]
        %2191 = vrot.lane.b32.xlu0 %v2189, 85
        %v2192 = vpop.permute.xlu0 %2191
        %v2194 = vadd.f32 %v2188, %v2192
        %v2195 = vld [vmem:[#allocation4 + $0x7c] ss:$0 sm:$0xff]
        %2197 = vrot.lane.b32.xlu0 %v2195, 84
        %v2198 = vpop.permute.xlu0 %2197
        %v2200 = vadd.f32 %v2194, %v2198
        %v2201 = vld [vmem:[#allocation4 + $0x7d] ss:$0 sm:$0xff]
        %2203 = vrot.lane.b32.xlu0 %v2201, 83
        %v2204 = vpop.permute.xlu0 %2203
        %v2206 = vadd.f32 %v2200, %v2204
        %v2207 = vld [vmem:[#allocation4 + $0x7e] ss:$0 sm:$0xff]
        %2209 = vrot.lane.b32.xlu0 %v2207, 82
        %v2210 = vpop.permute.xlu0 %2209
        %v2212 = vadd.f32 %v2206, %v2210
        %v2213 = vld [vmem:[#allocation4 + $0x7f] ss:$0 sm:$0xff]
        %2215 = vrot.lane.b32.xlu0 %v2213, 81
        %v2216 = vpop.permute.xlu0 %2215
        %v2218 = vadd.f32 %v2212, %v2216
        %v2219 = vld [vmem:[#allocation4 + $0x90] ss:$0 sm:$0xff]
        %2221 = vrot.lane.b32.xlu0 %v2219, 80
        %v2222 = vpop.permute.xlu0 %2221
        %v2224 = vadd.f32 %v2218, %v2222
        %v2225 = vld [vmem:[#allocation4 + $0x91] ss:$0 sm:$0xff]
        %2227 = vrot.lane.b32.xlu0 %v2225, 79
        %v2228 = vpop.permute.xlu0 %2227
        %v2230 = vadd.f32 %v2224, %v2228
        %v2231 = vld [vmem:[#allocation4 + $0x92] ss:$0 sm:$0xff]
        %2233 = vrot.lane.b32.xlu0 %v2231, 78
        %v2234 = vpop.permute.xlu0 %2233
        %v2236 = vadd.f32 %v2230, %v2234
        %v2237 = vld [vmem:[#allocation4 + $0x93] ss:$0 sm:$0xff]
        %2239 = vrot.lane.b32.xlu0 %v2237, 77
        %v2240 = vpop.permute.xlu0 %2239
        %v2242 = vadd.f32 %v2236, %v2240
        %v2243 = vld [vmem:[#allocation4 + $0x94] ss:$0 sm:$0xff]
        %2245 = vrot.lane.b32.xlu0 %v2243, 76
        %v2246 = vpop.permute.xlu0 %2245
        %v2248 = vadd.f32 %v2242, %v2246
        %v2249 = vld [vmem:[#allocation4 + $0x95] ss:$0 sm:$0xff]
        %2251 = vrot.lane.b32.xlu0 %v2249, 75
        %v2252 = vpop.permute.xlu0 %2251
        %v2254 = vadd.f32 %v2248, %v2252
        %v2255 = vld [vmem:[#allocation4 + $0x96] ss:$0 sm:$0xff]
        %2257 = vrot.lane.b32.xlu0 %v2255, 74
        %v2258 = vpop.permute.xlu0 %2257
        %v2260 = vadd.f32 %v2254, %v2258
        %v2261 = vld [vmem:[#allocation4 + $0x97] ss:$0 sm:$0xff]
        %2263 = vrot.lane.b32.xlu0 %v2261, 73
        %v2264 = vpop.permute.xlu0 %2263
        %v2266 = vadd.f32 %v2260, %v2264
        %v2267 = vld [vmem:[#allocation4 + $0xa8] ss:$0 sm:$0xff]
        %2269 = vrot.lane.b32.xlu0 %v2267, 72
        %v2270 = vpop.permute.xlu0 %2269
        %v2272 = vadd.f32 %v2266, %v2270
        %v2273 = vld [vmem:[#allocation4 + $0xa9] ss:$0 sm:$0xff]
        %2275 = vrot.lane.b32.xlu0 %v2273, 71
        %v2276 = vpop.permute.xlu0 %2275
        %v2278 = vadd.f32 %v2272, %v2276
        %v2279 = vld [vmem:[#allocation4 + $0xaa] ss:$0 sm:$0xff]
        %2281 = vrot.lane.b32.xlu0 %v2279, 70
        %v2282 = vpop.permute.xlu0 %2281
        %v2284 = vadd.f32 %v2278, %v2282
        %v2285 = vld [vmem:[#allocation4 + $0xab] ss:$0 sm:$0xff]
        %2287 = vrot.lane.b32.xlu0 %v2285, 69
        %v2288 = vpop.permute.xlu0 %2287
        %v2290 = vadd.f32 %v2284, %v2288
        %v2291 = vld [vmem:[#allocation4 + $0xac] ss:$0 sm:$0xff]
        %2293 = vrot.lane.b32.xlu0 %v2291, 68
        %v2294 = vpop.permute.xlu0 %2293
        %v2296 = vadd.f32 %v2290, %v2294
        %v2297 = vld [vmem:[#allocation4 + $0xad] ss:$0 sm:$0xff]
        %2299 = vrot.lane.b32.xlu0 %v2297, 67
        %v2300 = vpop.permute.xlu0 %2299
        %v2302 = vadd.f32 %v2296, %v2300
        %v2303 = vld [vmem:[#allocation4 + $0xae] ss:$0 sm:$0xff]
        %2305 = vrot.lane.b32.xlu0 %v2303, 66
        %v2306 = vpop.permute.xlu0 %2305
        %v2308 = vadd.f32 %v2302, %v2306
        %v2309 = vld [vmem:[#allocation4 + $0xaf] ss:$0 sm:$0xff]
        %2311 = vrot.lane.b32.xlu0 %v2309, 65
        %v2312 = vpop.permute.xlu0 %2311
        %v2314 = vadd.f32 %v2308, %v2312
        %v2315 = vld [vmem:[#allocation4 + $0xc0] ss:$0 sm:$0xff]
        %2317 = vrot.lane.b32.xlu0 %v2315, 64
        %v2318 = vpop.permute.xlu0 %2317
        %v2320 = vadd.f32 %v2314, %v2318
        %v2321 = vld [vmem:[#allocation4 + $0xc1] ss:$0 sm:$0xff]
        %v2322 = vld [vmem:[#allocation4 + $0xc9] ss:$0 sm:$0xff]
        %2325 = vrot.lane.b32.xlu0 %v2321, 63
        %v2326 = vpop.permute.xlu0 %2325
        %2327 = vrot.lane.b32.xlu0 %v2322, 63
        %v2328 = vpop.permute.xlu0 %2327
        %vm2329 = vcmask 515072
        %v2330 = vsel %vm2329, %v2326, %v2328
        %v2332 = vadd.f32 %v2320, %v2330
        %v2333 = vld [vmem:[#allocation4 + $0xc2] ss:$0 sm:$0xff]
        %v2334 = vld [vmem:[#allocation4 + $0xca] ss:$0 sm:$0xff]
        %2337 = vrot.lane.b32.xlu0 %v2333, 62
        %v2338 = vpop.permute.xlu0 %2337
        %2339 = vrot.lane.b32.xlu0 %v2334, 62
        %v2340 = vpop.permute.xlu0 %2339
        %vm2341 = vcmask 506880
        %v2342 = vsel %vm2341, %v2338, %v2340
        %v2344 = vadd.f32 %v2332, %v2342
        %v2345 = vld [vmem:[#allocation4 + $0xc3] ss:$0 sm:$0xff]
        %v2346 = vld [vmem:[#allocation4 + $0xcb] ss:$0 sm:$0xff]
        %2349 = vrot.lane.b32.xlu0 %v2345, 61
        %v2350 = vpop.permute.xlu0 %2349
        %2351 = vrot.lane.b32.xlu0 %v2346, 61
        %v2352 = vpop.permute.xlu0 %2351
        %vm2353 = vcmask 498688
        %v2354 = vsel %vm2353, %v2350, %v2352
        %v2356 = vadd.f32 %v2344, %v2354
        %v2357 = vld [vmem:[#allocation4 + $0xc4] ss:$0 sm:$0xff]
        %v2358 = vld [vmem:[#allocation4 + $0xcc] ss:$0 sm:$0xff]
        %2361 = vrot.lane.b32.xlu0 %v2357, 60
        %v2362 = vpop.permute.xlu0 %2361
        %2363 = vrot.lane.b32.xlu0 %v2358, 60
        %v2364 = vpop.permute.xlu0 %2363
        %v2365 = vsel %vm1346, %v2362, %v2364
        %v2367 = vadd.f32 %v2356, %v2365
        %v2368 = vld [vmem:[#allocation4 + $0xc5] ss:$0 sm:$0xff]
        %v2369 = vld [vmem:[#allocation4 + $0xcd] ss:$0 sm:$0xff]
        %2372 = vrot.lane.b32.xlu0 %v2368, 59
        %v2373 = vpop.permute.xlu0 %2372
        %2374 = vrot.lane.b32.xlu0 %v2369, 59
        %v2375 = vpop.permute.xlu0 %2374
        %vm2376 = vcmask 482304
        %v2377 = vsel %vm2376, %v2373, %v2375
        %v2379 = vadd.f32 %v2367, %v2377
        %v2380 = vld [vmem:[#allocation4 + $0xc6] ss:$0 sm:$0xff]
        %v2381 = vld [vmem:[#allocation4 + $0xce] ss:$0 sm:$0xff]
        %2384 = vrot.lane.b32.xlu0 %v2380, 58
        %v2385 = vpop.permute.xlu0 %2384
        %2386 = vrot.lane.b32.xlu0 %v2381, 58
        %v2387 = vpop.permute.xlu0 %2386
        %vm2388 = vcmask 474112
        %v2389 = vsel %vm2388, %v2385, %v2387
        %v2391 = vadd.f32 %v2379, %v2389
        %v2392 = vld [vmem:[#allocation4 + $0xc7] ss:$0 sm:$0xff]
        %v2393 = vld [vmem:[#allocation4 + $0xcf] ss:$0 sm:$0xff]
        %2396 = vrot.lane.b32.xlu0 %v2392, 57
        %v2397 = vpop.permute.xlu0 %2396
        %2398 = vrot.lane.b32.xlu0 %v2393, 57
        %v2399 = vpop.permute.xlu0 %2398
        %vm2400 = vcmask 465920
        %v2401 = vsel %vm2400, %v2397, %v2399
        %v2403 = vadd.f32 %v2391, %v2401
        %v2404 = vld [vmem:[#allocation4 + $0xd8] ss:$0 sm:$0xff]
        %v2405 = vld [vmem:[#allocation4 + $0xe0] ss:$0 sm:$0xff]
        %2408 = vrot.lane.b32.xlu0 %v2404, 56
        %v2409 = vpop.permute.xlu0 %2408
        %2410 = vrot.lane.b32.xlu0 %v2405, 56
        %v2411 = vpop.permute.xlu0 %2410
        %vm2412 = vcmask 457728
        %v2413 = vsel %vm2412, %v2409, %v2411
        %v2415 = vadd.f32 %v2403, %v2413
        %v2416 = vld [vmem:[#allocation4 + $0xd9] ss:$0 sm:$0xff]
        %v2417 = vld [vmem:[#allocation4 + $0xe1] ss:$0 sm:$0xff]
        %2420 = vrot.lane.b32.xlu0 %v2416, 55
        %v2421 = vpop.permute.xlu0 %2420
        %2422 = vrot.lane.b32.xlu0 %v2417, 55
        %v2423 = vpop.permute.xlu0 %2422
        %vm2424 = vcmask 449536
        %v2425 = vsel %vm2424, %v2421, %v2423
        %v2427 = vadd.f32 %v2415, %v2425
        %v2428 = vld [vmem:[#allocation4 + $0xda] ss:$0 sm:$0xff]
        %v2429 = vld [vmem:[#allocation4 + $0xe2] ss:$0 sm:$0xff]
        %2432 = vrot.lane.b32.xlu0 %v2428, 54
        %v2433 = vpop.permute.xlu0 %2432
        %2434 = vrot.lane.b32.xlu0 %v2429, 54
        %v2435 = vpop.permute.xlu0 %2434
        %vm2436 = vcmask 441344
        %v2437 = vsel %vm2436, %v2433, %v2435
        %v2439 = vadd.f32 %v2427, %v2437
        %v2440 = vld [vmem:[#allocation4 + $0xdb] ss:$0 sm:$0xff]
        %v2441 = vld [vmem:[#allocation4 + $0xe3] ss:$0 sm:$0xff]
        %2444 = vrot.lane.b32.xlu0 %v2440, 53
        %v2445 = vpop.permute.xlu0 %2444
        %2446 = vrot.lane.b32.xlu0 %v2441, 53
        %v2447 = vpop.permute.xlu0 %2446
        %vm2448 = vcmask 433152
        %v2449 = vsel %vm2448, %v2445, %v2447
        %v2451 = vadd.f32 %v2439, %v2449
        %v2452 = vld [vmem:[#allocation4 + $0xdc] ss:$0 sm:$0xff]
        %v2453 = vld [vmem:[#allocation4 + $0xe4] ss:$0 sm:$0xff]
        %2456 = vrot.lane.b32.xlu0 %v2452, 52
        %v2457 = vpop.permute.xlu0 %2456
        %2458 = vrot.lane.b32.xlu0 %v2453, 52
        %v2459 = vpop.permute.xlu0 %2458
        %vm2460 = vcmask 424960
        %v2461 = vsel %vm2460, %v2457, %v2459
        %v2463 = vadd.f32 %v2451, %v2461
        %v2464 = vld [vmem:[#allocation4 + $0xdd] ss:$0 sm:$0xff]
        %v2465 = vld [vmem:[#allocation4 + $0xe5] ss:$0 sm:$0xff]
        %2468 = vrot.lane.b32.xlu0 %v2464, 51
        %v2469 = vpop.permute.xlu0 %2468
        %2470 = vrot.lane.b32.xlu0 %v2465, 51
        %v2471 = vpop.permute.xlu0 %2470
        %vm2472 = vcmask 416768
        %v2473 = vsel %vm2472, %v2469, %v2471
        %v2475 = vadd.f32 %v2463, %v2473
        %v2476 = vld [vmem:[#allocation4 + $0xde] ss:$0 sm:$0xff]
        %v2477 = vld [vmem:[#allocation4 + $0xe6] ss:$0 sm:$0xff]
        %2480 = vrot.lane.b32.xlu0 %v2476, 50
        %v2481 = vpop.permute.xlu0 %2480
        %2482 = vrot.lane.b32.xlu0 %v2477, 50
        %v2483 = vpop.permute.xlu0 %2482
        %vm2484 = vcmask 408576
        %v2485 = vsel %vm2484, %v2481, %v2483
        %v2487 = vadd.f32 %v2475, %v2485
        %v2488 = vld [vmem:[#allocation4 + $0xdf] ss:$0 sm:$0xff]
        %v2489 = vld [vmem:[#allocation4 + $0xe7] ss:$0 sm:$0xff]
        %2492 = vrot.lane.b32.xlu0 %v2488, 49
        %v2493 = vpop.permute.xlu0 %2492
        %2494 = vrot.lane.b32.xlu0 %v2489, 49
        %v2495 = vpop.permute.xlu0 %2494
        %vm2496 = vcmask 400384
        %v2497 = vsel %vm2496, %v2493, %v2495
        %v2499 = vadd.f32 %v2487, %v2497
        %v2500 = vld [vmem:[#allocation4 + $0xf0] ss:$0 sm:$0xff]
        %v2501 = vld [vmem:[#allocation4 + $0xf8] ss:$0 sm:$0xff]
        %2504 = vrot.lane.b32.xlu0 %v2500, 48
        %v2505 = vpop.permute.xlu0 %2504
        %2506 = vrot.lane.b32.xlu0 %v2501, 48
        %v2507 = vpop.permute.xlu0 %2506
        %vm2508 = vcmask 392192
        %v2509 = vsel %vm2508, %v2505, %v2507
        %v2511 = vadd.f32 %v2499, %v2509
        %v2512 = vld [vmem:[#allocation4 + $0xf1] ss:$0 sm:$0xff]
        %v2513 = vld [vmem:[#allocation4 + $0xf9] ss:$0 sm:$0xff]
        %2516 = vrot.lane.b32.xlu0 %v2512, 47
        %v2517 = vpop.permute.xlu0 %2516
        %2518 = vrot.lane.b32.xlu0 %v2513, 47
        %v2519 = vpop.permute.xlu0 %2518
        %vm2520 = vcmask 384000
        %v2521 = vsel %vm2520, %v2517, %v2519
        %v2523 = vadd.f32 %v2511, %v2521
        %v2524 = vld [vmem:[#allocation4 + $0xf2] ss:$0 sm:$0xff]
        %v2525 = vld [vmem:[#allocation4 + $0xfa] ss:$0 sm:$0xff]
        %2528 = vrot.lane.b32.xlu0 %v2524, 46
        %v2529 = vpop.permute.xlu0 %2528
        %2530 = vrot.lane.b32.xlu0 %v2525, 46
        %v2531 = vpop.permute.xlu0 %2530
        %vm2532 = vcmask 375808
        %v2533 = vsel %vm2532, %v2529, %v2531
        %v2535 = vadd.f32 %v2523, %v2533
        %v2536 = vld [vmem:[#allocation4 + $0xf3] ss:$0 sm:$0xff]
        %v2537 = vld [vmem:[#allocation4 + $0xfb] ss:$0 sm:$0xff]
        %2540 = vrot.lane.b32.xlu0 %v2536, 45
        %v2541 = vpop.permute.xlu0 %2540
        %2542 = vrot.lane.b32.xlu0 %v2537, 45
        %v2543 = vpop.permute.xlu0 %2542
        %vm2544 = vcmask 367616
        %v2545 = vsel %vm2544, %v2541, %v2543
        %v2547 = vadd.f32 %v2535, %v2545
        %v2548 = vld [vmem:[#allocation4 + $0xf4] ss:$0 sm:$0xff]
        %v2549 = vld [vmem:[#allocation4 + $0xfc] ss:$0 sm:$0xff]
        %2552 = vrot.lane.b32.xlu0 %v2548, 44
        %v2553 = vpop.permute.xlu0 %2552
        %2554 = vrot.lane.b32.xlu0 %v2549, 44
        %v2555 = vpop.permute.xlu0 %2554
        %v2556 = vsel %vm947, %v2553, %v2555
        %v2558 = vadd.f32 %v2547, %v2556
        %v2559 = vld [vmem:[#allocation4 + $0xf5] ss:$0 sm:$0xff]
        %v2560 = vld [vmem:[#allocation4 + $0xfd] ss:$0 sm:$0xff]
        %2563 = vrot.lane.b32.xlu0 %v2559, 43
        %v2564 = vpop.permute.xlu0 %2563
        %2565 = vrot.lane.b32.xlu0 %v2560, 43
        %v2566 = vpop.permute.xlu0 %2565
        %vm2567 = vcmask 351232
        %v2568 = vsel %vm2567, %v2564, %v2566
        %v2570 = vadd.f32 %v2558, %v2568
        %v2571 = vld [vmem:[#allocation4 + $0xf6] ss:$0 sm:$0xff]
        %v2572 = vld [vmem:[#allocation4 + $0xfe] ss:$0 sm:$0xff]
        %2575 = vrot.lane.b32.xlu0 %v2571, 42
        %v2576 = vpop.permute.xlu0 %2575
        %2577 = vrot.lane.b32.xlu0 %v2572, 42
        %v2578 = vpop.permute.xlu0 %2577
        %vm2579 = vcmask 343040
        %v2580 = vsel %vm2579, %v2576, %v2578
        %v2582 = vadd.f32 %v2570, %v2580
        %v2583 = vld [vmem:[#allocation4 + $0xf7] ss:$0 sm:$0xff]
        %v2584 = vld [vmem:[#allocation4 + $0xff] ss:$0 sm:$0xff]
        %2587 = vrot.lane.b32.xlu0 %v2583, 41
        %v2588 = vpop.permute.xlu0 %2587
        %2589 = vrot.lane.b32.xlu0 %v2584, 41
        %v2590 = vpop.permute.xlu0 %2589
        %vm2591 = vcmask 334848
        %v2592 = vsel %vm2591, %v2588, %v2590
        %v2594 = vadd.f32 %v2582, %v2592
        %v2595 = vld [vmem:[#allocation4 + $0x108] ss:$0 sm:$0xff]
        %v2596 = vld [vmem:[#allocation4 + $0x110] ss:$0 sm:$0xff]
        %2599 = vrot.lane.b32.xlu0 %v2595, 40
        %v2600 = vpop.permute.xlu0 %2599
        %2601 = vrot.lane.b32.xlu0 %v2596, 40
        %v2602 = vpop.permute.xlu0 %2601
        %vm2603 = vcmask 326656
        %v2604 = vsel %vm2603, %v2600, %v2602
        %v2606 = vadd.f32 %v2594, %v2604
        %v2607 = vld [vmem:[#allocation4 + $0x109] ss:$0 sm:$0xff]
        %v2608 = vld [vmem:[#allocation4 + $0x111] ss:$0 sm:$0xff]
        %2611 = vrot.lane.b32.xlu0 %v2607, 39
        %v2612 = vpop.permute.xlu0 %2611
        %2613 = vrot.lane.b32.xlu0 %v2608, 39
        %v2614 = vpop.permute.xlu0 %2613
        %vm2615 = vcmask 318464
        %v2616 = vsel %vm2615, %v2612, %v2614
        %v2618 = vadd.f32 %v2606, %v2616
        %v2619 = vld [vmem:[#allocation4 + $0x10a] ss:$0 sm:$0xff]
        %v2620 = vld [vmem:[#allocation4 + $0x112] ss:$0 sm:$0xff]
        %2623 = vrot.lane.b32.xlu0 %v2619, 38
        %v2624 = vpop.permute.xlu0 %2623
        %2625 = vrot.lane.b32.xlu0 %v2620, 38
        %v2626 = vpop.permute.xlu0 %2625
        %vm2627 = vcmask 310272
        %v2628 = vsel %vm2627, %v2624, %v2626
        %v2630 = vadd.f32 %v2618, %v2628
        %v2631 = vld [vmem:[#allocation4 + $0x10b] ss:$0 sm:$0xff]
        %v2632 = vld [vmem:[#allocation4 + $0x113] ss:$0 sm:$0xff]
        %2635 = vrot.lane.b32.xlu0 %v2631, 37
        %v2636 = vpop.permute.xlu0 %2635
        %2637 = vrot.lane.b32.xlu0 %v2632, 37
        %v2638 = vpop.permute.xlu0 %2637
        %vm2639 = vcmask 302080
        %v2640 = vsel %vm2639, %v2636, %v2638
        %v2642 = vadd.f32 %v2630, %v2640
        %v2643 = vld [vmem:[#allocation4 + $0x10c] ss:$0 sm:$0xff]
        %v2644 = vld [vmem:[#allocation4 + $0x114] ss:$0 sm:$0xff]
        %2647 = vrot.lane.b32.xlu0 %v2643, 36
        %v2648 = vpop.permute.xlu0 %2647
        %2649 = vrot.lane.b32.xlu0 %v2644, 36
        %v2650 = vpop.permute.xlu0 %2649
        %vm2651 = vcmask 293888
        %v2652 = vsel %vm2651, %v2648, %v2650
        %v2654 = vadd.f32 %v2642, %v2652
        %v2655 = vld [vmem:[#allocation4 + $0x10d] ss:$0 sm:$0xff]
        %v2656 = vld [vmem:[#allocation4 + $0x115] ss:$0 sm:$0xff]
        %2659 = vrot.lane.b32.xlu0 %v2655, 35
        %v2660 = vpop.permute.xlu0 %2659
        %2661 = vrot.lane.b32.xlu0 %v2656, 35
        %v2662 = vpop.permute.xlu0 %2661
        %vm2663 = vcmask 285696
        %v2664 = vsel %vm2663, %v2660, %v2662
        %v2666 = vadd.f32 %v2654, %v2664
        %v2667 = vld [vmem:[#allocation4 + $0x10e] ss:$0 sm:$0xff]
        %v2668 = vld [vmem:[#allocation4 + $0x116] ss:$0 sm:$0xff]
        %2671 = vrot.lane.b32.xlu0 %v2667, 34
        %v2672 = vpop.permute.xlu0 %2671
        %2673 = vrot.lane.b32.xlu0 %v2668, 34
        %v2674 = vpop.permute.xlu0 %2673
        %vm2675 = vcmask 277504
        %v2676 = vsel %vm2675, %v2672, %v2674
        %v2678 = vadd.f32 %v2666, %v2676
        %v2679 = vld [vmem:[#allocation4 + $0x10f] ss:$0 sm:$0xff]
        %v2680 = vld [vmem:[#allocation4 + $0x117] ss:$0 sm:$0xff]
        %2683 = vrot.lane.b32.xlu0 %v2679, 33
        %v2684 = vpop.permute.xlu0 %2683
        %2685 = vrot.lane.b32.xlu0 %v2680, 33
        %v2686 = vpop.permute.xlu0 %2685
        %vm2687 = vcmask 269312
        %v2688 = vsel %vm2687, %v2684, %v2686
        %v2690 = vadd.f32 %v2678, %v2688
        %v2691 = vld [vmem:[#allocation4 + $0x120] ss:$0 sm:$0xff]
        %v2692 = vld [vmem:[#allocation4 + $0x128] ss:$0 sm:$0xff]
        %2695 = vrot.lane.b32.xlu0 %v2691, 32
        %v2696 = vpop.permute.xlu0 %2695
        %2697 = vrot.lane.b32.xlu0 %v2692, 32
        %v2698 = vpop.permute.xlu0 %2697
        %vm2699 = vcmask 261120
        %v2700 = vsel %vm2699, %v2696, %v2698
        %v2702 = vadd.f32 %v2690, %v2700
        %v2703 = vld [vmem:[#allocation4 + $0x121] ss:$0 sm:$0xff]
        %v2704 = vld [vmem:[#allocation4 + $0x129] ss:$0 sm:$0xff]
        %2707 = vrot.lane.b32.xlu0 %v2703, 31
        %v2708 = vpop.permute.xlu0 %2707
        %2709 = vrot.lane.b32.xlu0 %v2704, 31
        %v2710 = vpop.permute.xlu0 %2709
        %vm2711 = vcmask 252928
        %v2712 = vsel %vm2711, %v2708, %v2710
        %v2714 = vadd.f32 %v2702, %v2712
        %v2715 = vld [vmem:[#allocation4 + $0x122] ss:$0 sm:$0xff]
        %v2716 = vld [vmem:[#allocation4 + $0x12a] ss:$0 sm:$0xff]
        %2719 = vrot.lane.b32.xlu0 %v2715, 30
        %v2720 = vpop.permute.xlu0 %2719
        %2721 = vrot.lane.b32.xlu0 %v2716, 30
        %v2722 = vpop.permute.xlu0 %2721
        %vm2723 = vcmask 244736
        %v2724 = vsel %vm2723, %v2720, %v2722
        %v2726 = vadd.f32 %v2714, %v2724
        %v2727 = vld [vmem:[#allocation4 + $0x123] ss:$0 sm:$0xff]
        %v2728 = vld [vmem:[#allocation4 + $0x12b] ss:$0 sm:$0xff]
        %2731 = vrot.lane.b32.xlu0 %v2727, 29
        %v2732 = vpop.permute.xlu0 %2731
        %2733 = vrot.lane.b32.xlu0 %v2728, 29
        %v2734 = vpop.permute.xlu0 %2733
        %vm2735 = vcmask 236544
        %v2736 = vsel %vm2735, %v2732, %v2734
        %v2738 = vadd.f32 %v2726, %v2736
        %v2739 = vld [vmem:[#allocation4 + $0x124] ss:$0 sm:$0xff]
        %v2740 = vld [vmem:[#allocation4 + $0x12c] ss:$0 sm:$0xff]
        %2743 = vrot.lane.b32.xlu0 %v2739, 28
        %v2744 = vpop.permute.xlu0 %2743
        %2745 = vrot.lane.b32.xlu0 %v2740, 28
        %v2746 = vpop.permute.xlu0 %2745
        %vm2747 = vcmask 228352
        %v2748 = vsel %vm2747, %v2744, %v2746
        %v2750 = vadd.f32 %v2738, %v2748
        %v2751 = vld [vmem:[#allocation4 + $0x125] ss:$0 sm:$0xff]
        %v2752 = vld [vmem:[#allocation4 + $0x12d] ss:$0 sm:$0xff]
        %2755 = vrot.lane.b32.xlu0 %v2751, 27
        %v2756 = vpop.permute.xlu0 %2755
        %2757 = vrot.lane.b32.xlu0 %v2752, 27
        %v2758 = vpop.permute.xlu0 %2757
        %vm2759 = vcmask 220160
        %v2760 = vsel %vm2759, %v2756, %v2758
        %v2762 = vadd.f32 %v2750, %v2760
        %v2763 = vld [vmem:[#allocation4 + $0x126] ss:$0 sm:$0xff]
        %v2764 = vld [vmem:[#allocation4 + $0x12e] ss:$0 sm:$0xff]
        %2767 = vrot.lane.b32.xlu0 %v2763, 26
        %v2768 = vpop.permute.xlu0 %2767
        %2769 = vrot.lane.b32.xlu0 %v2764, 26
        %v2770 = vpop.permute.xlu0 %2769
        %vm2771 = vcmask 211968
        %v2772 = vsel %vm2771, %v2768, %v2770
        %v2774 = vadd.f32 %v2762, %v2772
        %v2775 = vld [vmem:[#allocation4 + $0x127] ss:$0 sm:$0xff]
        %v2776 = vld [vmem:[#allocation4 + $0x12f] ss:$0 sm:$0xff]
        %2779 = vrot.lane.b32.xlu0 %v2775, 25
        %v2780 = vpop.permute.xlu0 %2779
        %2781 = vrot.lane.b32.xlu0 %v2776, 25
        %v2782 = vpop.permute.xlu0 %2781
        %vm2783 = vcmask 203776
        %v2784 = vsel %vm2783, %v2780, %v2782
        %v2786 = vadd.f32 %v2774, %v2784
        %v2787 = vld [vmem:[#allocation4 + $0x138] ss:$0 sm:$0xff]
        %v2788 = vld [vmem:[#allocation4 + $0x140] ss:$0 sm:$0xff]
        %2791 = vrot.lane.b32.xlu0 %v2787, 24
        %v2792 = vpop.permute.xlu0 %2791
        %2793 = vrot.lane.b32.xlu0 %v2788, 24
        %v2794 = vpop.permute.xlu0 %2793
        %vm2795 = vcmask 195584
        %v2796 = vsel %vm2795, %v2792, %v2794
        %v2798 = vadd.f32 %v2786, %v2796
        %v2799 = vld [vmem:[#allocation4 + $0x139] ss:$0 sm:$0xff]
        %v2800 = vld [vmem:[#allocation4 + $0x141] ss:$0 sm:$0xff]
        %2803 = vrot.lane.b32.xlu0 %v2799, 23
        %v2804 = vpop.permute.xlu0 %2803
        %2805 = vrot.lane.b32.xlu0 %v2800, 23
        %v2806 = vpop.permute.xlu0 %2805
        %vm2807 = vcmask 187392
        %v2808 = vsel %vm2807, %v2804, %v2806
        %v2810 = vadd.f32 %v2798, %v2808
        %v2811 = vld [vmem:[#allocation4 + $0x13a] ss:$0 sm:$0xff]
        %v2812 = vld [vmem:[#allocation4 + $0x142] ss:$0 sm:$0xff]
        %2815 = vrot.lane.b32.xlu0 %v2811, 22
        %v2816 = vpop.permute.xlu0 %2815
        %2817 = vrot.lane.b32.xlu0 %v2812, 22
        %v2818 = vpop.permute.xlu0 %2817
        %vm2819 = vcmask 179200
        %v2820 = vsel %vm2819, %v2816, %v2818
        %v2822 = vadd.f32 %v2810, %v2820
        %v2823 = vld [vmem:[#allocation4 + $0x13b] ss:$0 sm:$0xff]
        %v2824 = vld [vmem:[#allocation4 + $0x143] ss:$0 sm:$0xff]
        %2827 = vrot.lane.b32.xlu0 %v2823, 21
        %v2828 = vpop.permute.xlu0 %2827
        %2829 = vrot.lane.b32.xlu0 %v2824, 21
        %v2830 = vpop.permute.xlu0 %2829
        %vm2831 = vcmask 171008
        %v2832 = vsel %vm2831, %v2828, %v2830
        %v2834 = vadd.f32 %v2822, %v2832
        %v2835 = vld [vmem:[#allocation4 + $0x13c] ss:$0 sm:$0xff]
        %v2836 = vld [vmem:[#allocation4 + $0x144] ss:$0 sm:$0xff]
        %2839 = vrot.lane.b32.xlu0 %v2835, 20
        %v2840 = vpop.permute.xlu0 %2839
        %2841 = vrot.lane.b32.xlu0 %v2836, 20
        %v2842 = vpop.permute.xlu0 %2841
        %vm2843 = vcmask 162816
        %v2844 = vsel %vm2843, %v2840, %v2842
        %v2846 = vadd.f32 %v2834, %v2844
        %v2847 = vld [vmem:[#allocation4 + $0x13d] ss:$0 sm:$0xff]
        %v2848 = vld [vmem:[#allocation4 + $0x145] ss:$0 sm:$0xff]
        %2851 = vrot.lane.b32.xlu0 %v2847, 19
        %v2852 = vpop.permute.xlu0 %2851
        %2853 = vrot.lane.b32.xlu0 %v2848, 19
        %v2854 = vpop.permute.xlu0 %2853
        %vm2855 = vcmask 154624
        %v2856 = vsel %vm2855, %v2852, %v2854
        %v2858 = vadd.f32 %v2846, %v2856
        %v2859 = vld [vmem:[#allocation4 + $0x13e] ss:$0 sm:$0xff]
        %v2860 = vld [vmem:[#allocation4 + $0x146] ss:$0 sm:$0xff]
        %2863 = vrot.lane.b32.xlu0 %v2859, 18
        %v2864 = vpop.permute.xlu0 %2863
        %2865 = vrot.lane.b32.xlu0 %v2860, 18
        %v2866 = vpop.permute.xlu0 %2865
        %vm2867 = vcmask 146432
        %v2868 = vsel %vm2867, %v2864, %v2866
        %v2870 = vadd.f32 %v2858, %v2868
        %v2871 = vld [vmem:[#allocation4 + $0x13f] ss:$0 sm:$0xff]
        %v2872 = vld [vmem:[#allocation4 + $0x147] ss:$0 sm:$0xff]
        %2875 = vrot.lane.b32.xlu0 %v2871, 17
        %v2876 = vpop.permute.xlu0 %2875
        %2877 = vrot.lane.b32.xlu0 %v2872, 17
        %v2878 = vpop.permute.xlu0 %2877
        %vm2879 = vcmask 138240
        %v2880 = vsel %vm2879, %v2876, %v2878
        %v2882 = vadd.f32 %v2870, %v2880
        %v2883 = vld [vmem:[#allocation4 + $0x150] ss:$0 sm:$0xff]
        %v2884 = vld [vmem:[#allocation4 + $0x158] ss:$0 sm:$0xff]
        %2887 = vrot.lane.b32.xlu0 %v2883, 16
        %v2888 = vpop.permute.xlu0 %2887
        %2889 = vrot.lane.b32.xlu0 %v2884, 16
        %v2890 = vpop.permute.xlu0 %2889
        %vm2891 = vcmask 130048
        %v2892 = vsel %vm2891, %v2888, %v2890
        %v2894 = vadd.f32 %v2882, %v2892
        %v2895 = vld [vmem:[#allocation4 + $0x151] ss:$0 sm:$0xff]
        %v2896 = vld [vmem:[#allocation4 + $0x159] ss:$0 sm:$0xff]
        %2899 = vrot.lane.b32.xlu0 %v2895, 15
        %v2900 = vpop.permute.xlu0 %2899
        %2901 = vrot.lane.b32.xlu0 %v2896, 15
        %v2902 = vpop.permute.xlu0 %2901
        %vm2903 = vcmask 121856
        %v2904 = vsel %vm2903, %v2900, %v2902
        %v2906 = vadd.f32 %v2894, %v2904
        %v2907 = vld [vmem:[#allocation4 + $0x152] ss:$0 sm:$0xff]
        %v2908 = vld [vmem:[#allocation4 + $0x15a] ss:$0 sm:$0xff]
        %2911 = vrot.lane.b32.xlu0 %v2907, 14
        %v2912 = vpop.permute.xlu0 %2911
        %2913 = vrot.lane.b32.xlu0 %v2908, 14
        %v2914 = vpop.permute.xlu0 %2913
        %vm2915 = vcmask 113664
        %v2916 = vsel %vm2915, %v2912, %v2914
        %v2918 = vadd.f32 %v2906, %v2916
        %v2919 = vld [vmem:[#allocation4 + $0x153] ss:$0 sm:$0xff]
        %v2920 = vld [vmem:[#allocation4 + $0x15b] ss:$0 sm:$0xff]
        %2923 = vrot.lane.b32.xlu0 %v2919, 13
        %v2924 = vpop.permute.xlu0 %2923
        %2925 = vrot.lane.b32.xlu0 %v2920, 13
        %v2926 = vpop.permute.xlu0 %2925
        %vm2927 = vcmask 105472
        %v2928 = vsel %vm2927, %v2924, %v2926
        %v2930 = vadd.f32 %v2918, %v2928
        %v2931 = vld [vmem:[#allocation4 + $0x154] ss:$0 sm:$0xff]
        %v2932 = vld [vmem:[#allocation4 + $0x15c] ss:$0 sm:$0xff]
        %2935 = vrot.lane.b32.xlu0 %v2931, 12
        %v2936 = vpop.permute.xlu0 %2935
        %2937 = vrot.lane.b32.xlu0 %v2932, 12
        %v2938 = vpop.permute.xlu0 %2937
        %vm2939 = vcmask 97280
        %v2940 = vsel %vm2939, %v2936, %v2938
        %v2942 = vadd.f32 %v2930, %v2940
        %v2943 = vld [vmem:[#allocation4 + $0x155] ss:$0 sm:$0xff]
        %v2944 = vld [vmem:[#allocation4 + $0x15d] ss:$0 sm:$0xff]
        %2947 = vrot.lane.b32.xlu0 %v2943, 11
        %v2948 = vpop.permute.xlu0 %2947
        %2949 = vrot.lane.b32.xlu0 %v2944, 11
        %v2950 = vpop.permute.xlu0 %2949
        %vm2951 = vcmask 89088
        %v2952 = vsel %vm2951, %v2948, %v2950
        %v2954 = vadd.f32 %v2942, %v2952
        %v2955 = vld [vmem:[#allocation4 + $0x156] ss:$0 sm:$0xff]
        %v2956 = vld [vmem:[#allocation4 + $0x15e] ss:$0 sm:$0xff]
        %2959 = vrot.lane.b32.xlu0 %v2955, 10
        %v2960 = vpop.permute.xlu0 %2959
        %2961 = vrot.lane.b32.xlu0 %v2956, 10
        %v2962 = vpop.permute.xlu0 %2961
        %vm2963 = vcmask 80896
        %v2964 = vsel %vm2963, %v2960, %v2962
        %v2966 = vadd.f32 %v2954, %v2964
        %v2967 = vld [vmem:[#allocation4 + $0x157] ss:$0 sm:$0xff]
        %v2968 = vld [vmem:[#allocation4 + $0x15f] ss:$0 sm:$0xff]
        %2971 = vrot.lane.b32.xlu0 %v2967, 9
        %v2972 = vpop.permute.xlu0 %2971
        %2973 = vrot.lane.b32.xlu0 %v2968, 9
        %v2974 = vpop.permute.xlu0 %2973
        %vm2975 = vcmask 72704
        %v2976 = vsel %vm2975, %v2972, %v2974
        %v2978 = vadd.f32 %v2966, %v2976
        %v2979 = vld [vmem:[#allocation4 + $0x168] ss:$0 sm:$0xff]
        %v2980 = vld [vmem:[#allocation4 + $0x170] ss:$0 sm:$0xff]
        %2983 = vrot.lane.b32.xlu0 %v2979, 8
        %v2984 = vpop.permute.xlu0 %2983
        %2985 = vrot.lane.b32.xlu0 %v2980, 8
        %v2986 = vpop.permute.xlu0 %2985
        %vm2987 = vcmask 64512
        %v2988 = vsel %vm2987, %v2984, %v2986
        %v2990 = vadd.f32 %v2978, %v2988
        %v2991 = vld [vmem:[#allocation4 + $0x169] ss:$0 sm:$0xff]
        %v2992 = vld [vmem:[#allocation4 + $0x171] ss:$0 sm:$0xff]
        %2995 = vrot.lane.b32.xlu0 %v2991, 7
        %v2996 = vpop.permute.xlu0 %2995
        %2997 = vrot.lane.b32.xlu0 %v2992, 7
        %v2998 = vpop.permute.xlu0 %2997
        %vm2999 = vcmask 56320
        %v3000 = vsel %vm2999, %v2996, %v2998
        %v3002 = vadd.f32 %v2990, %v3000
        %v3003 = vld [vmem:[#allocation4 + $0x16a] ss:$0 sm:$0xff]
        %v3004 = vld [vmem:[#allocation4 + $0x172] ss:$0 sm:$0xff]
        %3007 = vrot.lane.b32.xlu0 %v3003, 6
        %v3008 = vpop.permute.xlu0 %3007
        %3009 = vrot.lane.b32.xlu0 %v3004, 6
        %v3010 = vpop.permute.xlu0 %3009
        %vm3011 = vcmask 48128
        %v3012 = vsel %vm3011, %v3008, %v3010
        %v3014 = vadd.f32 %v3002, %v3012
        %v3015 = vld [vmem:[#allocation4 + $0x16b] ss:$0 sm:$0xff]
        %v3016 = vld [vmem:[#allocation4 + $0x173] ss:$0 sm:$0xff]
        %3019 = vrot.lane.b32.xlu0 %v3015, 5
        %v3020 = vpop.permute.xlu0 %3019
        %3021 = vrot.lane.b32.xlu0 %v3016, 5
        %v3022 = vpop.permute.xlu0 %3021
        %vm3023 = vcmask 39936
        %v3024 = vsel %vm3023, %v3020, %v3022
        %v3026 = vadd.f32 %v3014, %v3024
        %v3027 = vld [vmem:[#allocation4 + $0x16c] ss:$0 sm:$0xff]
        %v3028 = vld [vmem:[#allocation4 + $0x174] ss:$0 sm:$0xff]
        %3031 = vrot.lane.b32.xlu0 %v3027, 4
        %v3032 = vpop.permute.xlu0 %3031
        %3033 = vrot.lane.b32.xlu0 %v3028, 4
        %v3034 = vpop.permute.xlu0 %3033
        %vm3035 = vcmask 31744
        %v3036 = vsel %vm3035, %v3032, %v3034
        %v3038 = vadd.f32 %v3026, %v3036
        %v3039 = vld [vmem:[#allocation4 + $0x16d] ss:$0 sm:$0xff]
        %v3040 = vld [vmem:[#allocation4 + $0x175] ss:$0 sm:$0xff]
        %3043 = vrot.lane.b32.xlu0 %v3039, 3
        %v3044 = vpop.permute.xlu0 %3043
        %3045 = vrot.lane.b32.xlu0 %v3040, 3
        %v3046 = vpop.permute.xlu0 %3045
        %vm3047 = vcmask 23552
        %v3048 = vsel %vm3047, %v3044, %v3046
        %v3050 = vadd.f32 %v3038, %v3048
        %v3051 = vld [vmem:[#allocation4 + $0x16e] ss:$0 sm:$0xff]
        %v3052 = vld [vmem:[#allocation4 + $0x176] ss:$0 sm:$0xff]
        %3055 = vrot.lane.b32.xlu0 %v3051, 2
        %v3056 = vpop.permute.xlu0 %3055
        %3057 = vrot.lane.b32.xlu0 %v3052, 2
        %v3058 = vpop.permute.xlu0 %3057
        %vm3059 = vcmask 15360
        %v3060 = vsel %vm3059, %v3056, %v3058
        %v3062 = vadd.f32 %v3050, %v3060
        %v3063 = vld [vmem:[#allocation4 + $0x16f] ss:$0 sm:$0xff]
        %v3064 = vld [vmem:[#allocation4 + $0x177] ss:$0 sm:$0xff]
        %3067 = vrot.lane.b32.xlu0 %v3063, 1
        %v3068 = vpop.permute.xlu0 %3067
        %3069 = vrot.lane.b32.xlu0 %v3064, 1
        %v3070 = vpop.permute.xlu0 %3069
        %vm3071 = vcmask 7168
        %v3072 = vsel %vm3071, %v3068, %v3070
        %v3074 = vadd.f32 %v3062, %v3072
        %v3075 = vld [vmem:[#allocation4 + $0x188] ss:$0 sm:$0xff]
        %v3076 = vadd.f32 %v3074, %v3075
        %v3077 = vld [vmem:[#allocation4 + $0x189] ss:$0 sm:$0xff]
        %3079 = vrot.lane.b32.xlu0 %v3077, 127
        %v3080 = vpop.permute.xlu0 %3079
        %v3082 = vadd.f32 %v3076, %v3080
        %v3083 = vld [vmem:[#allocation4 + $0x18a] ss:$0 sm:$0xff]
        %3085 = vrot.lane.b32.xlu0 %v3083, 126
        %v3086 = vpop.permute.xlu0 %3085
        %v3088 = vadd.f32 %v3082, %v3086
        %v3089 = vld [vmem:[#allocation4 + $0x18b] ss:$0 sm:$0xff]
        %3091 = vrot.lane.b32.xlu0 %v3089, 125
        %v3092 = vpop.permute.xlu0 %3091
        %v3094 = vadd.f32 %v3088, %v3092
        %v3095 = vld [vmem:[#allocation4 + $0x18c] ss:$0 sm:$0xff]
        %3097 = vrot.lane.b32.xlu0 %v3095, 124
        %v3098 = vpop.permute.xlu0 %3097
        %v3100 = vadd.f32 %v3094, %v3098
        %v3101 = vld [vmem:[#allocation4 + $0x18d] ss:$0 sm:$0xff]
        %3103 = vrot.lane.b32.xlu0 %v3101, 123
        %v3104 = vpop.permute.xlu0 %3103
        %v3106 = vadd.f32 %v3100, %v3104
        %v3107 = vld [vmem:[#allocation4 + $0x18e] ss:$0 sm:$0xff]
        %3109 = vrot.lane.b32.xlu0 %v3107, 122
        %v3110 = vpop.permute.xlu0 %3109
        %v3112 = vadd.f32 %v3106, %v3110
        %v3113 = vld [vmem:[#allocation4 + $0x18f] ss:$0 sm:$0xff]
        %3115 = vrot.lane.b32.xlu0 %v3113, 121
        %v3116 = vpop.permute.xlu0 %3115
        %v3118 = vadd.f32 %v3112, %v3116
        %v3119 = vld [vmem:[#allocation4 + $0x1a0] ss:$0 sm:$0xff]
        %3121 = vrot.lane.b32.xlu0 %v3119, 120
        %v3122 = vpop.permute.xlu0 %3121
        %v3124 = vadd.f32 %v3118, %v3122
        %v3125 = vld [vmem:[#allocation4 + $0x1a1] ss:$0 sm:$0xff]
        %3127 = vrot.lane.b32.xlu0 %v3125, 119
        %v3128 = vpop.permute.xlu0 %3127
        %v3130 = vadd.f32 %v3124, %v3128
        %v3131 = vld [vmem:[#allocation4 + $0x1a2] ss:$0 sm:$0xff]
        %3133 = vrot.lane.b32.xlu0 %v3131, 118
        %v3134 = vpop.permute.xlu0 %3133
        %v3136 = vadd.f32 %v3130, %v3134
        %v3137 = vld [vmem:[#allocation4 + $0x1a3] ss:$0 sm:$0xff]
        %3139 = vrot.lane.b32.xlu0 %v3137, 117
        %v3140 = vpop.permute.xlu0 %3139
        %v3142 = vadd.f32 %v3136, %v3140
        %v3143 = vld [vmem:[#allocation4 + $0x1a4] ss:$0 sm:$0xff]
        %3145 = vrot.lane.b32.xlu0 %v3143, 116
        %v3146 = vpop.permute.xlu0 %3145
        %v3148 = vadd.f32 %v3142, %v3146
        %v3149 = vld [vmem:[#allocation4 + $0x1a5] ss:$0 sm:$0xff]
        %3151 = vrot.lane.b32.xlu0 %v3149, 115
        %v3152 = vpop.permute.xlu0 %3151
        %v3154 = vadd.f32 %v3148, %v3152
        %v3155 = vld [vmem:[#allocation4 + $0x1a6] ss:$0 sm:$0xff]
        %3157 = vrot.lane.b32.xlu0 %v3155, 114
        %v3158 = vpop.permute.xlu0 %3157
        %v3160 = vadd.f32 %v3154, %v3158
        %v3161 = vld [vmem:[#allocation4 + $0x1a7] ss:$0 sm:$0xff]
        %3163 = vrot.lane.b32.xlu0 %v3161, 113
        %v3164 = vpop.permute.xlu0 %3163
        %v3166 = vadd.f32 %v3160, %v3164
        %v3167 = vld [vmem:[#allocation4 + $0x1b8] ss:$0 sm:$0xff]
        %3169 = vrot.lane.b32.xlu0 %v3167, 112
        %v3170 = vpop.permute.xlu0 %3169
        %v3172 = vadd.f32 %v3166, %v3170
        %v3173 = vld [vmem:[#allocation4 + $0x1b9] ss:$0 sm:$0xff]
        %3175 = vrot.lane.b32.xlu0 %v3173, 111
        %v3176 = vpop.permute.xlu0 %3175
        %v3178 = vadd.f32 %v3172, %v3176
        %v3179 = vld [vmem:[#allocation4 + $0x1ba] ss:$0 sm:$0xff]
        %3181 = vrot.lane.b32.xlu0 %v3179, 110
        %v3182 = vpop.permute.xlu0 %3181
        %v3184 = vadd.f32 %v3178, %v3182
        %v3185 = vld [vmem:[#allocation4 + $0x1bb] ss:$0 sm:$0xff]
        %3187 = vrot.lane.b32.xlu0 %v3185, 109
        %v3188 = vpop.permute.xlu0 %3187
        %v3190 = vadd.f32 %v3184, %v3188
        %v3191 = vld [vmem:[#allocation4 + $0x1bc] ss:$0 sm:$0xff]
        %3193 = vrot.lane.b32.xlu0 %v3191, 108
        %v3194 = vpop.permute.xlu0 %3193
        %v3196 = vadd.f32 %v3190, %v3194
        %v3197 = vld [vmem:[#allocation4 + $0x1bd] ss:$0 sm:$0xff]
        %3199 = vrot.lane.b32.xlu0 %v3197, 107
        %v3200 = vpop.permute.xlu0 %3199
        %v3202 = vadd.f32 %v3196, %v3200
        %v3203 = vld [vmem:[#allocation4 + $0x1be] ss:$0 sm:$0xff]
        %3205 = vrot.lane.b32.xlu0 %v3203, 106
        %v3206 = vpop.permute.xlu0 %3205
        %v3208 = vadd.f32 %v3202, %v3206
        %v3209 = vld [vmem:[#allocation4 + $0x1bf] ss:$0 sm:$0xff]
        %3211 = vrot.lane.b32.xlu0 %v3209, 105
        %v3212 = vpop.permute.xlu0 %3211
        %v3214 = vadd.f32 %v3208, %v3212
        %v3215 = vld [vmem:[#allocation4 + $0x1d0] ss:$0 sm:$0xff]
        %3217 = vrot.lane.b32.xlu0 %v3215, 104
        %v3218 = vpop.permute.xlu0 %3217
        %v3220 = vadd.f32 %v3214, %v3218
        %v3221 = vld [vmem:[#allocation4 + $0x1d1] ss:$0 sm:$0xff]
        %3223 = vrot.lane.b32.xlu0 %v3221, 103
        %v3224 = vpop.permute.xlu0 %3223
        %v3226 = vadd.f32 %v3220, %v3224
        %v3227 = vld [vmem:[#allocation4 + $0x1d2] ss:$0 sm:$0xff]
        %3229 = vrot.lane.b32.xlu0 %v3227, 102
        %v3230 = vpop.permute.xlu0 %3229
        %v3232 = vadd.f32 %v3226, %v3230
        %v3233 = vld [vmem:[#allocation4 + $0x1d3] ss:$0 sm:$0xff]
        %3235 = vrot.lane.b32.xlu0 %v3233, 101
        %v3236 = vpop.permute.xlu0 %3235
        %v3238 = vadd.f32 %v3232, %v3236
        %v3239 = vld [vmem:[#allocation4 + $0x1d4] ss:$0 sm:$0xff]
        %3241 = vrot.lane.b32.xlu0 %v3239, 100
        %v3242 = vpop.permute.xlu0 %3241
        %v3244 = vadd.f32 %v3238, %v3242
        %v3245 = vld [vmem:[#allocation4 + $0x1d5] ss:$0 sm:$0xff]
        %3247 = vrot.lane.b32.xlu0 %v3245, 99
        %v3248 = vpop.permute.xlu0 %3247
        %v3250 = vadd.f32 %v3244, %v3248
        %v3251 = vld [vmem:[#allocation4 + $0x1d6] ss:$0 sm:$0xff]
        %3253 = vrot.lane.b32.xlu0 %v3251, 98
        %v3254 = vpop.permute.xlu0 %3253
        %v3256 = vadd.f32 %v3250, %v3254
        %v3257 = vld [vmem:[#allocation4 + $0x1d7] ss:$0 sm:$0xff]
        %3259 = vrot.lane.b32.xlu0 %v3257, 97
        %v3260 = vpop.permute.xlu0 %3259
        %v3262 = vadd.f32 %v3256, %v3260
        %v3263 = vld [vmem:[#allocation4 + $0x1e8] ss:$0 sm:$0xff]
        %3265 = vrot.lane.b32.xlu0 %v3263, 96
        %v3266 = vpop.permute.xlu0 %3265
        %v3268 = vadd.f32 %v3262, %v3266
        %v3269 = vld [vmem:[#allocation4 + $0x1e9] ss:$0 sm:$0xff]
        %3271 = vrot.lane.b32.xlu0 %v3269, 95
        %v3272 = vpop.permute.xlu0 %3271
        %v3274 = vadd.f32 %v3268, %v3272
        %v3275 = vld [vmem:[#allocation4 + $0x1ea] ss:$0 sm:$0xff]
        %3277 = vrot.lane.b32.xlu0 %v3275, 94
        %v3278 = vpop.permute.xlu0 %3277
        %v3280 = vadd.f32 %v3274, %v3278
        %v3281 = vld [vmem:[#allocation4 + $0x1eb] ss:$0 sm:$0xff]
        %3283 = vrot.lane.b32.xlu0 %v3281, 93
        %v3284 = vpop.permute.xlu0 %3283
        %v3286 = vadd.f32 %v3280, %v3284
        %v3287 = vld [vmem:[#allocation4 + $0x1ec] ss:$0 sm:$0xff]
        %3289 = vrot.lane.b32.xlu0 %v3287, 92
        %v3290 = vpop.permute.xlu0 %3289
        %v3292 = vadd.f32 %v3286, %v3290
        %v3293 = vld [vmem:[#allocation4 + $0x1ed] ss:$0 sm:$0xff]
        %3295 = vrot.lane.b32.xlu0 %v3293, 91
        %v3296 = vpop.permute.xlu0 %3295
        %v3298 = vadd.f32 %v3292, %v3296
        %v3299 = vld [vmem:[#allocation4 + $0x1ee] ss:$0 sm:$0xff]
        %3301 = vrot.lane.b32.xlu0 %v3299, 90
        %v3302 = vpop.permute.xlu0 %3301
        %v3304 = vadd.f32 %v3298, %v3302
        %v3305 = vld [vmem:[#allocation4 + $0x1ef] ss:$0 sm:$0xff]
        %3307 = vrot.lane.b32.xlu0 %v3305, 89
        %v3308 = vpop.permute.xlu0 %3307
        %v3310 = vadd.f32 %v3304, %v3308
        %v3311 = vld [vmem:[#allocation4 + $0x200] ss:$0 sm:$0xff]
        %3313 = vrot.lane.b32.xlu0 %v3311, 88
        %v3314 = vpop.permute.xlu0 %3313
        %v3316 = vadd.f32 %v3310, %v3314
        %v3317 = vld [vmem:[#allocation4 + $0x201] ss:$0 sm:$0xff]
        %3319 = vrot.lane.b32.xlu0 %v3317, 87
        %v3320 = vpop.permute.xlu0 %3319
        %v3322 = vadd.f32 %v3316, %v3320
        %v3323 = vld [vmem:[#allocation4 + $0x202] ss:$0 sm:$0xff]
        %3325 = vrot.lane.b32.xlu0 %v3323, 86
        %v3326 = vpop.permute.xlu0 %3325
        %v3328 = vadd.f32 %v3322, %v3326
        %v3329 = vld [vmem:[#allocation4 + $0x203] ss:$0 sm:$0xff]
        %3331 = vrot.lane.b32.xlu0 %v3329, 85
        %v3332 = vpop.permute.xlu0 %3331
        %v3334 = vadd.f32 %v3328, %v3332
        %v3335 = vld [vmem:[#allocation4 + $0x204] ss:$0 sm:$0xff]
        %3337 = vrot.lane.b32.xlu0 %v3335, 84
        %v3338 = vpop.permute.xlu0 %3337
        %v3340 = vadd.f32 %v3334, %v3338
        %v3341 = vld [vmem:[#allocation4 + $0x205] ss:$0 sm:$0xff]
        %3343 = vrot.lane.b32.xlu0 %v3341, 83
        %v3344 = vpop.permute.xlu0 %3343
        %v3346 = vadd.f32 %v3340, %v3344
        %v3347 = vld [vmem:[#allocation4 + $0x206] ss:$0 sm:$0xff]
        %3349 = vrot.lane.b32.xlu0 %v3347, 82
        %v3350 = vpop.permute.xlu0 %3349
        %v3352 = vadd.f32 %v3346, %v3350
        %v3353 = vld [vmem:[#allocation4 + $0x207] ss:$0 sm:$0xff]
        %3355 = vrot.lane.b32.xlu0 %v3353, 81
        %v3356 = vpop.permute.xlu0 %3355
        %v3358 = vadd.f32 %v3352, %v3356
        %v3359 = vld [vmem:[#allocation4 + $0x218] ss:$0 sm:$0xff]
        %3361 = vrot.lane.b32.xlu0 %v3359, 80
        %v3362 = vpop.permute.xlu0 %3361
        %v3364 = vadd.f32 %v3358, %v3362
        %v3365 = vld [vmem:[#allocation4 + $0x219] ss:$0 sm:$0xff]
        %3367 = vrot.lane.b32.xlu0 %v3365, 79
        %v3368 = vpop.permute.xlu0 %3367
        %v3370 = vadd.f32 %v3364, %v3368
        %v3371 = vld [vmem:[#allocation4 + $0x21a] ss:$0 sm:$0xff]
        %3373 = vrot.lane.b32.xlu0 %v3371, 78
        %v3374 = vpop.permute.xlu0 %3373
        %v3376 = vadd.f32 %v3370, %v3374
        %v3377 = vld [vmem:[#allocation4 + $0x21b] ss:$0 sm:$0xff]
        %3379 = vrot.lane.b32.xlu0 %v3377, 77
        %v3380 = vpop.permute.xlu0 %3379
        %v3382 = vadd.f32 %v3376, %v3380
        %v3383 = vld [vmem:[#allocation4 + $0x21c] ss:$0 sm:$0xff]
        %3385 = vrot.lane.b32.xlu0 %v3383, 76
        %v3386 = vpop.permute.xlu0 %3385
        %v3388 = vadd.f32 %v3382, %v3386
        %v3389 = vld [vmem:[#allocation4 + $0x21d] ss:$0 sm:$0xff]
        %3391 = vrot.lane.b32.xlu0 %v3389, 75
        %v3392 = vpop.permute.xlu0 %3391
        %v3394 = vadd.f32 %v3388, %v3392
        %v3395 = vld [vmem:[#allocation4 + $0x21e] ss:$0 sm:$0xff]
        %3397 = vrot.lane.b32.xlu0 %v3395, 74
        %v3398 = vpop.permute.xlu0 %3397
        %v3400 = vadd.f32 %v3394, %v3398
        %v3401 = vld [vmem:[#allocation4 + $0x21f] ss:$0 sm:$0xff]
        %3403 = vrot.lane.b32.xlu0 %v3401, 73
        %v3404 = vpop.permute.xlu0 %3403
        %v3406 = vadd.f32 %v3400, %v3404
        %v3407 = vld [vmem:[#allocation4 + $0x230] ss:$0 sm:$0xff]
        %3409 = vrot.lane.b32.xlu0 %v3407, 72
        %v3410 = vpop.permute.xlu0 %3409
        %v3412 = vadd.f32 %v3406, %v3410
        %v3413 = vld [vmem:[#allocation4 + $0x231] ss:$0 sm:$0xff]
        %3415 = vrot.lane.b32.xlu0 %v3413, 71
        %v3416 = vpop.permute.xlu0 %3415
        %v3418 = vadd.f32 %v3412, %v3416
        %v3419 = vld [vmem:[#allocation4 + $0x232] ss:$0 sm:$0xff]
        %3421 = vrot.lane.b32.xlu0 %v3419, 70
        %v3422 = vpop.permute.xlu0 %3421
        %v3424 = vadd.f32 %v3418, %v3422
        %v3425 = vld [vmem:[#allocation4 + $0x233] ss:$0 sm:$0xff]
        %3427 = vrot.lane.b32.xlu0 %v3425, 69
        %v3428 = vpop.permute.xlu0 %3427
        %v3430 = vadd.f32 %v3424, %v3428
        %v3431 = vld [vmem:[#allocation4 + $0x234] ss:$0 sm:$0xff]
        %3433 = vrot.lane.b32.xlu0 %v3431, 68
        %v3434 = vpop.permute.xlu0 %3433
        %v3436 = vadd.f32 %v3430, %v3434
        %v3437 = vld [vmem:[#allocation4 + $0x235] ss:$0 sm:$0xff]
        %3439 = vrot.lane.b32.xlu0 %v3437, 67
        %v3440 = vpop.permute.xlu0 %3439
        %v3442 = vadd.f32 %v3436, %v3440
        %v3443 = vld [vmem:[#allocation4 + $0x236] ss:$0 sm:$0xff]
        %3445 = vrot.lane.b32.xlu0 %v3443, 66
        %v3446 = vpop.permute.xlu0 %3445
        %v3448 = vadd.f32 %v3442, %v3446
        %v3449 = vld [vmem:[#allocation4 + $0x237] ss:$0 sm:$0xff]
        %3451 = vrot.lane.b32.xlu0 %v3449, 65
        %v3452 = vpop.permute.xlu0 %3451
        %v3454 = vadd.f32 %v3448, %v3452
        %v3455 = vld [vmem:[#allocation4 + $0x248] ss:$0 sm:$0xff]
        %3457 = vrot.lane.b32.xlu0 %v3455, 64
        %v3458 = vpop.permute.xlu0 %3457
        %v3460 = vadd.f32 %v3454, %v3458
        %v3461 = vld [vmem:[#allocation4 + $0x249] ss:$0 sm:$0xff]
        %v3462 = vld [vmem:[#allocation4 + $0x251] ss:$0 sm:$0xff]
        %3465 = vrot.lane.b32.xlu0 %v3461, 63
        %v3466 = vpop.permute.xlu0 %3465
        %3467 = vrot.lane.b32.xlu0 %v3462, 63
        %v3468 = vpop.permute.xlu0 %3467
        %v3469 = vsel %vm2329, %v3466, %v3468
        %v3471 = vadd.f32 %v3460, %v3469
        %v3472 = vld [vmem:[#allocation4 + $0x24a] ss:$0 sm:$0xff]
        %v3473 = vld [vmem:[#allocation4 + $0x252] ss:$0 sm:$0xff]
        %3476 = vrot.lane.b32.xlu0 %v3472, 62
        %v3477 = vpop.permute.xlu0 %3476
        %3478 = vrot.lane.b32.xlu0 %v3473, 62
        %v3479 = vpop.permute.xlu0 %3478
        %v3480 = vsel %vm2341, %v3477, %v3479
        %v3482 = vadd.f32 %v3471, %v3480
        %v3483 = vld [vmem:[#allocation4 + $0x24b] ss:$0 sm:$0xff]
        %v3484 = vld [vmem:[#allocation4 + $0x253] ss:$0 sm:$0xff]
        %3487 = vrot.lane.b32.xlu0 %v3483, 61
        %v3488 = vpop.permute.xlu0 %3487
        %3489 = vrot.lane.b32.xlu0 %v3484, 61
        %v3490 = vpop.permute.xlu0 %3489
        %v3491 = vsel %vm2353, %v3488, %v3490
        %v3493 = vadd.f32 %v3482, %v3491
        %v3494 = vld [vmem:[#allocation4 + $0x24c] ss:$0 sm:$0xff]
        %v3495 = vld [vmem:[#allocation4 + $0x254] ss:$0 sm:$0xff]
        %3498 = vrot.lane.b32.xlu0 %v3494, 60
        %v3499 = vpop.permute.xlu0 %3498
        %3500 = vrot.lane.b32.xlu0 %v3495, 60
        %v3501 = vpop.permute.xlu0 %3500
        %v3502 = vsel %vm1346, %v3499, %v3501
        %v3504 = vadd.f32 %v3493, %v3502
        %v3505 = vld [vmem:[#allocation4 + $0x24d] ss:$0 sm:$0xff]
        %v3506 = vld [vmem:[#allocation4 + $0x255] ss:$0 sm:$0xff]
        %3509 = vrot.lane.b32.xlu0 %v3505, 59
        %v3510 = vpop.permute.xlu0 %3509
        %3511 = vrot.lane.b32.xlu0 %v3506, 59
        %v3512 = vpop.permute.xlu0 %3511
        %v3513 = vsel %vm2376, %v3510, %v3512
        %v3515 = vadd.f32 %v3504, %v3513
        %v3516 = vld [vmem:[#allocation4 + $0x24e] ss:$0 sm:$0xff]
        %v3517 = vld [vmem:[#allocation4 + $0x256] ss:$0 sm:$0xff]
        %3520 = vrot.lane.b32.xlu0 %v3516, 58
        %v3521 = vpop.permute.xlu0 %3520
        %3522 = vrot.lane.b32.xlu0 %v3517, 58
        %v3523 = vpop.permute.xlu0 %3522
        %v3524 = vsel %vm2388, %v3521, %v3523
        %v3526 = vadd.f32 %v3515, %v3524
        %v3527 = vld [vmem:[#allocation4 + $0x24f] ss:$0 sm:$0xff]
        %v3528 = vld [vmem:[#allocation4 + $0x257] ss:$0 sm:$0xff]
        %3531 = vrot.lane.b32.xlu0 %v3527, 57
        %v3532 = vpop.permute.xlu0 %3531
        %3533 = vrot.lane.b32.xlu0 %v3528, 57
        %v3534 = vpop.permute.xlu0 %3533
        %v3535 = vsel %vm2400, %v3532, %v3534
        %v3537 = vadd.f32 %v3526, %v3535
        %v3538 = vld [vmem:[#allocation4 + $0x260] ss:$0 sm:$0xff]
        %v3539 = vld [vmem:[#allocation4 + $0x268] ss:$0 sm:$0xff]
        %3542 = vrot.lane.b32.xlu0 %v3538, 56
        %v3543 = vpop.permute.xlu0 %3542
        %3544 = vrot.lane.b32.xlu0 %v3539, 56
        %v3545 = vpop.permute.xlu0 %3544
        %v3546 = vsel %vm2412, %v3543, %v3545
        %v3548 = vadd.f32 %v3537, %v3546
        %v3549 = vld [vmem:[#allocation4 + $0x261] ss:$0 sm:$0xff]
        %v3550 = vld [vmem:[#allocation4 + $0x269] ss:$0 sm:$0xff]
        %3553 = vrot.lane.b32.xlu0 %v3549, 55
        %v3554 = vpop.permute.xlu0 %3553
        %3555 = vrot.lane.b32.xlu0 %v3550, 55
        %v3556 = vpop.permute.xlu0 %3555
        %v3557 = vsel %vm2424, %v3554, %v3556
        %v3559 = vadd.f32 %v3548, %v3557
        %v3560 = vld [vmem:[#allocation4 + $0x262] ss:$0 sm:$0xff]
        %v3561 = vld [vmem:[#allocation4 + $0x26a] ss:$0 sm:$0xff]
        %3564 = vrot.lane.b32.xlu0 %v3560, 54
        %v3565 = vpop.permute.xlu0 %3564
        %3566 = vrot.lane.b32.xlu0 %v3561, 54
        %v3567 = vpop.permute.xlu0 %3566
        %v3568 = vsel %vm2436, %v3565, %v3567
        %v3570 = vadd.f32 %v3559, %v3568
        %v3571 = vld [vmem:[#allocation4 + $0x263] ss:$0 sm:$0xff]
        %v3572 = vld [vmem:[#allocation4 + $0x26b] ss:$0 sm:$0xff]
        %3575 = vrot.lane.b32.xlu0 %v3571, 53
        %v3576 = vpop.permute.xlu0 %3575
        %3577 = vrot.lane.b32.xlu0 %v3572, 53
        %v3578 = vpop.permute.xlu0 %3577
        %v3579 = vsel %vm2448, %v3576, %v3578
        %v3581 = vadd.f32 %v3570, %v3579
        %v3582 = vld [vmem:[#allocation4 + $0x264] ss:$0 sm:$0xff]
        %v3583 = vld [vmem:[#allocation4 + $0x26c] ss:$0 sm:$0xff]
        %3586 = vrot.lane.b32.xlu0 %v3582, 52
        %v3587 = vpop.permute.xlu0 %3586
        %3588 = vrot.lane.b32.xlu0 %v3583, 52
        %v3589 = vpop.permute.xlu0 %3588
        %v3590 = vsel %vm2460, %v3587, %v3589
        %v3592 = vadd.f32 %v3581, %v3590
        %v3593 = vld [vmem:[#allocation4 + $0x265] ss:$0 sm:$0xff]
        %v3594 = vld [vmem:[#allocation4 + $0x26d] ss:$0 sm:$0xff]
        %3597 = vrot.lane.b32.xlu0 %v3593, 51
        %v3598 = vpop.permute.xlu0 %3597
        %3599 = vrot.lane.b32.xlu0 %v3594, 51
        %v3600 = vpop.permute.xlu0 %3599
        %v3601 = vsel %vm2472, %v3598, %v3600
        %v3603 = vadd.f32 %v3592, %v3601
        %v3604 = vld [vmem:[#allocation4 + $0x266] ss:$0 sm:$0xff]
        %v3605 = vld [vmem:[#allocation4 + $0x26e] ss:$0 sm:$0xff]
        %3608 = vrot.lane.b32.xlu0 %v3604, 50
        %v3609 = vpop.permute.xlu0 %3608
        %3610 = vrot.lane.b32.xlu0 %v3605, 50
        %v3611 = vpop.permute.xlu0 %3610
        %v3612 = vsel %vm2484, %v3609, %v3611
        %v3614 = vadd.f32 %v3603, %v3612
        %v3615 = vld [vmem:[#allocation4 + $0x267] ss:$0 sm:$0xff]
        %v3616 = vld [vmem:[#allocation4 + $0x26f] ss:$0 sm:$0xff]
        %3619 = vrot.lane.b32.xlu0 %v3615, 49
        %v3620 = vpop.permute.xlu0 %3619
        %3621 = vrot.lane.b32.xlu0 %v3616, 49
        %v3622 = vpop.permute.xlu0 %3621
        %v3623 = vsel %vm2496, %v3620, %v3622
        %v3625 = vadd.f32 %v3614, %v3623
        %v3626 = vld [vmem:[#allocation4 + $0x278] ss:$0 sm:$0xff]
        %v3627 = vld [vmem:[#allocation4 + $0x280] ss:$0 sm:$0xff]
        %3630 = vrot.lane.b32.xlu0 %v3626, 48
        %v3631 = vpop.permute.xlu0 %3630
        %3632 = vrot.lane.b32.xlu0 %v3627, 48
        %v3633 = vpop.permute.xlu0 %3632
        %v3634 = vsel %vm2508, %v3631, %v3633
        %v3636 = vadd.f32 %v3625, %v3634
        %v3637 = vld [vmem:[#allocation4 + $0x279] ss:$0 sm:$0xff]
        %v3638 = vld [vmem:[#allocation4 + $0x281] ss:$0 sm:$0xff]
        %3641 = vrot.lane.b32.xlu0 %v3637, 47
        %v3642 = vpop.permute.xlu0 %3641
        %3643 = vrot.lane.b32.xlu0 %v3638, 47
        %v3644 = vpop.permute.xlu0 %3643
        %v3645 = vsel %vm2520, %v3642, %v3644
        %v3647 = vadd.f32 %v3636, %v3645
        %v3648 = vld [vmem:[#allocation4 + $0x27a] ss:$0 sm:$0xff]
        %v3649 = vld [vmem:[#allocation4 + $0x282] ss:$0 sm:$0xff]
        %3652 = vrot.lane.b32.xlu0 %v3648, 46
        %v3653 = vpop.permute.xlu0 %3652
        %3654 = vrot.lane.b32.xlu0 %v3649, 46
        %v3655 = vpop.permute.xlu0 %3654
        %v3656 = vsel %vm2532, %v3653, %v3655
        %v3658 = vadd.f32 %v3647, %v3656
        %v3659 = vld [vmem:[#allocation4 + $0x27b] ss:$0 sm:$0xff]
        %v3660 = vld [vmem:[#allocation4 + $0x283] ss:$0 sm:$0xff]
        %3663 = vrot.lane.b32.xlu0 %v3659, 45
        %v3664 = vpop.permute.xlu0 %3663
        %3665 = vrot.lane.b32.xlu0 %v3660, 45
        %v3666 = vpop.permute.xlu0 %3665
        %v3667 = vsel %vm2544, %v3664, %v3666
        %v3669 = vadd.f32 %v3658, %v3667
        %v3670 = vld [vmem:[#allocation4 + $0x27c] ss:$0 sm:$0xff]
        %v3671 = vld [vmem:[#allocation4 + $0x284] ss:$0 sm:$0xff]
        %3674 = vrot.lane.b32.xlu0 %v3670, 44
        %v3675 = vpop.permute.xlu0 %3674
        %3676 = vrot.lane.b32.xlu0 %v3671, 44
        %v3677 = vpop.permute.xlu0 %3676
        %v3678 = vsel %vm947, %v3675, %v3677
        %v3680 = vadd.f32 %v3669, %v3678
        %v3681 = vld [vmem:[#allocation4 + $0x27d] ss:$0 sm:$0xff]
        %v3682 = vld [vmem:[#allocation4 + $0x285] ss:$0 sm:$0xff]
        %3685 = vrot.lane.b32.xlu0 %v3681, 43
        %v3686 = vpop.permute.xlu0 %3685
        %3687 = vrot.lane.b32.xlu0 %v3682, 43
        %v3688 = vpop.permute.xlu0 %3687
        %v3689 = vsel %vm2567, %v3686, %v3688
        %v3691 = vadd.f32 %v3680, %v3689
        %v3692 = vld [vmem:[#allocation4 + $0x27e] ss:$0 sm:$0xff]
        %v3693 = vld [vmem:[#allocation4 + $0x286] ss:$0 sm:$0xff]
        %3696 = vrot.lane.b32.xlu0 %v3692, 42
        %v3697 = vpop.permute.xlu0 %3696
        %3698 = vrot.lane.b32.xlu0 %v3693, 42
        %v3699 = vpop.permute.xlu0 %3698
        %v3700 = vsel %vm2579, %v3697, %v3699
        %v3702 = vadd.f32 %v3691, %v3700
        %v3703 = vld [vmem:[#allocation4 + $0x27f] ss:$0 sm:$0xff]
        %v3704 = vld [vmem:[#allocation4 + $0x287] ss:$0 sm:$0xff]
        %3707 = vrot.lane.b32.xlu0 %v3703, 41
        %v3708 = vpop.permute.xlu0 %3707
        %3709 = vrot.lane.b32.xlu0 %v3704, 41
        %v3710 = vpop.permute.xlu0 %3709
        %v3711 = vsel %vm2591, %v3708, %v3710
        %v3713 = vadd.f32 %v3702, %v3711
        %v3714 = vld [vmem:[#allocation4 + $0x290] ss:$0 sm:$0xff]
        %v3715 = vld [vmem:[#allocation4 + $0x298] ss:$0 sm:$0xff]
        %3718 = vrot.lane.b32.xlu0 %v3714, 40
        %v3719 = vpop.permute.xlu0 %3718
        %3720 = vrot.lane.b32.xlu0 %v3715, 40
        %v3721 = vpop.permute.xlu0 %3720
        %v3722 = vsel %vm2603, %v3719, %v3721
        %v3724 = vadd.f32 %v3713, %v3722
        %v3725 = vld [vmem:[#allocation4 + $0x291] ss:$0 sm:$0xff]
        %v3726 = vld [vmem:[#allocation4 + $0x299] ss:$0 sm:$0xff]
        %3729 = vrot.lane.b32.xlu0 %v3725, 39
        %v3730 = vpop.permute.xlu0 %3729
        %3731 = vrot.lane.b32.xlu0 %v3726, 39
        %v3732 = vpop.permute.xlu0 %3731
        %v3733 = vsel %vm2615, %v3730, %v3732
        %v3735 = vadd.f32 %v3724, %v3733
        %v3736 = vld [vmem:[#allocation4 + $0x292] ss:$0 sm:$0xff]
        %v3737 = vld [vmem:[#allocation4 + $0x29a] ss:$0 sm:$0xff]
        %3740 = vrot.lane.b32.xlu0 %v3736, 38
        %v3741 = vpop.permute.xlu0 %3740
        %3742 = vrot.lane.b32.xlu0 %v3737, 38
        %v3743 = vpop.permute.xlu0 %3742
        %v3744 = vsel %vm2627, %v3741, %v3743
        %v3746 = vadd.f32 %v3735, %v3744
        %v3747 = vld [vmem:[#allocation4 + $0x293] ss:$0 sm:$0xff]
        %v3748 = vld [vmem:[#allocation4 + $0x29b] ss:$0 sm:$0xff]
        %3751 = vrot.lane.b32.xlu0 %v3747, 37
        %v3752 = vpop.permute.xlu0 %3751
        %3753 = vrot.lane.b32.xlu0 %v3748, 37
        %v3754 = vpop.permute.xlu0 %3753
        %v3755 = vsel %vm2639, %v3752, %v3754
        %v3757 = vadd.f32 %v3746, %v3755
        %v3758 = vld [vmem:[#allocation4 + $0x294] ss:$0 sm:$0xff]
        %v3759 = vld [vmem:[#allocation4 + $0x29c] ss:$0 sm:$0xff]
        %3762 = vrot.lane.b32.xlu0 %v3758, 36
        %v3763 = vpop.permute.xlu0 %3762
        %3764 = vrot.lane.b32.xlu0 %v3759, 36
        %v3765 = vpop.permute.xlu0 %3764
        %v3766 = vsel %vm2651, %v3763, %v3765
        %v3768 = vadd.f32 %v3757, %v3766
        %v3769 = vld [vmem:[#allocation4 + $0x295] ss:$0 sm:$0xff]
        %v3770 = vld [vmem:[#allocation4 + $0x29d] ss:$0 sm:$0xff]
        %3773 = vrot.lane.b32.xlu0 %v3769, 35
        %v3774 = vpop.permute.xlu0 %3773
        %3775 = vrot.lane.b32.xlu0 %v3770, 35
        %v3776 = vpop.permute.xlu0 %3775
        %v3777 = vsel %vm2663, %v3774, %v3776
        %v3779 = vadd.f32 %v3768, %v3777
        %v3780 = vld [vmem:[#allocation4 + $0x296] ss:$0 sm:$0xff]
        %v3781 = vld [vmem:[#allocation4 + $0x29e] ss:$0 sm:$0xff]
        %3784 = vrot.lane.b32.xlu0 %v3780, 34
        %v3785 = vpop.permute.xlu0 %3784
        %3786 = vrot.lane.b32.xlu0 %v3781, 34
        %v3787 = vpop.permute.xlu0 %3786
        %v3788 = vsel %vm2675, %v3785, %v3787
        %v3790 = vadd.f32 %v3779, %v3788
        %v3791 = vld [vmem:[#allocation4 + $0x297] ss:$0 sm:$0xff]
        %v3792 = vld [vmem:[#allocation4 + $0x29f] ss:$0 sm:$0xff]
        %3795 = vrot.lane.b32.xlu0 %v3791, 33
        %v3796 = vpop.permute.xlu0 %3795
        %3797 = vrot.lane.b32.xlu0 %v3792, 33
        %v3798 = vpop.permute.xlu0 %3797
        %v3799 = vsel %vm2687, %v3796, %v3798
        %v3801 = vadd.f32 %v3790, %v3799
        %v3802 = vld [vmem:[#allocation4 + $0x2a8] ss:$0 sm:$0xff]
        %v3803 = vld [vmem:[#allocation4 + $0x2b0] ss:$0 sm:$0xff]
        %3806 = vrot.lane.b32.xlu0 %v3802, 32
        %v3807 = vpop.permute.xlu0 %3806
        %3808 = vrot.lane.b32.xlu0 %v3803, 32
        %v3809 = vpop.permute.xlu0 %3808
        %v3810 = vsel %vm2699, %v3807, %v3809
        %v3812 = vadd.f32 %v3801, %v3810
        %v3813 = vld [vmem:[#allocation4 + $0x2a9] ss:$0 sm:$0xff]
        %v3814 = vld [vmem:[#allocation4 + $0x2b1] ss:$0 sm:$0xff]
        %3817 = vrot.lane.b32.xlu0 %v3813, 31
        %v3818 = vpop.permute.xlu0 %3817
        %3819 = vrot.lane.b32.xlu0 %v3814, 31
        %v3820 = vpop.permute.xlu0 %3819
        %v3821 = vsel %vm2711, %v3818, %v3820
        %v3823 = vadd.f32 %v3812, %v3821
        %v3824 = vld [vmem:[#allocation4 + $0x2aa] ss:$0 sm:$0xff]
        %v3825 = vld [vmem:[#allocation4 + $0x2b2] ss:$0 sm:$0xff]
        %3828 = vrot.lane.b32.xlu0 %v3824, 30
        %v3829 = vpop.permute.xlu0 %3828
        %3830 = vrot.lane.b32.xlu0 %v3825, 30
        %v3831 = vpop.permute.xlu0 %3830
        %v3832 = vsel %vm2723, %v3829, %v3831
        %v3834 = vadd.f32 %v3823, %v3832
        %v3835 = vld [vmem:[#allocation4 + $0x2ab] ss:$0 sm:$0xff]
        %v3836 = vld [vmem:[#allocation4 + $0x2b3] ss:$0 sm:$0xff]
        %3839 = vrot.lane.b32.xlu0 %v3835, 29
        %v3840 = vpop.permute.xlu0 %3839
        %3841 = vrot.lane.b32.xlu0 %v3836, 29
        %v3842 = vpop.permute.xlu0 %3841
        %v3843 = vsel %vm2735, %v3840, %v3842
        %v3845 = vadd.f32 %v3834, %v3843
        %v3846 = vld [vmem:[#allocation4 + $0x2ac] ss:$0 sm:$0xff]
        %v3847 = vld [vmem:[#allocation4 + $0x2b4] ss:$0 sm:$0xff]
        %3850 = vrot.lane.b32.xlu0 %v3846, 28
        %v3851 = vpop.permute.xlu0 %3850
        %3852 = vrot.lane.b32.xlu0 %v3847, 28
        %v3853 = vpop.permute.xlu0 %3852
        %v3854 = vsel %vm2747, %v3851, %v3853
        %v3856 = vadd.f32 %v3845, %v3854
        %v3857 = vld [vmem:[#allocation4 + $0x2ad] ss:$0 sm:$0xff]
        %v3858 = vld [vmem:[#allocation4 + $0x2b5] ss:$0 sm:$0xff]
        %3861 = vrot.lane.b32.xlu0 %v3857, 27
        %v3862 = vpop.permute.xlu0 %3861
        %3863 = vrot.lane.b32.xlu0 %v3858, 27
        %v3864 = vpop.permute.xlu0 %3863
        %v3865 = vsel %vm2759, %v3862, %v3864
        %v3867 = vadd.f32 %v3856, %v3865
        %v3868 = vld [vmem:[#allocation4 + $0x2ae] ss:$0 sm:$0xff]
        %v3869 = vld [vmem:[#allocation4 + $0x2b6] ss:$0 sm:$0xff]
        %3872 = vrot.lane.b32.xlu0 %v3868, 26
        %v3873 = vpop.permute.xlu0 %3872
        %3874 = vrot.lane.b32.xlu0 %v3869, 26
        %v3875 = vpop.permute.xlu0 %3874
        %v3876 = vsel %vm2771, %v3873, %v3875
        %v3878 = vadd.f32 %v3867, %v3876
        %v3879 = vld [vmem:[#allocation4 + $0x2af] ss:$0 sm:$0xff]
        %v3880 = vld [vmem:[#allocation4 + $0x2b7] ss:$0 sm:$0xff]
        %3883 = vrot.lane.b32.xlu0 %v3879, 25
        %v3884 = vpop.permute.xlu0 %3883
        %3885 = vrot.lane.b32.xlu0 %v3880, 25
        %v3886 = vpop.permute.xlu0 %3885
        %v3887 = vsel %vm2783, %v3884, %v3886
        %v3889 = vadd.f32 %v3878, %v3887
        %v3890 = vld [vmem:[#allocation4 + $0x2c0] ss:$0 sm:$0xff]
        %v3891 = vld [vmem:[#allocation4 + $0x2c8] ss:$0 sm:$0xff]
        %3894 = vrot.lane.b32.xlu0 %v3890, 24
        %v3895 = vpop.permute.xlu0 %3894
        %3896 = vrot.lane.b32.xlu0 %v3891, 24
        %v3897 = vpop.permute.xlu0 %3896
        %v3898 = vsel %vm2795, %v3895, %v3897
        %v3900 = vadd.f32 %v3889, %v3898
        %v3901 = vld [vmem:[#allocation4 + $0x2c1] ss:$0 sm:$0xff]
        %v3902 = vld [vmem:[#allocation4 + $0x2c9] ss:$0 sm:$0xff]
        %3905 = vrot.lane.b32.xlu0 %v3901, 23
        %v3906 = vpop.permute.xlu0 %3905
        %3907 = vrot.lane.b32.xlu0 %v3902, 23
        %v3908 = vpop.permute.xlu0 %3907
        %v3909 = vsel %vm2807, %v3906, %v3908
        %v3911 = vadd.f32 %v3900, %v3909
        %v3912 = vld [vmem:[#allocation4 + $0x2c2] ss:$0 sm:$0xff]
        %v3913 = vld [vmem:[#allocation4 + $0x2ca] ss:$0 sm:$0xff]
        %3916 = vrot.lane.b32.xlu0 %v3912, 22
        %v3917 = vpop.permute.xlu0 %3916
        %3918 = vrot.lane.b32.xlu0 %v3913, 22
        %v3919 = vpop.permute.xlu0 %3918
        %v3920 = vsel %vm2819, %v3917, %v3919
        %v3922 = vadd.f32 %v3911, %v3920
        %v3923 = vld [vmem:[#allocation4 + $0x2c3] ss:$0 sm:$0xff]
        %v3924 = vld [vmem:[#allocation4 + $0x2cb] ss:$0 sm:$0xff]
        %3927 = vrot.lane.b32.xlu0 %v3923, 21
        %v3928 = vpop.permute.xlu0 %3927
        %3929 = vrot.lane.b32.xlu0 %v3924, 21
        %v3930 = vpop.permute.xlu0 %3929
        %v3931 = vsel %vm2831, %v3928, %v3930
        %v3933 = vadd.f32 %v3922, %v3931
        %v3934 = vld [vmem:[#allocation4 + $0x2c4] ss:$0 sm:$0xff]
        %v3935 = vld [vmem:[#allocation4 + $0x2cc] ss:$0 sm:$0xff]
        %3938 = vrot.lane.b32.xlu0 %v3934, 20
        %v3939 = vpop.permute.xlu0 %3938
        %3940 = vrot.lane.b32.xlu0 %v3935, 20
        %v3941 = vpop.permute.xlu0 %3940
        %v3942 = vsel %vm2843, %v3939, %v3941
        %v3944 = vadd.f32 %v3933, %v3942
        %v3945 = vld [vmem:[#allocation4 + $0x2c5] ss:$0 sm:$0xff]
        %v3946 = vld [vmem:[#allocation4 + $0x2cd] ss:$0 sm:$0xff]
        %3949 = vrot.lane.b32.xlu0 %v3945, 19
        %v3950 = vpop.permute.xlu0 %3949
        %3951 = vrot.lane.b32.xlu0 %v3946, 19
        %v3952 = vpop.permute.xlu0 %3951
        %v3953 = vsel %vm2855, %v3950, %v3952
        %v3955 = vadd.f32 %v3944, %v3953
        %v3956 = vld [vmem:[#allocation4 + $0x2c6] ss:$0 sm:$0xff]
        %v3957 = vld [vmem:[#allocation4 + $0x2ce] ss:$0 sm:$0xff]
        %3960 = vrot.lane.b32.xlu0 %v3956, 18
        %v3961 = vpop.permute.xlu0 %3960
        %3962 = vrot.lane.b32.xlu0 %v3957, 18
        %v3963 = vpop.permute.xlu0 %3962
        %v3964 = vsel %vm2867, %v3961, %v3963
        %v3966 = vadd.f32 %v3955, %v3964
        %v3967 = vld [vmem:[#allocation4 + $0x2c7] ss:$0 sm:$0xff]
        %v3968 = vld [vmem:[#allocation4 + $0x2cf] ss:$0 sm:$0xff]
        %3971 = vrot.lane.b32.xlu0 %v3967, 17
        %v3972 = vpop.permute.xlu0 %3971
        %3973 = vrot.lane.b32.xlu0 %v3968, 17
        %v3974 = vpop.permute.xlu0 %3973
        %v3975 = vsel %vm2879, %v3972, %v3974
        %v3977 = vadd.f32 %v3966, %v3975
        %v3978 = vld [vmem:[#allocation4 + $0x2d8] ss:$0 sm:$0xff]
        %v3979 = vld [vmem:[#allocation4 + $0x2e0] ss:$0 sm:$0xff]
        %3982 = vrot.lane.b32.xlu0 %v3978, 16
        %v3983 = vpop.permute.xlu0 %3982
        %3984 = vrot.lane.b32.xlu0 %v3979, 16
        %v3985 = vpop.permute.xlu0 %3984
        %v3986 = vsel %vm2891, %v3983, %v3985
        %v3988 = vadd.f32 %v3977, %v3986
        %v3989 = vld [vmem:[#allocation4 + $0x2d9] ss:$0 sm:$0xff]
        %v3990 = vld [vmem:[#allocation4 + $0x2e1] ss:$0 sm:$0xff]
        %3993 = vrot.lane.b32.xlu0 %v3989, 15
        %v3994 = vpop.permute.xlu0 %3993
        %3995 = vrot.lane.b32.xlu0 %v3990, 15
        %v3996 = vpop.permute.xlu0 %3995
        %v3997 = vsel %vm2903, %v3994, %v3996
        %v3999 = vadd.f32 %v3988, %v3997
        %v4000 = vld [vmem:[#allocation4 + $0x2da] ss:$0 sm:$0xff]
        %v4001 = vld [vmem:[#allocation4 + $0x2e2] ss:$0 sm:$0xff]
        %4004 = vrot.lane.b32.xlu0 %v4000, 14
        %v4005 = vpop.permute.xlu0 %4004
        %4006 = vrot.lane.b32.xlu0 %v4001, 14
        %v4007 = vpop.permute.xlu0 %4006
        %v4008 = vsel %vm2915, %v4005, %v4007
        %v4010 = vadd.f32 %v3999, %v4008
        %v4011 = vld [vmem:[#allocation4 + $0x2db] ss:$0 sm:$0xff]
        %v4012 = vld [vmem:[#allocation4 + $0x2e3] ss:$0 sm:$0xff]
        %4015 = vrot.lane.b32.xlu0 %v4011, 13
        %v4016 = vpop.permute.xlu0 %4015
        %4017 = vrot.lane.b32.xlu0 %v4012, 13
        %v4018 = vpop.permute.xlu0 %4017
        %v4019 = vsel %vm2927, %v4016, %v4018
        %v4021 = vadd.f32 %v4010, %v4019
        %v4022 = vld [vmem:[#allocation4 + $0x2dc] ss:$0 sm:$0xff]
        %v4023 = vld [vmem:[#allocation4 + $0x2e4] ss:$0 sm:$0xff]
        %4026 = vrot.lane.b32.xlu0 %v4022, 12
        %v4027 = vpop.permute.xlu0 %4026
        %4028 = vrot.lane.b32.xlu0 %v4023, 12
        %v4029 = vpop.permute.xlu0 %4028
        %v4030 = vsel %vm2939, %v4027, %v4029
        %v4032 = vadd.f32 %v4021, %v4030
        %v4033 = vld [vmem:[#allocation4 + $0x2dd] ss:$0 sm:$0xff]
        %v4034 = vld [vmem:[#allocation4 + $0x2e5] ss:$0 sm:$0xff]
        %4037 = vrot.lane.b32.xlu0 %v4033, 11
        %v4038 = vpop.permute.xlu0 %4037
        %4039 = vrot.lane.b32.xlu0 %v4034, 11
        %v4040 = vpop.permute.xlu0 %4039
        %v4041 = vsel %vm2951, %v4038, %v4040
        %v4043 = vadd.f32 %v4032, %v4041
        %v4044 = vld [vmem:[#allocation4 + $0x2de] ss:$0 sm:$0xff]
        %v4045 = vld [vmem:[#allocation4 + $0x2e6] ss:$0 sm:$0xff]
        %4048 = vrot.lane.b32.xlu0 %v4044, 10
        %v4049 = vpop.permute.xlu0 %4048
        %4050 = vrot.lane.b32.xlu0 %v4045, 10
        %v4051 = vpop.permute.xlu0 %4050
        %v4052 = vsel %vm2963, %v4049, %v4051
        %v4054 = vadd.f32 %v4043, %v4052
        %v4055 = vld [vmem:[#allocation4 + $0x2df] ss:$0 sm:$0xff]
        %v4056 = vld [vmem:[#allocation4 + $0x2e7] ss:$0 sm:$0xff]
        %4059 = vrot.lane.b32.xlu0 %v4055, 9
        %v4060 = vpop.permute.xlu0 %4059
        %4061 = vrot.lane.b32.xlu0 %v4056, 9
        %v4062 = vpop.permute.xlu0 %4061
        %v4063 = vsel %vm2975, %v4060, %v4062
        %v4065 = vadd.f32 %v4054, %v4063
        %v4066 = vld [vmem:[#allocation4 + $0x2f0] ss:$0 sm:$0xff]
        %v4067 = vld [vmem:[#allocation4 + $0x2f8] ss:$0 sm:$0xff]
        %4070 = vrot.lane.b32.xlu0 %v4066, 8
        %v4071 = vpop.permute.xlu0 %4070
        %4072 = vrot.lane.b32.xlu0 %v4067, 8
        %v4073 = vpop.permute.xlu0 %4072
        %v4074 = vsel %vm2987, %v4071, %v4073
        %v4076 = vadd.f32 %v4065, %v4074
        %v4077 = vld [vmem:[#allocation4 + $0x2f1] ss:$0 sm:$0xff]
        %v4078 = vld [vmem:[#allocation4 + $0x2f9] ss:$0 sm:$0xff]
        %4081 = vrot.lane.b32.xlu0 %v4077, 7
        %v4082 = vpop.permute.xlu0 %4081
        %4083 = vrot.lane.b32.xlu0 %v4078, 7
        %v4084 = vpop.permute.xlu0 %4083
        %v4085 = vsel %vm2999, %v4082, %v4084
        %v4087 = vadd.f32 %v4076, %v4085
        %v4088 = vld [vmem:[#allocation4 + $0x2f2] ss:$0 sm:$0xff]
        %v4089 = vld [vmem:[#allocation4 + $0x2fa] ss:$0 sm:$0xff]
        %4092 = vrot.lane.b32.xlu0 %v4088, 6
        %v4093 = vpop.permute.xlu0 %4092
        %4094 = vrot.lane.b32.xlu0 %v4089, 6
        %v4095 = vpop.permute.xlu0 %4094
        %v4096 = vsel %vm3011, %v4093, %v4095
        %v4098 = vadd.f32 %v4087, %v4096
        %v4099 = vld [vmem:[#allocation4 + $0x2f3] ss:$0 sm:$0xff]
        %v4100 = vld [vmem:[#allocation4 + $0x2fb] ss:$0 sm:$0xff]
        %4103 = vrot.lane.b32.xlu0 %v4099, 5
        %v4104 = vpop.permute.xlu0 %4103
        %4105 = vrot.lane.b32.xlu0 %v4100, 5
        %v4106 = vpop.permute.xlu0 %4105
        %v4107 = vsel %vm3023, %v4104, %v4106
        %v4109 = vadd.f32 %v4098, %v4107
        %v4110 = vld [vmem:[#allocation4 + $0x2f4] ss:$0 sm:$0xff]
        %v4111 = vld [vmem:[#allocation4 + $0x2fc] ss:$0 sm:$0xff]
        %4114 = vrot.lane.b32.xlu0 %v4110, 4
        %v4115 = vpop.permute.xlu0 %4114
        %4116 = vrot.lane.b32.xlu0 %v4111, 4
        %v4117 = vpop.permute.xlu0 %4116
        %v4118 = vsel %vm3035, %v4115, %v4117
        %v4120 = vadd.f32 %v4109, %v4118
        %v4121 = vld [vmem:[#allocation4 + $0x2f5] ss:$0 sm:$0xff]
        %v4122 = vld [vmem:[#allocation4 + $0x2fd] ss:$0 sm:$0xff]
        %4125 = vrot.lane.b32.xlu0 %v4121, 3
        %v4126 = vpop.permute.xlu0 %4125
        %4127 = vrot.lane.b32.xlu0 %v4122, 3
        %v4128 = vpop.permute.xlu0 %4127
        %v4129 = vsel %vm3047, %v4126, %v4128
        %v4131 = vadd.f32 %v4120, %v4129
        %v4132 = vld [vmem:[#allocation4 + $0x2f6] ss:$0 sm:$0xff]
        %v4133 = vld [vmem:[#allocation4 + $0x2fe] ss:$0 sm:$0xff]
        %4136 = vrot.lane.b32.xlu0 %v4132, 2
        %v4137 = vpop.permute.xlu0 %4136
        %4138 = vrot.lane.b32.xlu0 %v4133, 2
        %v4139 = vpop.permute.xlu0 %4138
        %v4140 = vsel %vm3059, %v4137, %v4139
        %v4142 = vadd.f32 %v4131, %v4140
        %v4143 = vld [vmem:[#allocation4 + $0x2f7] ss:$0 sm:$0xff]
        %v4144 = vld [vmem:[#allocation4 + $0x2ff] ss:$0 sm:$0xff]
        %4147 = vrot.lane.b32.xlu0 %v4143, 1
        %v4148 = vpop.permute.xlu0 %4147
        %4149 = vrot.lane.b32.xlu0 %v4144, 1
        %v4150 = vpop.permute.xlu0 %4149
        %v4151 = vsel %vm3071, %v4148, %v4150
        %v4153 = vadd.f32 %v4142, %v4151
        %v4154 = vld [vmem:[#allocation4 + $0x310] ss:$0 sm:$0xff]
        %v4155 = vadd.f32 %v4153, %v4154
        %v4156 = vld [vmem:[#allocation4 + $0x311] ss:$0 sm:$0xff]
        %4158 = vrot.lane.b32.xlu0 %v4156, 127
        %v4159 = vpop.permute.xlu0 %4158
        %v4161 = vadd.f32 %v4155, %v4159
        %v4162 = vld [vmem:[#allocation4 + $0x312] ss:$0 sm:$0xff]
        %4164 = vrot.lane.b32.xlu0 %v4162, 126
        %v4165 = vpop.permute.xlu0 %4164
        %v4167 = vadd.f32 %v4161, %v4165
        %v4168 = vld [vmem:[#allocation4 + $0x313] ss:$0 sm:$0xff]
        %4170 = vrot.lane.b32.xlu0 %v4168, 125
        %v4171 = vpop.permute.xlu0 %4170
        %v4173 = vadd.f32 %v4167, %v4171
        %v4174 = vld [vmem:[#allocation4 + $0x314] ss:$0 sm:$0xff]
        %4176 = vrot.lane.b32.xlu0 %v4174, 124
        %v4177 = vpop.permute.xlu0 %4176
        %v4179 = vadd.f32 %v4173, %v4177
        %v4180 = vld [vmem:[#allocation4 + $0x315] ss:$0 sm:$0xff]
        %4182 = vrot.lane.b32.xlu0 %v4180, 123
        %v4183 = vpop.permute.xlu0 %4182
        %v4185 = vadd.f32 %v4179, %v4183
        %v4186 = vld [vmem:[#allocation4 + $0x316] ss:$0 sm:$0xff]
        %4188 = vrot.lane.b32.xlu0 %v4186, 122
        %v4189 = vpop.permute.xlu0 %4188
        %v4191 = vadd.f32 %v4185, %v4189
        %v4192 = vld [vmem:[#allocation4 + $0x317] ss:$0 sm:$0xff]
        %4194 = vrot.lane.b32.xlu0 %v4192, 121
        %v4195 = vpop.permute.xlu0 %4194
        %v4197 = vadd.f32 %v4191, %v4195
        %v4198 = vld [vmem:[#allocation4 + $0x328] ss:$0 sm:$0xff]
        %4200 = vrot.lane.b32.xlu0 %v4198, 120
        %v4201 = vpop.permute.xlu0 %4200
        %v4203 = vadd.f32 %v4197, %v4201
        %v4204 = vld [vmem:[#allocation4 + $0x329] ss:$0 sm:$0xff]
        %4206 = vrot.lane.b32.xlu0 %v4204, 119
        %v4207 = vpop.permute.xlu0 %4206
        %v4209 = vadd.f32 %v4203, %v4207
        %v4210 = vld [vmem:[#allocation4 + $0x32a] ss:$0 sm:$0xff]
        %4212 = vrot.lane.b32.xlu0 %v4210, 118
        %v4213 = vpop.permute.xlu0 %4212
        %v4215 = vadd.f32 %v4209, %v4213
        %v4216 = vld [vmem:[#allocation4 + $0x32b] ss:$0 sm:$0xff]
        %4218 = vrot.lane.b32.xlu0 %v4216, 117
        %v4219 = vpop.permute.xlu0 %4218
        %v4221 = vadd.f32 %v4215, %v4219
        %v4222 = vld [vmem:[#allocation4 + $0x32c] ss:$0 sm:$0xff]
        %4224 = vrot.lane.b32.xlu0 %v4222, 116
        %v4225 = vpop.permute.xlu0 %4224
        %v4227 = vadd.f32 %v4221, %v4225
        %v4228 = vld [vmem:[#allocation4 + $0x32d] ss:$0 sm:$0xff]
        %4230 = vrot.lane.b32.xlu0 %v4228, 115
        %v4231 = vpop.permute.xlu0 %4230
        %v4233 = vadd.f32 %v4227, %v4231
        %v4234 = vld [vmem:[#allocation4 + $0x32e] ss:$0 sm:$0xff]
        %4236 = vrot.lane.b32.xlu0 %v4234, 114
        %v4237 = vpop.permute.xlu0 %4236
        %v4239 = vadd.f32 %v4233, %v4237
        %v4240 = vld [vmem:[#allocation4 + $0x32f] ss:$0 sm:$0xff]
        %4242 = vrot.lane.b32.xlu0 %v4240, 113
        %v4243 = vpop.permute.xlu0 %4242
        %v4245 = vadd.f32 %v4239, %v4243
        %v4246 = vld [vmem:[#allocation4 + $0x340] ss:$0 sm:$0xff]
        %4248 = vrot.lane.b32.xlu0 %v4246, 112
        %v4249 = vpop.permute.xlu0 %4248
        %v4251 = vadd.f32 %v4245, %v4249
        %v4252 = vld [vmem:[#allocation4 + $0x341] ss:$0 sm:$0xff]
        %4254 = vrot.lane.b32.xlu0 %v4252, 111
        %v4255 = vpop.permute.xlu0 %4254
        %v4257 = vadd.f32 %v4251, %v4255
        %v4258 = vld [vmem:[#allocation4 + $0x342] ss:$0 sm:$0xff]
        %4260 = vrot.lane.b32.xlu0 %v4258, 110
        %v4261 = vpop.permute.xlu0 %4260
        %v4263 = vadd.f32 %v4257, %v4261
        %v4264 = vld [vmem:[#allocation4 + $0x343] ss:$0 sm:$0xff]
        %4266 = vrot.lane.b32.xlu0 %v4264, 109
        %v4267 = vpop.permute.xlu0 %4266
        %v4269 = vadd.f32 %v4263, %v4267
        %v4270 = vld [vmem:[#allocation4 + $0x344] ss:$0 sm:$0xff]
        %4272 = vrot.lane.b32.xlu0 %v4270, 108
        %v4273 = vpop.permute.xlu0 %4272
        %v4275 = vadd.f32 %v4269, %v4273
        %v4276 = vld [vmem:[#allocation4 + $0x345] ss:$0 sm:$0xff]
        %4278 = vrot.lane.b32.xlu0 %v4276, 107
        %v4279 = vpop.permute.xlu0 %4278
        %v4281 = vadd.f32 %v4275, %v4279
        %v4282 = vld [vmem:[#allocation4 + $0x346] ss:$0 sm:$0xff]
        %4284 = vrot.lane.b32.xlu0 %v4282, 106
        %v4285 = vpop.permute.xlu0 %4284
        %v4287 = vadd.f32 %v4281, %v4285
        %v4288 = vld [vmem:[#allocation4 + $0x347] ss:$0 sm:$0xff]
        %4290 = vrot.lane.b32.xlu0 %v4288, 105
        %v4291 = vpop.permute.xlu0 %4290
        %v4293 = vadd.f32 %v4287, %v4291
        %v4294 = vld [vmem:[#allocation4 + $0x358] ss:$0 sm:$0xff]
        %4296 = vrot.lane.b32.xlu0 %v4294, 104
        %v4297 = vpop.permute.xlu0 %4296
        %v4299 = vadd.f32 %v4293, %v4297
        %v4300 = vld [vmem:[#allocation4 + $0x359] ss:$0 sm:$0xff]
        %4302 = vrot.lane.b32.xlu0 %v4300, 103
        %v4303 = vpop.permute.xlu0 %4302
        %v4305 = vadd.f32 %v4299, %v4303
        %v4306 = vld [vmem:[#allocation4 + $0x35a] ss:$0 sm:$0xff]
        %4308 = vrot.lane.b32.xlu0 %v4306, 102
        %v4309 = vpop.permute.xlu0 %4308
        %v4311 = vadd.f32 %v4305, %v4309
        %v4312 = vld [vmem:[#allocation4 + $0x35b] ss:$0 sm:$0xff]
        %4314 = vrot.lane.b32.xlu0 %v4312, 101
        %v4315 = vpop.permute.xlu0 %4314
        %v4317 = vadd.f32 %v4311, %v4315
        %v4318 = vld [vmem:[#allocation4 + $0x35c] ss:$0 sm:$0xff]
        %4320 = vrot.lane.b32.xlu0 %v4318, 100
        %v4321 = vpop.permute.xlu0 %4320
        %v4323 = vadd.f32 %v4317, %v4321
        %v4324 = vld [vmem:[#allocation4 + $0x35d] ss:$0 sm:$0xff]
        %4326 = vrot.lane.b32.xlu0 %v4324, 99
        %v4327 = vpop.permute.xlu0 %4326
        %v4329 = vadd.f32 %v4323, %v4327
        %v4330 = vld [vmem:[#allocation4 + $0x35e] ss:$0 sm:$0xff]
        %4332 = vrot.lane.b32.xlu0 %v4330, 98
        %v4333 = vpop.permute.xlu0 %4332
        %v4335 = vadd.f32 %v4329, %v4333
        %v4336 = vld [vmem:[#allocation4 + $0x35f] ss:$0 sm:$0xff]
        %4338 = vrot.lane.b32.xlu0 %v4336, 97
        %v4339 = vpop.permute.xlu0 %4338
        %v4341 = vadd.f32 %v4335, %v4339
        %v4342 = vld [vmem:[#allocation4 + $0x370] ss:$0 sm:$0xff]
        %4344 = vrot.lane.b32.xlu0 %v4342, 96
        %v4345 = vpop.permute.xlu0 %4344
        %v4347 = vadd.f32 %v4341, %v4345
        %v4348 = vld [vmem:[#allocation4 + $0x371] ss:$0 sm:$0xff]
        %4350 = vrot.lane.b32.xlu0 %v4348, 95
        %v4351 = vpop.permute.xlu0 %4350
        %v4353 = vadd.f32 %v4347, %v4351
        %v4354 = vld [vmem:[#allocation4 + $0x372] ss:$0 sm:$0xff]
        %4356 = vrot.lane.b32.xlu0 %v4354, 94
        %v4357 = vpop.permute.xlu0 %4356
        %v4359 = vadd.f32 %v4353, %v4357
        %v4360 = vld [vmem:[#allocation4 + $0x373] ss:$0 sm:$0xff]
        %4362 = vrot.lane.b32.xlu0 %v4360, 93
        %v4363 = vpop.permute.xlu0 %4362
        %v4365 = vadd.f32 %v4359, %v4363
        %v4366 = vld [vmem:[#allocation4 + $0x374] ss:$0 sm:$0xff]
        %4368 = vrot.lane.b32.xlu0 %v4366, 92
        %v4369 = vpop.permute.xlu0 %4368
        %v4371 = vadd.f32 %v4365, %v4369
        %v4372 = vld [vmem:[#allocation4 + $0x375] ss:$0 sm:$0xff]
        %4374 = vrot.lane.b32.xlu0 %v4372, 91
        %v4375 = vpop.permute.xlu0 %4374
        %v4377 = vadd.f32 %v4371, %v4375
        %v4378 = vld [vmem:[#allocation4 + $0x376] ss:$0 sm:$0xff]
        %4380 = vrot.lane.b32.xlu0 %v4378, 90
        %v4381 = vpop.permute.xlu0 %4380
        %v4383 = vadd.f32 %v4377, %v4381
        %v4384 = vld [vmem:[#allocation4 + $0x377] ss:$0 sm:$0xff]
        %4386 = vrot.lane.b32.xlu0 %v4384, 89
        %v4387 = vpop.permute.xlu0 %4386
        %v4389 = vadd.f32 %v4383, %v4387
        %v4390 = vld [vmem:[#allocation4 + $0x388] ss:$0 sm:$0xff]
        %4392 = vrot.lane.b32.xlu0 %v4390, 88
        %v4393 = vpop.permute.xlu0 %4392
        %v4395 = vadd.f32 %v4389, %v4393
        %v4396 = vld [vmem:[#allocation4 + $0x389] ss:$0 sm:$0xff]
        %4398 = vrot.lane.b32.xlu0 %v4396, 87
        %v4399 = vpop.permute.xlu0 %4398
        %v4401 = vadd.f32 %v4395, %v4399
        %v4402 = vld [vmem:[#allocation4 + $0x38a] ss:$0 sm:$0xff]
        %4404 = vrot.lane.b32.xlu0 %v4402, 86
        %v4405 = vpop.permute.xlu0 %4404
        %v4407 = vadd.f32 %v4401, %v4405
        %v4408 = vld [vmem:[#allocation4 + $0x38b] ss:$0 sm:$0xff]
        %4410 = vrot.lane.b32.xlu0 %v4408, 85
        %v4411 = vpop.permute.xlu0 %4410
        %v4413 = vadd.f32 %v4407, %v4411
        %s4414 = sld [smem:[#allocation5]]
        %v4415 = vstv %s4414
        %v4416 = vadd.f32 %v4413, %v4415
        %v4417 = vmax.f32 %v4416, 0.0
        %vm4418 = vcmask 516096
        %4419 = vst.msk [vmem:[%s215] sm:$0x1] %vm4418, %v4417
        %s4420 = sand.u32 %s138, 1
        %s4421 = scalar_lea.sflag [#allocation7], %s4420
        %s4422 = sand.u32 %s138, 1
        %s4423 = scalar_lea.vmem [#allocation6], %s4422
        // Predicated region
        $region41: #{cnn_forward.1} parent=39 // pred_check
          %p4424 = pneg %p148
        $region42: #{cnn_forward.1} parent=39 // pred_check_branch
          %4426 = sbr.rel (%p4424) target = $region44
        $region43: #{cnn_forward.1} parent=39 // pred_region
          %s4428 = ssub.s32 16, 16
          %4429 = vsyncadd %s4421, %s4428
          %s4430 = smul.addr %s20, 16
          %s4431 = scalar_lea.hbm %s5, %s4430
          %s4433 = sshll.u32 %s4423, 4
          %s4434 = int_to_ptr.vmem [resolvable:$true] %s4433
          %4436 = dma.vmem_to_hbm [thread:$0]  %s4434, 16, %s4431, %s4421
        $region44: #{cnn_forward.1} parent=39 // pred_fallthru
          _
      $region40: #{cnn_forward.1} parent=5 // pred_fallthru
        _
      %p4437 = scmp.le.s32.totalorder 2, %s15
      // Predicated region
      $region45: #{cnn_forward.1} parent=5 // pred_check
        %p4438 = pneg %p4437
      $region46: #{cnn_forward.1} parent=5 // pred_check_branch
        %4440 = sbr.rel (%p4438) target = $region48
      $region47: #{cnn_forward.1} parent=5 // pred_region
        %s4441 = ssub.s32 %s15, 2
        // Predicated region
        $region49: #{cnn_forward.1} parent=47 // pred_check
          %p4442 = pneg %p154
        $region50: #{cnn_forward.1} parent=47 // pred_check_branch
          %4444 = sbr.rel (%p4442) target = $region52
        $region51: #{cnn_forward.1} parent=47 // pred_region
          %s4445 = sand.u32 %s139, 1
          %s4446 = scalar_lea.sflag [#allocation7], %s4445
          %s4447 = sand.u32 %s139, 1
          %s4448 = scalar_lea.vmem [#allocation6], %s4447
          %4449 = dma.done %s4446, 16
        $region52: #{cnn_forward.1} parent=47 // pred_fallthru
          _
      $region48: #{cnn_forward.1} parent=5 // pred_fallthru
        _
    $region6: #{cnn_forward.1} parent=1 // loop_footer
      %s19 = sadd.s32 1, %s15
    $region7: #{cnn_forward.1} parent=1 // loop_footer_branch
      %14 = sbr.rel target = $region3
    $region8: #{cnn_forward.1} parent=1 // loop_exit
      _
    %4450 = vsyncpa [#allocation7], 1
    %s4451 = scalar_lea.sflag [#allocation7], 1
    %4452 = vsyncpa %s4451, 1

</llo_original>
